<compile_context>
chip_gen: v5e
topology: v5e:2x2
jax: 0.10.0
libtpu: 0.0.40
codegen_flags: <defaults>
</compile_context>

<pallas_src>
from functools import partial

import jax
import jax.numpy as jnp
from jax.experimental import pallas as pl
from jax.experimental.pallas import tpu as pltpu

EPS = 1e-5  # PyTorch BatchNorm2d default


# ----------------------------------------------------------------------------
# Fused kernel: 1x1 conv+ReLU -> 3x3 conv(d=1)+BN+ReLU -> 3x3 conv(d=2)+BN+ReLU
#               -> residual add.  One (batch, row-tile) step per grid point;
#               all intermediates live in VMEM.
# ----------------------------------------------------------------------------
def _fused_kernel(x_ref, w0_ref, b0_ref, w1_ref, sh1_ref, w2_ref, sh2_ref,
                  o_ref, pad1_ref, pad2_ref, pat1_ref, pat2_ref,
                  *, H, W, TH, Cout):
    i = pl.program_id(1)
    row0 = i * TH                 # first output image row handled by this step
    HS = TH + 6                   # initial-feature rows incl. 3-row halo
    H1 = TH + 4                   # conv1 output rows needed by conv2 (2-row halo)
    bf16 = jnp.bfloat16

    # ---- initial: 1x1 conv + bias + ReLU over the row slab (halo included) ----
    start = pl.multiple_of(i * (TH * W), TH * W)
    x2d = x_ref[pl.ds(start, HS * W), :]                       # (HS*W, Cin) f32
    init = jnp.dot(x2d.astype(bf16), w0_ref[...],
                   preferred_element_type=jnp.float32) + b0_ref[...]
    init = jnp.maximum(init, 0.0).reshape(HS, W, Cout)         # (HS, W, C) f32
    # Halo rows outside the real image are the trunk's ZERO padding
    # (not initial(0) = relu(b0)); mask them out.
    g0 = row0 + jax.lax.broadcasted_iota(jnp.int32, (HS, 1, 1), 0) - 3
    init = jnp.where((g0 >= 0) & (g0 < H), init, 0.0)

    # ---- conv1: 3x3, dilation 1, folded bias+BN, ReLU --------------------------
    # ring-zero only the two column strips; vertical halo is real data
    pad1_ref[:, 0:1, :] = jnp.zeros((HS, 1, Cout), jnp.float32)
    pad1_ref[:, W + 1:W + 2, :] = jnp.zeros((HS, 1, Cout), jnp.float32)
    pad1_ref[:, 1:1 + W, :] = init
    k = 0
    for kh in range(3):
        for kw in range(3):
            pat1_ref[:, :, k * Cout:(k + 1) * Cout] = (
                pad1_ref[kh:kh + H1, kw:kw + W, :].astype(bf16))
            k += 1
    y1 = jnp.dot(pat1_ref[...].reshape(H1 * W, 9 * Cout), w1_ref[...],
                 preferred_element_type=jnp.float32) + sh1_ref[...]
    y1 = jnp.maximum(y1, 0.0).reshape(H1, W, Cout)
    # conv1 rows outside the image are conv2's zero padding; mask them.
    g1 = row0 + jax.lax.broadcasted_iota(jnp.int32, (H1, 1, 1), 0) - 2
    y1 = jnp.where((g1 >= 0) & (g1 < H), y1, 0.0)

    # ---- conv2: 3x3, dilation 2, folded bias+BN, ReLU ---------------------------
    pad2_ref[:, 0:2, :] = jnp.zeros((H1, 2, Cout), jnp.float32)
    pad2_ref[:, W + 2:W + 4, :] = jnp.zeros((H1, 2, Cout), jnp.float32)
    pad2_ref[:, 2:2 + W, :] = y1
    k = 0
    for kh in range(3):
        for kw in range(3):
            pat2_ref[:, :, k * Cout:(k + 1) * Cout] = (
                pad2_ref[2 * kh:2 * kh + TH, 2 * kw:2 * kw + W, :].astype(bf16))
            k += 1
    y2 = jnp.dot(pat2_ref[...].reshape(TH * W, 9 * Cout), w2_ref[...],
                 preferred_element_type=jnp.float32) + sh2_ref[...]
    y2 = jnp.maximum(y2, 0.0)                                   # (TH*W, C)

    # ---- residual: initial (interior rows) + trunk ------------------------------
    o_ref[...] = init[3:3 + TH].reshape(TH * W, Cout) + y2


# ----------------------------------------------------------------------------
# Wrapper
# ----------------------------------------------------------------------------
def refinement_stage_block(x_nchw, params, row_tile=8):
    """Forward pass of RefinementStageBlock. Input NCHW, output NCHW (like PyTorch)."""
    N, Cin, H, W = x_nchw.shape
    Cout = params["w0"].shape[1]
    TH = int(row_tile)
    n_tiles = pl.cdiv(H, TH)
    Hp = n_tiles * TH
    HS, H1 = TH + 6, TH + 4

    # NCHW -> NHWC, pad 3 halo rows top and (Hp-H)+3 bottom, flatten to (rows, Cin).
    x = jnp.transpose(x_nchw, (0, 2, 3, 1))
    x = jnp.pad(x, ((0, 0), (3, Hp - H + 3), (0, 0), (0, 0)))
    x = x.reshape(N, (Hp + 6) * W, Cin)

    # Fold conv bias + inference BatchNorm; pre-cast matmul weights to bf16.
    s1 = params["g1"] / jnp.sqrt(params["v1"] + EPS)
    s2 = params["g2"] / jnp.sqrt(params["v2"] + EPS)
    w0 = params["w0"].astype(jnp.bfloat16)                             # (Cin, Cout)
    b0 = params["b0"].reshape(1, Cout)
    w1f = (params["w1"] * s1).reshape(9 * Cout, Cout).astype(jnp.bfloat16)
    w2f = (params["w2"] * s2).reshape(9 * Cout, Cout).astype(jnp.bfloat16)
    sh1 = ((params["b1"] - params["m1"]) * s1 + params["bt1"]).reshape(1, Cout)
    sh2 = ((params["b2"] - params["m2"]) * s2 + params["bt2"]).reshape(1, Cout)

    kernel = partial(_fused_kernel, H=H, W=W, TH=TH, Cout=Cout)

    # Explicit VMEM budget: double-buffered I/O + weights + scratch + f32 temps,
    # with 2x headroom, clamped to [8 MiB, 64 MiB] (v7x physical ceiling).
    io_bytes = 2 * ((Hp + 6) * W * Cin * 4 + TH * W * Cout * 4
                    + (Cin * Cout + 2 * 9 * Cout * Cout) * 2 + 3 * Cout * 4)
    scratch_bytes = ((HS * (W + 2) + H1 * (W + 4)) * Cout * 4
                     + (H1 + TH) * W * 9 * Cout * 2)
    temp_bytes = (HS + H1 + 2 * TH) * W * Cout * 4 + H1 * W * 9 * Cout * 4
    vmem_limit = int(min(64 * 2 ** 20,
                         max(8 * 2 ** 20,
                             2 * (io_bytes + scratch_bytes + temp_bytes))))

    flops = 2 * N * n_tiles * W * (HS * Cin * Cout + (H1 + TH) * 9 * Cout * Cout)
    bytes_accessed = int(4 * (x.size + N * Hp * W * Cout)
                         + 2 * (w0.size + w1f.size + w2f.size)
                         + 4 * (b0.size + sh1.size + sh2.size))

    out = pl.pallas_call(
        kernel,
        out_shape=jax.ShapeDtypeStruct((N, Hp * W, Cout), jnp.float32),
        grid=(N, n_tiles),
        in_specs=[
            pl.BlockSpec((None, (Hp + 6) * W, Cin), lambda n, i: (n, 0, 0)),  # x (full padded image; fetched once per n)
            pl.BlockSpec((Cin, Cout), lambda n, i: (0, 0)),                   # w0 (bf16)
            pl.BlockSpec((1, Cout), lambda n, i: (0, 0)),                     # b0
            pl.BlockSpec((9 * Cout, Cout), lambda n, i: (0, 0)),              # w1 (BN-folded, bf16)
            pl.BlockSpec((1, Cout), lambda n, i: (0, 0)),                     # shift1
            pl.BlockSpec((9 * Cout, Cout), lambda n, i: (0, 0)),              # w2 (BN-folded, bf16)
            pl.BlockSpec((1, Cout), lambda n, i: (0, 0)),                     # shift2
        ],
        out_specs=pl.BlockSpec((None, TH * W, Cout), lambda n, i: (n, i, 0)),
        scratch_shapes=[
            pltpu.VMEM((HS, W + 2, Cout), jnp.float32),        # conv1 pad buffer (f32)
            pltpu.VMEM((H1, W + 4, Cout), jnp.float32),        # conv2 pad buffer (f32)
            pltpu.VMEM((H1, W, 9 * Cout), jnp.bfloat16),       # conv1 im2col patches (bf16)
            pltpu.VMEM((TH, W, 9 * Cout), jnp.bfloat16),       # conv2 im2col patches (bf16)
        ],
        compiler_params=pltpu.CompilerParams(
            dimension_semantics=("parallel", "parallel"),
            vmem_limit_bytes=vmem_limit),
        cost_estimate=pl.CostEstimate(flops=flops, transcendentals=0,
                                      bytes_accessed=bytes_accessed),
    )(x, w0, b0, w1f, sh1, w2f, sh2)

    # (N, Hp*W, Cout) -> drop bottom-pad rows -> NCHW
    out = out[:, :H * W, :].reshape(N, H, W, Cout)
    return jnp.transpose(out, (0, 3, 1, 2))


# ----------------------------------------------------------------------------
# Pure-JAX reference (for correctness check)
# ----------------------------------------------------------------------------
def reference(x_nchw, params):
    x = jnp.transpose(x_nchw, (0, 2, 3, 1))
    dn = ("NHWC", "HWIO", "NHWC")

    def bn(y, g, bt, m, v):
        return (y - m) / jnp.sqrt(v + EPS) * g + bt

    y0 = jax.lax.conv_general_dilated(x, params["w0"][None, None], (1, 1),
                                      [(0, 0), (0, 0)], dimension_numbers=dn)
    y0 = jnp.maximum(y0 + params["b0"], 0.0)

    y1 = jax.lax.conv_general_dilated(y0, params["w1"], (1, 1),
                                      [(1, 1), (1, 1)], rhs_dilation=(1, 1),
                                      dimension_numbers=dn)
    y1 = jnp.maximum(bn(y1 + params["b1"], params["g1"], params["bt1"],
                        params["m1"], params["v1"]), 0.0)

    y2 = jax.lax.conv_general_dilated(y1, params["w2"], (1, 1),
                                      [(2, 2), (2, 2)], rhs_dilation=(2, 2),
                                      dimension_numbers=dn)
    y2 = jnp.maximum(bn(y2 + params["b2"], params["g2"], params["bt2"],
                        params["m2"], params["v2"]), 0.0)

    return jnp.transpose(y0 + y2, (0, 3, 1, 2))


# ----------------------------------------------------------------------------
# Main
# ----------------------------------------------------------------------------
if __name__ == "__main__":
    N, Cin, Cout, H, W = 2, 4, 8, 16, 16

    key = jax.random.PRNGKey(0)
    ks = jax.random.split(key, 16)

    # Deterministic synthetic parameters (PyTorch OIHW weights -> HWIO).
    w0_oihw = jax.random.normal(ks[0], (Cout, Cin, 1, 1), jnp.float32) * 0.2
    w1_oihw = jax.random.normal(ks[1], (Cout, Cout, 3, 3), jnp.float32) * 0.2
    w2_oihw = jax.random.normal(ks[2], (Cout, Cout, 3, 3), jnp.float32) * 0.2

    params = {
        "w0": jnp.transpose(w0_oihw, (2, 3, 1, 0))[0, 0],          # (Cin, Cout)
        "b0": jax.random.normal(ks[3], (Cout,), jnp.float32) * 0.1,
        "w1": jnp.transpose(w1_oihw, (2, 3, 1, 0)),                # (3,3,Cout,Cout)
        "b1": jax.random.normal(ks[4], (Cout,), jnp.float32) * 0.1,
        "g1": jax.random.uniform(ks[5], (Cout,), jnp.float32, 0.8, 1.2),
        "bt1": jax.random.normal(ks[6], (Cout,), jnp.float32) * 0.1,
        "m1": jax.random.normal(ks[7], (Cout,), jnp.float32) * 0.1,
        "v1": jax.random.uniform(ks[8], (Cout,), jnp.float32, 0.5, 1.5),
        "w2": jnp.transpose(w2_oihw, (2, 3, 1, 0)),                # (3,3,Cout,Cout)
        "b2": jax.random.normal(ks[9], (Cout,), jnp.float32) * 0.1,
        "g2": jax.random.uniform(ks[10], (Cout,), jnp.float32, 0.8, 1.2),
        "bt2": jax.random.normal(ks[11], (Cout,), jnp.float32) * 0.1,
        "m2": jax.random.normal(ks[12], (Cout,), jnp.float32) * 0.1,
        "v2": jax.random.uniform(ks[13], (Cout,), jnp.float32, 0.5, 1.5),
    }

    x = jax.random.normal(ks[14], (N, Cin, H, W), jnp.float32)     # NCHW like PyTorch

    out = refinement_stage_block(x, params, row_tile=8)
    out = jax.block_until_ready(out)

    ref = jax.block_until_ready(reference(x, params))
    assert out.shape == (N, Cout, H, W), out.shape
    # bf16 MXU operands (f32 accumulation): looser tolerance than the f32 path.
    assert jnp.allclose(out, ref, atol=3e-2, rtol=3e-2), \
        float(jnp.max(jnp.abs(out - ref)))

    print("KERNEL_OK")
</pallas_src>

<mosaic_0001>
module attributes {stable_mosaic.version = 11 : i64} {
  func.func @_fused_kernel(%arg0: i32, %arg1: i32, %arg2: memref<1x352x4xf32, #tpu.memory_space<vmem>>, %arg3: memref<4x8xbf16, #tpu.memory_space<vmem>>, %arg4: memref<1x8xf32, #tpu.memory_space<vmem>>, %arg5: memref<72x8xbf16, #tpu.memory_space<vmem>>, %arg6: memref<1x8xf32, #tpu.memory_space<vmem>>, %arg7: memref<72x8xbf16, #tpu.memory_space<vmem>>, %arg8: memref<1x8xf32, #tpu.memory_space<vmem>>, %arg9: memref<1x128x8xf32, #tpu.memory_space<vmem>>, %arg10: memref<14x18x8xf32, #tpu.memory_space<vmem>>, %arg11: memref<12x20x8xf32, #tpu.memory_space<vmem>>, %arg12: memref<12x16x72xbf16, #tpu.memory_space<vmem>>, %arg13: memref<8x16x72xbf16, #tpu.memory_space<vmem>>) attributes {dimension_semantics = [#tpu.dimension_semantics<parallel>, #tpu.dimension_semantics<parallel>], iteration_bounds = array<i64: 2, 2>, scalar_prefetch = 0 : i64, scratch_operands = 4 : i64, tpu.core_type = #tpu.core_type<tc>, window_params = [{transform_indices = @transform_0, window_bounds = array<i64: 1, 352, 4>}, {pipeline_mode = #tpu.pipeline_mode<synchronous>, transform_indices = @transform_1, window_bounds = array<i64: 4, 8>}, {pipeline_mode = #tpu.pipeline_mode<synchronous>, transform_indices = @transform_2, window_bounds = array<i64: 1, 8>}, {pipeline_mode = #tpu.pipeline_mode<synchronous>, transform_indices = @transform_3, window_bounds = array<i64: 72, 8>}, {pipeline_mode = #tpu.pipeline_mode<synchronous>, transform_indices = @transform_4, window_bounds = array<i64: 1, 8>}, {pipeline_mode = #tpu.pipeline_mode<synchronous>, transform_indices = @transform_5, window_bounds = array<i64: 72, 8>}, {pipeline_mode = #tpu.pipeline_mode<synchronous>, transform_indices = @transform_6, window_bounds = array<i64: 1, 8>}, {transform_indices = @transform_7, window_bounds = array<i64: 1, 128, 8>}]} {
    %c8_i32 = arith.constant 8 : i32
    %0 = arith.muli %arg1, %c8_i32 : i32
    %c128_i32 = arith.constant 128 : i32
    %1 = arith.muli %arg1, %c128_i32 : i32
    %2 = tpu.assume_multiple %1, 128 : i32
    %c0 = arith.constant 0 : index
    %3 = arith.index_cast %2 : i32 to index
    %c0_0 = arith.constant 0 : index
    %4 = vector.load %arg2[%c0, %3, %c0_0] : memref<1x352x4xf32, #tpu.memory_space<vmem>>, vector<1x224x4xf32>
    %5 = vector.shape_cast %4 : vector<1x224x4xf32> to vector<224x4xf32>
    %6 = arith.truncf %5 : vector<224x4xf32> to vector<224x4xbf16>
    %c0_1 = arith.constant 0 : index
    %c0_2 = arith.constant 0 : index
    %7 = vector.load %arg3[%c0_1, %c0_2] : memref<4x8xbf16, #tpu.memory_space<vmem>>, vector<4x8xbf16>
    %cst = arith.constant dense<0.000000e+00> : vector<224x8xf32>
    %8 = tpu.matmul %6, %7, %cst {dimension_numbers = #tpu.dot_dimension_numbers<[1], [0], [0], [1], [0, 0, 1, 1], [], []>} : vector<224x4xbf16>, vector<4x8xbf16>, vector<224x8xf32> -> vector<224x8xf32>
    %c0_3 = arith.constant 0 : index
    %c0_4 = arith.constant 0 : index
    %9 = vector.load %arg4[%c0_3, %c0_4] : memref<1x8xf32, #tpu.memory_space<vmem>>, vector<1x8xf32>
    %10 = vector.broadcast %9 : vector<1x8xf32> to vector<224x8xf32>
    %11 = arith.addf %8, %10 : vector<224x8xf32>
    %cst_5 = arith.constant 0.000000e+00 : f32
    %12 = vector.broadcast %cst_5 : f32 to vector<224x8xf32>
    %13 = arith.maximumf %11, %12 : vector<224x8xf32>
    %14 = vector.shape_cast %13 : vector<224x8xf32> to vector<14x16x8xf32>
    %15 = tpu.iota {dimensions = array<i32: 0>} : vector<14x1x1xi32>
    %16 = vector.broadcast %0 : i32 to vector<14x1x1xi32>
    %17 = arith.addi %16, %15 : vector<14x1x1xi32>
    %c3_i32 = arith.constant 3 : i32
    %18 = vector.broadcast %c3_i32 : i32 to vector<14x1x1xi32>
    %19 = arith.subi %17, %18 : vector<14x1x1xi32>
    %c0_i32 = arith.constant 0 : i32
    %20 = vector.broadcast %c0_i32 : i32 to vector<14x1x1xi32>
    %21 = arith.cmpi sge, %19, %20 : vector<14x1x1xi32>
    %c16_i32 = arith.constant 16 : i32
    %22 = vector.broadcast %c16_i32 : i32 to vector<14x1x1xi32>
    %23 = arith.cmpi slt, %19, %22 : vector<14x1x1xi32>
    %24 = arith.andi %21, %23 : vector<14x1x1xi1>
    %cst_6 = arith.constant 0.000000e+00 : f32
    %25 = vector.shape_cast %24 : vector<14x1x1xi1> to vector<14x1x1xi1>
    %26 = vector.broadcast %25 : vector<14x1x1xi1> to vector<14x16x8xi1>
    %27 = vector.broadcast %cst_6 : f32 to vector<14x16x8xf32>
    %28 = arith.select %26, %14, %27 : vector<14x16x8xi1>, vector<14x16x8xf32>
    %cst_7 = arith.constant 0.000000e+00 : f32
    %29 = vector.broadcast %cst_7 : f32 to vector<14x1x8xf32>
    %c0_8 = arith.constant 0 : index
    %c0_9 = arith.constant 0 : index
    %c0_10 = arith.constant 0 : index
    %30 = vector.load %arg10[%c0_8, %c0_9, %c0_10] : memref<14x18x8xf32, #tpu.memory_space<vmem>>, vector<14x1x8xf32>
    tpu.vector_store %arg10[%c0_8, %c0_9, %c0_10], %29 {strides = array<i32>} : memref<14x18x8xf32, #tpu.memory_space<vmem>>, vector<14x1x8xf32>,
    %cst_11 = arith.constant 0.000000e+00 : f32
    %31 = vector.broadcast %cst_11 : f32 to vector<14x1x8xf32>
    %c0_12 = arith.constant 0 : index
    %c17 = arith.constant 17 : index
    %c0_13 = arith.constant 0 : index
    %32 = vector.load %arg10[%c0_12, %c17, %c0_13] : memref<14x18x8xf32, #tpu.memory_space<vmem>>, vector<14x1x8xf32>
    tpu.vector_store %arg10[%c0_12, %c17, %c0_13], %31 {strides = array<i32>} : memref<14x18x8xf32, #tpu.memory_space<vmem>>, vector<14x1x8xf32>,
    %c0_14 = arith.constant 0 : index
    %c1 = arith.constant 1 : index
    %c0_15 = arith.constant 0 : index
    %33 = vector.load %arg10[%c0_14, %c1, %c0_15] : memref<14x18x8xf32, #tpu.memory_space<vmem>>, vector<14x16x8xf32>
    tpu.vector_store %arg10[%c0_14, %c1, %c0_15], %28 {strides = array<i32>} : memref<14x18x8xf32, #tpu.memory_space<vmem>>, vector<14x16x8xf32>,
    %c0_16 = arith.constant 0 : index
    %c0_17 = arith.constant 0 : index
    %c0_18 = arith.constant 0 : index
    %34 = vector.load %arg10[%c0_16, %c0_17, %c0_18] : memref<14x18x8xf32, #tpu.memory_space<vmem>>, vector<12x16x8xf32>
    %35 = arith.truncf %34 : vector<12x16x8xf32> to vector<12x16x8xbf16>
    %c0_19 = arith.constant 0 : index
    %c0_20 = arith.constant 0 : index
    %c0_21 = arith.constant 0 : index
    %36 = vector.load %arg12[%c0_19, %c0_20, %c0_21] : memref<12x16x72xbf16, #tpu.memory_space<vmem>>, vector<12x16x8xbf16>
    tpu.vector_store %arg12[%c0_19, %c0_20, %c0_21], %35 {strides = array<i32>} : memref<12x16x72xbf16, #tpu.memory_space<vmem>>, vector<12x16x8xbf16>,
    %c0_22 = arith.constant 0 : index
    %c1_23 = arith.constant 1 : index
    %c0_24 = arith.constant 0 : index
    %37 = vector.load %arg10[%c0_22, %c1_23, %c0_24] : memref<14x18x8xf32, #tpu.memory_space<vmem>>, vector<12x16x8xf32>
    %38 = arith.truncf %37 : vector<12x16x8xf32> to vector<12x16x8xbf16>
    %c0_25 = arith.constant 0 : index
    %c0_26 = arith.constant 0 : index
    %c8 = arith.constant 8 : index
    %39 = vector.load %arg12[%c0_25, %c0_26, %c8] : memref<12x16x72xbf16, #tpu.memory_space<vmem>>, vector<12x16x8xbf16>
    tpu.vector_store %arg12[%c0_25, %c0_26, %c8], %38 {strides = array<i32>} : memref<12x16x72xbf16, #tpu.memory_space<vmem>>, vector<12x16x8xbf16>,
    %c0_27 = arith.constant 0 : index
    %c2 = arith.constant 2 : index
    %c0_28 = arith.constant 0 : index
    %40 = vector.load %arg10[%c0_27, %c2, %c0_28] : memref<14x18x8xf32, #tpu.memory_space<vmem>>, vector<12x16x8xf32>
    %41 = arith.truncf %40 : vector<12x16x8xf32> to vector<12x16x8xbf16>
    %c0_29 = arith.constant 0 : index
    %c0_30 = arith.constant 0 : index
    %c16 = arith.constant 16 : index
    %42 = vector.load %arg12[%c0_29, %c0_30, %c16] : memref<12x16x72xbf16, #tpu.memory_space<vmem>>, vector<12x16x8xbf16>
    tpu.vector_store %arg12[%c0_29, %c0_30, %c16], %41 {strides = array<i32>} : memref<12x16x72xbf16, #tpu.memory_space<vmem>>, vector<12x16x8xbf16>,
    %c1_31 = arith.constant 1 : index
    %c0_32 = arith.constant 0 : index
    %c0_33 = arith.constant 0 : index
    %43 = vector.load %arg10[%c1_31, %c0_32, %c0_33] : memref<14x18x8xf32, #tpu.memory_space<vmem>>, vector<12x16x8xf32>
    %44 = arith.truncf %43 : vector<12x16x8xf32> to vector<12x16x8xbf16>
    %c0_34 = arith.constant 0 : index
    %c0_35 = arith.constant 0 : index
    %c24 = arith.constant 24 : index
    %45 = vector.load %arg12[%c0_34, %c0_35, %c24] : memref<12x16x72xbf16, #tpu.memory_space<vmem>>, vector<12x16x8xbf16>
    tpu.vector_store %arg12[%c0_34, %c0_35, %c24], %44 {strides = array<i32>} : memref<12x16x72xbf16, #tpu.memory_space<vmem>>, vector<12x16x8xbf16>,
    %c1_36 = arith.constant 1 : index
    %c1_37 = arith.constant 1 : index
    %c0_38 = arith.constant 0 : index
    %46 = vector.load %arg10[%c1_36, %c1_37, %c0_38] : memref<14x18x8xf32, #tpu.memory_space<vmem>>, vector<12x16x8xf32>
    %47 = arith.truncf %46 : vector<12x16x8xf32> to vector<12x16x8xbf16>
    %c0_39 = arith.constant 0 : index
    %c0_40 = arith.constant 0 : index
    %c32 = arith.constant 32 : index
    %48 = vector.load %arg12[%c0_39, %c0_40, %c32] : memref<12x16x72xbf16, #tpu.memory_space<vmem>>, vector<12x16x8xbf16>
    tpu.vector_store %arg12[%c0_39, %c0_40, %c32], %47 {strides = array<i32>} : memref<12x16x72xbf16, #tpu.memory_space<vmem>>, vector<12x16x8xbf16>,
    %c1_41 = arith.constant 1 : index
    %c2_42 = arith.constant 2 : index
    %c0_43 = arith.constant 0 : index
    %49 = vector.load %arg10[%c1_41, %c2_42, %c0_43] : memref<14x18x8xf32, #tpu.memory_space<vmem>>, vector<12x16x8xf32>
    %50 = arith.truncf %49 : vector<12x16x8xf32> to vector<12x16x8xbf16>
    %c0_44 = arith.constant 0 : index
    %c0_45 = arith.constant 0 : index
    %c40 = arith.constant 40 : index
    %51 = vector.load %arg12[%c0_44, %c0_45, %c40] : memref<12x16x72xbf16, #tpu.memory_space<vmem>>, vector<12x16x8xbf16>
    tpu.vector_store %arg12[%c0_44, %c0_45, %c40], %50 {strides = array<i32>} : memref<12x16x72xbf16, #tpu.memory_space<vmem>>, vector<12x16x8xbf16>,
    %c2_46 = arith.constant 2 : index
    %c0_47 = arith.constant 0 : index
    %c0_48 = arith.constant 0 : index
    %52 = vector.load %arg10[%c2_46, %c0_47, %c0_48] : memref<14x18x8xf32, #tpu.memory_space<vmem>>, vector<12x16x8xf32>
    %53 = arith.truncf %52 : vector<12x16x8xf32> to vector<12x16x8xbf16>
    %c0_49 = arith.constant 0 : index
    %c0_50 = arith.constant 0 : index
    %c48 = arith.constant 48 : index
    %54 = vector.load %arg12[%c0_49, %c0_50, %c48] : memref<12x16x72xbf16, #tpu.memory_space<vmem>>, vector<12x16x8xbf16>
    tpu.vector_store %arg12[%c0_49, %c0_50, %c48], %53 {strides = array<i32>} : memref<12x16x72xbf16, #tpu.memory_space<vmem>>, vector<12x16x8xbf16>,
    %c2_51 = arith.constant 2 : index
    %c1_52 = arith.constant 1 : index
    %c0_53 = arith.constant 0 : index
    %55 = vector.load %arg10[%c2_51, %c1_52, %c0_53] : memref<14x18x8xf32, #tpu.memory_space<vmem>>, vector<12x16x8xf32>
    %56 = arith.truncf %55 : vector<12x16x8xf32> to vector<12x16x8xbf16>
    %c0_54 = arith.constant 0 : index
    %c0_55 = arith.constant 0 : index
    %c56 = arith.constant 56 : index
    %57 = vector.load %arg12[%c0_54, %c0_55, %c56] : memref<12x16x72xbf16, #tpu.memory_space<vmem>>, vector<12x16x8xbf16>
    tpu.vector_store %arg12[%c0_54, %c0_55, %c56], %56 {strides = array<i32>} : memref<12x16x72xbf16, #tpu.memory_space<vmem>>, vector<12x16x8xbf16>,
    %c2_56 = arith.constant 2 : index
    %c2_57 = arith.constant 2 : index
    %c0_58 = arith.constant 0 : index
    %58 = vector.load %arg10[%c2_56, %c2_57, %c0_58] : memref<14x18x8xf32, #tpu.memory_space<vmem>>, vector<12x16x8xf32>
    %59 = arith.truncf %58 : vector<12x16x8xf32> to vector<12x16x8xbf16>
    %c0_59 = arith.constant 0 : index
    %c0_60 = arith.constant 0 : index
    %c64 = arith.constant 64 : index
    %60 = vector.load %arg12[%c0_59, %c0_60, %c64] : memref<12x16x72xbf16, #tpu.memory_space<vmem>>, vector<12x16x8xbf16>
    tpu.vector_store %arg12[%c0_59, %c0_60, %c64], %59 {strides = array<i32>} : memref<12x16x72xbf16, #tpu.memory_space<vmem>>, vector<12x16x8xbf16>,
    %c0_61 = arith.constant 0 : index
    %c0_62 = arith.constant 0 : index
    %c0_63 = arith.constant 0 : index
    %61 = vector.load %arg12[%c0_61, %c0_62, %c0_63] : memref<12x16x72xbf16, #tpu.memory_space<vmem>>, vector<12x16x72xbf16>
    %62 = vector.shape_cast %61 : vector<12x16x72xbf16> to vector<192x72xbf16>
    %c0_64 = arith.constant 0 : index
    %c0_65 = arith.constant 0 : index
    %63 = vector.load %arg5[%c0_64, %c0_65] : memref<72x8xbf16, #tpu.memory_space<vmem>>, vector<72x8xbf16>
    %cst_66 = arith.constant dense<0.000000e+00> : vector<192x8xf32>
    %64 = tpu.matmul %62, %63, %cst_66 {dimension_numbers = #tpu.dot_dimension_numbers<[1], [0], [0], [1], [0, 0, 1, 1], [], []>} : vector<192x72xbf16>, vector<72x8xbf16>, vector<192x8xf32> -> vector<192x8xf32>
    %c0_67 = arith.constant 0 : index
    %c0_68 = arith.constant 0 : index
    %65 = vector.load %arg6[%c0_67, %c0_68] : memref<1x8xf32, #tpu.memory_space<vmem>>, vector<1x8xf32>
    %66 = vector.broadcast %65 : vector<1x8xf32> to vector<192x8xf32>
    %67 = arith.addf %64, %66 : vector<192x8xf32>
    %cst_69 = arith.constant 0.000000e+00 : f32
    %68 = vector.broadcast %cst_69 : f32 to vector<192x8xf32>
    %69 = arith.maximumf %67, %68 : vector<192x8xf32>
    %70 = vector.shape_cast %69 : vector<192x8xf32> to vector<12x16x8xf32>
    %71 = tpu.iota {dimensions = array<i32: 0>} : vector<12x1x1xi32>
    %72 = vector.broadcast %0 : i32 to vector<12x1x1xi32>
    %73 = arith.addi %72, %71 : vector<12x1x1xi32>
    %c2_i32 = arith.constant 2 : i32
    %74 = vector.broadcast %c2_i32 : i32 to vector<12x1x1xi32>
    %75 = arith.subi %73, %74 : vector<12x1x1xi32>
    %c0_i32_70 = arith.constant 0 : i32
    %76 = vector.broadcast %c0_i32_70 : i32 to vector<12x1x1xi32>
    %77 = arith.cmpi sge, %75, %76 : vector<12x1x1xi32>
    %c16_i32_71 = arith.constant 16 : i32
    %78 = vector.broadcast %c16_i32_71 : i32 to vector<12x1x1xi32>
    %79 = arith.cmpi slt, %75, %78 : vector<12x1x1xi32>
    %80 = arith.andi %77, %79 : vector<12x1x1xi1>
    %cst_72 = arith.constant 0.000000e+00 : f32
    %81 = vector.shape_cast %80 : vector<12x1x1xi1> to vector<12x1x1xi1>
    %82 = vector.broadcast %81 : vector<12x1x1xi1> to vector<12x16x8xi1>
    %83 = vector.broadcast %cst_72 : f32 to vector<12x16x8xf32>
    %84 = arith.select %82, %70, %83 : vector<12x16x8xi1>, vector<12x16x8xf32>
    %cst_73 = arith.constant 0.000000e+00 : f32
    %85 = vector.broadcast %cst_73 : f32 to vector<12x2x8xf32>
    %c0_74 = arith.constant 0 : index
    %c0_75 = arith.constant 0 : index
    %c0_76 = arith.constant 0 : index
    %86 = vector.load %arg11[%c0_74, %c0_75, %c0_76] : memref<12x20x8xf32, #tpu.memory_space<vmem>>, vector<12x2x8xf32>
    tpu.vector_store %arg11[%c0_74, %c0_75, %c0_76], %85 {strides = array<i32>} : memref<12x20x8xf32, #tpu.memory_space<vmem>>, vector<12x2x8xf32>,
    %cst_77 = arith.constant 0.000000e+00 : f32
    %87 = vector.broadcast %cst_77 : f32 to vector<12x2x8xf32>
    %c0_78 = arith.constant 0 : index
    %c18 = arith.constant 18 : index
    %c0_79 = arith.constant 0 : index
    %88 = vector.load %arg11[%c0_78, %c18, %c0_79] : memref<12x20x8xf32, #tpu.memory_space<vmem>>, vector<12x2x8xf32>
    tpu.vector_store %arg11[%c0_78, %c18, %c0_79], %87 {strides = array<i32>} : memref<12x20x8xf32, #tpu.memory_space<vmem>>, vector<12x2x8xf32>,
    %c0_80 = arith.constant 0 : index
    %c2_81 = arith.constant 2 : index
    %c0_82 = arith.constant 0 : index
    %89 = vector.load %arg11[%c0_80, %c2_81, %c0_82] : memref<12x20x8xf32, #tpu.memory_space<vmem>>, vector<12x16x8xf32>
    tpu.vector_store %arg11[%c0_80, %c2_81, %c0_82], %84 {strides = array<i32>} : memref<12x20x8xf32, #tpu.memory_space<vmem>>, vector<12x16x8xf32>,
    %c0_83 = arith.constant 0 : index
    %c0_84 = arith.constant 0 : index
    %c0_85 = arith.constant 0 : index
    %90 = vector.load %arg11[%c0_83, %c0_84, %c0_85] : memref<12x20x8xf32, #tpu.memory_space<vmem>>, vector<8x16x8xf32>
    %91 = arith.truncf %90 : vector<8x16x8xf32> to vector<8x16x8xbf16>
    %c0_86 = arith.constant 0 : index
    %c0_87 = arith.constant 0 : index
    %c0_88 = arith.constant 0 : index
    %92 = vector.load %arg13[%c0_86, %c0_87, %c0_88] : memref<8x16x72xbf16, #tpu.memory_space<vmem>>, vector<8x16x8xbf16>
    tpu.vector_store %arg13[%c0_86, %c0_87, %c0_88], %91 {strides = array<i32>} : memref<8x16x72xbf16, #tpu.memory_space<vmem>>, vector<8x16x8xbf16>,
    %c0_89 = arith.constant 0 : index
    %c2_90 = arith.constant 2 : index
    %c0_91 = arith.constant 0 : index
    %93 = vector.load %arg11[%c0_89, %c2_90, %c0_91] : memref<12x20x8xf32, #tpu.memory_space<vmem>>, vector<8x16x8xf32>
    %94 = arith.truncf %93 : vector<8x16x8xf32> to vector<8x16x8xbf16>
    %c0_92 = arith.constant 0 : index
    %c0_93 = arith.constant 0 : index
    %c8_94 = arith.constant 8 : index
    %95 = vector.load %arg13[%c0_92, %c0_93, %c8_94] : memref<8x16x72xbf16, #tpu.memory_space<vmem>>, vector<8x16x8xbf16>
    tpu.vector_store %arg13[%c0_92, %c0_93, %c8_94], %94 {strides = array<i32>} : memref<8x16x72xbf16, #tpu.memory_space<vmem>>, vector<8x16x8xbf16>,
    %c0_95 = arith.constant 0 : index
    %c4 = arith.constant 4 : index
    %c0_96 = arith.constant 0 : index
    %96 = vector.load %arg11[%c0_95, %c4, %c0_96] : memref<12x20x8xf32, #tpu.memory_space<vmem>>, vector<8x16x8xf32>
    %97 = arith.truncf %96 : vector<8x16x8xf32> to vector<8x16x8xbf16>
    %c0_97 = arith.constant 0 : index
    %c0_98 = arith.constant 0 : index
    %c16_99 = arith.constant 16 : index
    %98 = vector.load %arg13[%c0_97, %c0_98, %c16_99] : memref<8x16x72xbf16, #tpu.memory_space<vmem>>, vector<8x16x8xbf16>
    tpu.vector_store %arg13[%c0_97, %c0_98, %c16_99], %97 {strides = array<i32>} : memref<8x16x72xbf16, #tpu.memory_space<vmem>>, vector<8x16x8xbf16>,
    %c2_100 = arith.constant 2 : index
    %c0_101 = arith.constant 0 : index
    %c0_102 = arith.constant 0 : index
    %99 = vector.load %arg11[%c2_100, %c0_101, %c0_102] : memref<12x20x8xf32, #tpu.memory_space<vmem>>, vector<8x16x8xf32>
    %100 = arith.truncf %99 : vector<8x16x8xf32> to vector<8x16x8xbf16>
    %c0_103 = arith.constant 0 : index
    %c0_104 = arith.constant 0 : index
    %c24_105 = arith.constant 24 : index
    %101 = vector.load %arg13[%c0_103, %c0_104, %c24_105] : memref<8x16x72xbf16, #tpu.memory_space<vmem>>, vector<8x16x8xbf16>
    tpu.vector_store %arg13[%c0_103, %c0_104, %c24_105], %100 {strides = array<i32>} : memref<8x16x72xbf16, #tpu.memory_space<vmem>>, vector<8x16x8xbf16>,
    %c2_106 = arith.constant 2 : index
    %c2_107 = arith.constant 2 : index
    %c0_108 = arith.constant 0 : index
    %102 = vector.load %arg11[%c2_106, %c2_107, %c0_108] : memref<12x20x8xf32, #tpu.memory_space<vmem>>, vector<8x16x8xf32>
    %103 = arith.truncf %102 : vector<8x16x8xf32> to vector<8x16x8xbf16>
    %c0_109 = arith.constant 0 : index
    %c0_110 = arith.constant 0 : index
    %c32_111 = arith.constant 32 : index
    %104 = vector.load %arg13[%c0_109, %c0_110, %c32_111] : memref<8x16x72xbf16, #tpu.memory_space<vmem>>, vector<8x16x8xbf16>
    tpu.vector_store %arg13[%c0_109, %c0_110, %c32_111], %103 {strides = array<i32>} : memref<8x16x72xbf16, #tpu.memory_space<vmem>>, vector<8x16x8xbf16>,
    %c2_112 = arith.constant 2 : index
    %c4_113 = arith.constant 4 : index
    %c0_114 = arith.constant 0 : index
    %105 = vector.load %arg11[%c2_112, %c4_113, %c0_114] : memref<12x20x8xf32, #tpu.memory_space<vmem>>, vector<8x16x8xf32>
    %106 = arith.truncf %105 : vector<8x16x8xf32> to vector<8x16x8xbf16>
    %c0_115 = arith.constant 0 : index
    %c0_116 = arith.constant 0 : index
    %c40_117 = arith.constant 40 : index
    %107 = vector.load %arg13[%c0_115, %c0_116, %c40_117] : memref<8x16x72xbf16, #tpu.memory_space<vmem>>, vector<8x16x8xbf16>
    tpu.vector_store %arg13[%c0_115, %c0_116, %c40_117], %106 {strides = array<i32>} : memref<8x16x72xbf16, #tpu.memory_space<vmem>>, vector<8x16x8xbf16>,
    %c4_118 = arith.constant 4 : index
    %c0_119 = arith.constant 0 : index
    %c0_120 = arith.constant 0 : index
    %108 = vector.load %arg11[%c4_118, %c0_119, %c0_120] : memref<12x20x8xf32, #tpu.memory_space<vmem>>, vector<8x16x8xf32>
    %109 = arith.truncf %108 : vector<8x16x8xf32> to vector<8x16x8xbf16>
    %c0_121 = arith.constant 0 : index
    %c0_122 = arith.constant 0 : index
    %c48_123 = arith.constant 48 : index
    %110 = vector.load %arg13[%c0_121, %c0_122, %c48_123] : memref<8x16x72xbf16, #tpu.memory_space<vmem>>, vector<8x16x8xbf16>
    tpu.vector_store %arg13[%c0_121, %c0_122, %c48_123], %109 {strides = array<i32>} : memref<8x16x72xbf16, #tpu.memory_space<vmem>>, vector<8x16x8xbf16>,
    %c4_124 = arith.constant 4 : index
    %c2_125 = arith.constant 2 : index
    %c0_126 = arith.constant 0 : index
    %111 = vector.load %arg11[%c4_124, %c2_125, %c0_126] : memref<12x20x8xf32, #tpu.memory_space<vmem>>, vector<8x16x8xf32>
    %112 = arith.truncf %111 : vector<8x16x8xf32> to vector<8x16x8xbf16>
    %c0_127 = arith.constant 0 : index
    %c0_128 = arith.constant 0 : index
    %c56_129 = arith.constant 56 : index
    %113 = vector.load %arg13[%c0_127, %c0_128, %c56_129] : memref<8x16x72xbf16, #tpu.memory_space<vmem>>, vector<8x16x8xbf16>
    tpu.vector_store %arg13[%c0_127, %c0_128, %c56_129], %112 {strides = array<i32>} : memref<8x16x72xbf16, #tpu.memory_space<vmem>>, vector<8x16x8xbf16>,
    %c4_130 = arith.constant 4 : index
    %c4_131 = arith.constant 4 : index
    %c0_132 = arith.constant 0 : index
    %114 = vector.load %arg11[%c4_130, %c4_131, %c0_132] : memref<12x20x8xf32, #tpu.memory_space<vmem>>, vector<8x16x8xf32>
    %115 = arith.truncf %114 : vector<8x16x8xf32> to vector<8x16x8xbf16>
    %c0_133 = arith.constant 0 : index
    %c0_134 = arith.constant 0 : index
    %c64_135 = arith.constant 64 : index
    %116 = vector.load %arg13[%c0_133, %c0_134, %c64_135] : memref<8x16x72xbf16, #tpu.memory_space<vmem>>, vector<8x16x8xbf16>
    tpu.vector_store %arg13[%c0_133, %c0_134, %c64_135], %115 {strides = array<i32>} : memref<8x16x72xbf16, #tpu.memory_space<vmem>>, vector<8x16x8xbf16>,
    %c0_136 = arith.constant 0 : index
    %c0_137 = arith.constant 0 : index
    %c0_138 = arith.constant 0 : index
    %117 = vector.load %arg13[%c0_136, %c0_137, %c0_138] : memref<8x16x72xbf16, #tpu.memory_space<vmem>>, vector<8x16x72xbf16>
    %118 = vector.shape_cast %117 : vector<8x16x72xbf16> to vector<128x72xbf16>
    %c0_139 = arith.constant 0 : index
    %c0_140 = arith.constant 0 : index
    %119 = vector.load %arg7[%c0_139, %c0_140] : memref<72x8xbf16, #tpu.memory_space<vmem>>, vector<72x8xbf16>
    %cst_141 = arith.constant dense<0.000000e+00> : vector<128x8xf32>
    %120 = tpu.matmul %118, %119, %cst_141 {dimension_numbers = #tpu.dot_dimension_numbers<[1], [0], [0], [1], [0, 0, 1, 1], [], []>} : vector<128x72xbf16>, vector<72x8xbf16>, vector<128x8xf32> -> vector<128x8xf32>
    %c0_142 = arith.constant 0 : index
    %c0_143 = arith.constant 0 : index
    %121 = vector.load %arg8[%c0_142, %c0_143] : memref<1x8xf32, #tpu.memory_space<vmem>>, vector<1x8xf32>
    %122 = vector.broadcast %121 : vector<1x8xf32> to vector<128x8xf32>
    %123 = arith.addf %120, %122 : vector<128x8xf32>
    %cst_144 = arith.constant 0.000000e+00 : f32
    %124 = vector.broadcast %cst_144 : f32 to vector<128x8xf32>
    %125 = arith.maximumf %123, %124 : vector<128x8xf32>
    %126 = vector.extract_strided_slice %28 {offsets = [3, 0, 0], sizes = [8, 16, 8], strides = [1, 1, 1]} : vector<14x16x8xf32> to vector<8x16x8xf32>
    %127 = vector.shape_cast %126 : vector<8x16x8xf32> to vector<128x8xf32>
    %128 = arith.addf %127, %125 : vector<128x8xf32>
    %c0_145 = arith.constant 0 : index
    %c0_146 = arith.constant 0 : index
    %c0_147 = arith.constant 0 : index
    %129 = vector.load %arg9[%c0_145, %c0_146, %c0_147] : memref<1x128x8xf32, #tpu.memory_space<vmem>>, vector<1x128x8xf32>
    %130 = vector.shape_cast %129 : vector<1x128x8xf32> to vector<128x8xf32>
    %131 = vector.shape_cast %128 : vector<128x8xf32> to vector<1x128x8xf32>
    tpu.vector_store %arg9[%c0_145, %c0_146, %c0_147], %131 {strides = array<i32>} : memref<1x128x8xf32, #tpu.memory_space<vmem>>, vector<1x128x8xf32>,
    return
  }
  func.func @transform_0(%arg0: i32, %arg1: i32) -> (i32, i32, i32) {
    %c0_i32 = arith.constant 0 : i32
    %c0_i32_0 = arith.constant 0 : i32
    %c0_i32_1 = arith.constant 0 : i32
    return %arg0, %c0_i32, %c0_i32_0 : i32, i32, i32
  }
  func.func @transform_1(%arg0: i32, %arg1: i32) -> (i32, i32) {
    %c0_i32 = arith.constant 0 : i32
    %c0_i32_0 = arith.constant 0 : i32
    %c0_i32_1 = arith.constant 0 : i32
    return %c0_i32, %c0_i32_0 : i32, i32
  }
  func.func @transform_2(%arg0: i32, %arg1: i32) -> (i32, i32) {
    %c0_i32 = arith.constant 0 : i32
    %c0_i32_0 = arith.constant 0 : i32
    %c0_i32_1 = arith.constant 0 : i32
    return %c0_i32, %c0_i32_0 : i32, i32
  }
  func.func @transform_3(%arg0: i32, %arg1: i32) -> (i32, i32) {
    %c0_i32 = arith.constant 0 : i32
    %c0_i32_0 = arith.constant 0 : i32
    %c0_i32_1 = arith.constant 0 : i32
    return %c0_i32, %c0_i32_0 : i32, i32
  }
  func.func @transform_4(%arg0: i32, %arg1: i32) -> (i32, i32) {
    %c0_i32 = arith.constant 0 : i32
    %c0_i32_0 = arith.constant 0 : i32
    %c0_i32_1 = arith.constant 0 : i32
    return %c0_i32, %c0_i32_0 : i32, i32
  }
  func.func @transform_5(%arg0: i32, %arg1: i32) -> (i32, i32) {
    %c0_i32 = arith.constant 0 : i32
    %c0_i32_0 = arith.constant 0 : i32
    %c0_i32_1 = arith.constant 0 : i32
    return %c0_i32, %c0_i32_0 : i32, i32
  }
  func.func @transform_6(%arg0: i32, %arg1: i32) -> (i32, i32) {
    %c0_i32 = arith.constant 0 : i32
    %c0_i32_0 = arith.constant 0 : i32
    %c0_i32_1 = arith.constant 0 : i32
    return %c0_i32, %c0_i32_0 : i32, i32
  }
  func.func @transform_7(%arg0: i32, %arg1: i32) -> (i32, i32, i32) {
    %c0_i32 = arith.constant 0 : i32
    %c0_i32_0 = arith.constant 0 : i32
    return %arg0, %arg1, %c0_i32 : i32, i32, i32
  }
}

</mosaic_0001>

<llo_original>
// kernel: tpu_custom_call.1
$region0: #{tpu_custom_call.1}
  #allocation0 [shape = 'u32[]', space=smem, size = 0x4, offset = 0x4, fixed_abs, tag = 'smem constant byte address 0x4 - core index']
  #allocation1 [shape = 'u32[72,128]{1,0:T(1,128)}', space=vmem, size = 0x9000, scoped, tag = 'internal scratch']
  #allocation2 [shape = 'f32[14,18,8]{2,1,0:T(8,128)}', space=vmem, size = 0x2a000, scoped, tag = 'scratch operand']
  #allocation3 [shape = 'f32[12,20,8]{2,1,0:T(8,128)}', space=vmem, size = 0x24000, scoped, tag = 'scratch operand']
  #allocation4 [shape = 'bf16[12,16,72]{2,1,0:T(8,128)(2,1)}', space=vmem, size = 0xc000, scoped, tag = 'scratch operand']
  #allocation5 [shape = 'bf16[8,16,72]{2,1,0:T(8,128)(2,1)}', space=vmem, size = 0x8000, scoped, tag = 'scratch operand']
  %s0 = inlined_call_operand.vmem [shape: f32[2,352,4], index: 0, kind: input, shape index: {}]
  %s1 = inlined_call_operand.vmem [shape: bf16[4,8], index: 1, kind: input, shape index: {}]
  %s2 = inlined_call_operand.vmem [shape: f32[1,8], index: 2, kind: input, shape index: {}]
  %s3 = inlined_call_operand.vmem [shape: bf16[72,8], index: 3, kind: input, shape index: {}]
  %s4 = inlined_call_operand.vmem [shape: f32[1,8], index: 4, kind: input, shape index: {}]
  %s5 = inlined_call_operand.vmem [shape: bf16[72,8], index: 5, kind: input, shape index: {}]
  %s6 = inlined_call_operand.vmem [shape: f32[1,8], index: 6, kind: input, shape index: {}]
  %s7 = inlined_call_operand.vmem [shape: f32[2,256,8], index: 7, kind: output, shape index: {}]
  %s8 = sld [smem:[#allocation0]]
  $region61: #{tpu_custom_call.1} parent=0
    _
  %s10 = ssub.s32 1, %s8
  %s11 = scalar_select 0, %s10, %s8
  loop: start=0, step=1, limit=6
  $region2: #{tpu_custom_call.1} parent=0 // loop_pre_header
    _
  $region3: #{tpu_custom_call.1} parent=0 // loop_header
    %s13 = sphi 0, %s17
    %p14 = scmp.ge.s32.totalorder %s13, 6
    %s20 = sphi 0, %s32
    %s21 = sphi 0, %s28
    %s22 = sphi 0, %s20
    %s23 = sphi 0, %s21
    %s24 = sphi 0, %s22
    %s25 = sphi 0, %s23
    %s35 = sphi 0, %s37
    %s38 = sphi 0, %s35
    %s39 = sphi 0, %s38
    %s55 = sphi 0, %s39
    %s59 = sphi 0, %s59
    %s61 = sphi 0, %s59
    %s62 = sphi 0, %s61
    %s76 = sphi 0, %s62
    %s80 = sphi 0, %s80
    %s82 = sphi 0, %s80
    %s83 = sphi 0, %s82
    %s97 = sphi 0, %s83
    %s101 = sphi 0, %s101
    %s103 = sphi 0, %s101
    %s104 = sphi 0, %s103
    %s118 = sphi 0, %s104
    %s122 = sphi 0, %s122
    %s124 = sphi 0, %s122
    %s125 = sphi 0, %s124
    %s139 = sphi 0, %s125
    %s143 = sphi 0, %s143
    %s145 = sphi 0, %s143
    %s146 = sphi 0, %s145
    %s160 = sphi 0, %s146
    %s164 = sphi 0, %s164
    %s166 = sphi 0, %s164
    %s167 = sphi 0, %s166
    %s181 = sphi 0, %s167
    %s189 = sphi 0, %s191
    %s192 = sphi 0, %s189
    %s193 = sphi 0, %s192
    %s209 = sphi 0, %s193
  $region4: #{tpu_custom_call.1} parent=0 // loop_header_branch
    %16 = sbr.rel (%p14) target = $region8
  $region5: #{tpu_custom_call.1} parent=0 // loop_body
    %s18 = ssub.s32 %s13, 1
    %s19 = ssub.s32 %s13, 2
    %s26 = sadd.s32 1, %s21
    %p27 = scmp.ge.s32.totalorder %s26, 2
    %s28 = scalar_select %p27, 0, %s26
    %s29 = sadd.s32 1, %s20
    %s30 = scalar_select %p27, %s29, %s20
    %p31 = scmp.ge.s32.totalorder %s30, 2
    %s32 = scalar_select %p31, 0, %s30
    %s33 = ssub.s32 %s20, %s32
    %p34 = scmp.eq.s32.totalorder %s33, 0
    %s36 = sadd.s32 %s35, 1
    %s37 = scalar_select %p34, %s35, %s36
    %p40 = pneg %p34
    %p41 = scmp.eq.s32.totalorder %s13, 3
    %p42 = por %p40, %p41
    %p43 = scmp.ne.s32.totalorder %s35, %s38
    %p44 = scmp.eq.s32.totalorder %s13, 0
    %p45 = por %p43, %p44
    %p46 = scmp.ne.s32.totalorder %s35, %s38
    %p47 = scmp.eq.s32.totalorder %s18, 3
    %p48 = por %p46, %p47
    %p49 = scmp.ne.s32.totalorder %s38, %s39
    %p50 = scmp.eq.s32.totalorder %s18, 0
    %p51 = por %p49, %p50
    %p52 = scmp.ne.s32.totalorder %s38, %s39
    %p53 = scmp.eq.s32.totalorder %s19, 3
    %p54 = por %p52, %p53
    %p56 = scmp.ne.s32.totalorder %s39, %s55
    %p57 = scmp.eq.s32.totalorder %s19, 0
    %p58 = por %p56, %p57
    %s60 = sadd.s32 %s59, 1
    %p63 = scmp.eq.s32.totalorder %s13, 3
    %p64 = scmp.ne.s32.totalorder %s59, %s61
    %p65 = scmp.eq.s32.totalorder %s13, 0
    %p66 = por %p64, %p65
    %p67 = scmp.ne.s32.totalorder %s59, %s61
    %p68 = scmp.eq.s32.totalorder %s18, 3
    %p69 = por %p67, %p68
    %p70 = scmp.ne.s32.totalorder %s61, %s62
    %p71 = scmp.eq.s32.totalorder %s18, 0
    %p72 = por %p70, %p71
    %p73 = scmp.ne.s32.totalorder %s61, %s62
    %p74 = scmp.eq.s32.totalorder %s19, 3
    %p75 = por %p73, %p74
    %p77 = scmp.ne.s32.totalorder %s62, %s76
    %p78 = scmp.eq.s32.totalorder %s19, 0
    %p79 = por %p77, %p78
    %s81 = sadd.s32 %s80, 1
    %p84 = scmp.eq.s32.totalorder %s13, 3
    %p85 = scmp.ne.s32.totalorder %s80, %s82
    %p86 = scmp.eq.s32.totalorder %s13, 0
    %p87 = por %p85, %p86
    %p88 = scmp.ne.s32.totalorder %s80, %s82
    %p89 = scmp.eq.s32.totalorder %s18, 3
    %p90 = por %p88, %p89
    %p91 = scmp.ne.s32.totalorder %s82, %s83
    %p92 = scmp.eq.s32.totalorder %s18, 0
    %p93 = por %p91, %p92
    %p94 = scmp.ne.s32.totalorder %s82, %s83
    %p95 = scmp.eq.s32.totalorder %s19, 3
    %p96 = por %p94, %p95
    %p98 = scmp.ne.s32.totalorder %s83, %s97
    %p99 = scmp.eq.s32.totalorder %s19, 0
    %p100 = por %p98, %p99
    %s102 = sadd.s32 %s101, 1
    %p105 = scmp.eq.s32.totalorder %s13, 3
    %p106 = scmp.ne.s32.totalorder %s101, %s103
    %p107 = scmp.eq.s32.totalorder %s13, 0
    %p108 = por %p106, %p107
    %p109 = scmp.ne.s32.totalorder %s101, %s103
    %p110 = scmp.eq.s32.totalorder %s18, 3
    %p111 = por %p109, %p110
    %p112 = scmp.ne.s32.totalorder %s103, %s104
    %p113 = scmp.eq.s32.totalorder %s18, 0
    %p114 = por %p112, %p113
    %p115 = scmp.ne.s32.totalorder %s103, %s104
    %p116 = scmp.eq.s32.totalorder %s19, 3
    %p117 = por %p115, %p116
    %p119 = scmp.ne.s32.totalorder %s104, %s118
    %p120 = scmp.eq.s32.totalorder %s19, 0
    %p121 = por %p119, %p120
    %s123 = sadd.s32 %s122, 1
    %p126 = scmp.eq.s32.totalorder %s13, 3
    %p127 = scmp.ne.s32.totalorder %s122, %s124
    %p128 = scmp.eq.s32.totalorder %s13, 0
    %p129 = por %p127, %p128
    %p130 = scmp.ne.s32.totalorder %s122, %s124
    %p131 = scmp.eq.s32.totalorder %s18, 3
    %p132 = por %p130, %p131
    %p133 = scmp.ne.s32.totalorder %s124, %s125
    %p134 = scmp.eq.s32.totalorder %s18, 0
    %p135 = por %p133, %p134
    %p136 = scmp.ne.s32.totalorder %s124, %s125
    %p137 = scmp.eq.s32.totalorder %s19, 3
    %p138 = por %p136, %p137
    %p140 = scmp.ne.s32.totalorder %s125, %s139
    %p141 = scmp.eq.s32.totalorder %s19, 0
    %p142 = por %p140, %p141
    %s144 = sadd.s32 %s143, 1
    %p147 = scmp.eq.s32.totalorder %s13, 3
    %p148 = scmp.ne.s32.totalorder %s143, %s145
    %p149 = scmp.eq.s32.totalorder %s13, 0
    %p150 = por %p148, %p149
    %p151 = scmp.ne.s32.totalorder %s143, %s145
    %p152 = scmp.eq.s32.totalorder %s18, 3
    %p153 = por %p151, %p152
    %p154 = scmp.ne.s32.totalorder %s145, %s146
    %p155 = scmp.eq.s32.totalorder %s18, 0
    %p156 = por %p154, %p155
    %p157 = scmp.ne.s32.totalorder %s145, %s146
    %p158 = scmp.eq.s32.totalorder %s19, 3
    %p159 = por %p157, %p158
    %p161 = scmp.ne.s32.totalorder %s146, %s160
    %p162 = scmp.eq.s32.totalorder %s19, 0
    %p163 = por %p161, %p162
    %s165 = sadd.s32 %s164, 1
    %p168 = scmp.eq.s32.totalorder %s13, 3
    %p169 = scmp.ne.s32.totalorder %s164, %s166
    %p170 = scmp.eq.s32.totalorder %s13, 0
    %p171 = por %p169, %p170
    %p172 = scmp.ne.s32.totalorder %s164, %s166
    %p173 = scmp.eq.s32.totalorder %s18, 3
    %p174 = por %p172, %p173
    %p175 = scmp.ne.s32.totalorder %s166, %s167
    %p176 = scmp.eq.s32.totalorder %s18, 0
    %p177 = por %p175, %p176
    %p178 = scmp.ne.s32.totalorder %s166, %s167
    %p179 = scmp.eq.s32.totalorder %s19, 3
    %p180 = por %p178, %p179
    %p182 = scmp.ne.s32.totalorder %s167, %s181
    %p183 = scmp.eq.s32.totalorder %s19, 0
    %p184 = por %p182, %p183
    %s185 = ssub.s32 %s20, %s32
    %s186 = ssub.s32 %s21, %s28
    %s187 = sor.u32 %s185, %s186
    %p188 = scmp.eq.s32.totalorder %s187, 0
    %s190 = sadd.s32 %s189, 1
    %s191 = scalar_select %p188, %s189, %s190
    %p194 = pneg %p188
    %p195 = scmp.eq.s32.totalorder %s13, 3
    %p196 = por %p194, %p195
    %p197 = scmp.ne.s32.totalorder %s189, %s192
    %p198 = scmp.eq.s32.totalorder %s13, 0
    %p199 = por %p197, %p198
    %p200 = scmp.ne.s32.totalorder %s189, %s192
    %p201 = scmp.eq.s32.totalorder %s18, 3
    %p202 = por %p200, %p201
    %p203 = scmp.ne.s32.totalorder %s192, %s193
    %p204 = scmp.eq.s32.totalorder %s18, 0
    %p205 = por %p203, %p204
    %p206 = scmp.ne.s32.totalorder %s192, %s193
    %p207 = scmp.eq.s32.totalorder %s19, 3
    %p208 = por %p206, %p207
    %p210 = scmp.ne.s32.totalorder %s193, %s209
    %p211 = scmp.eq.s32.totalorder %s19, 0
    %p212 = por %p210, %p211
    %p213 = scmp.le.s32.totalorder 1, %s13
    %p214 = scmp.lt.s32.totalorder %s13, 5
    %p215 = pnand %p213, %p214
    %p216 = pneg %p215
    // Predicated region
    $region9: #{tpu_custom_call.1} parent=5 // pred_check
      _
    $region10: #{tpu_custom_call.1} parent=5 // pred_check_branch
      %218 = sbr.rel (%p215) target = $region12
    $region11: #{tpu_custom_call.1} parent=5 // pred_region
      %s219 = ssub.s32 %s13, 1
      // Predicated region
      $region13: #{tpu_custom_call.1} parent=11 // pred_check
        %p220 = pneg %p72
      $region14: #{tpu_custom_call.1} parent=11 // pred_check_branch
        %222 = sbr.rel (%p220) target = $region16
      $region15: #{tpu_custom_call.1} parent=11 // pred_region
        _
      $region16: #{tpu_custom_call.1} parent=11 // pred_fallthru
        _
      // Predicated region
      $region17: #{tpu_custom_call.1} parent=11 // pred_check
        %p223 = pneg %p93
      $region18: #{tpu_custom_call.1} parent=11 // pred_check_branch
        %225 = sbr.rel (%p223) target = $region20
      $region19: #{tpu_custom_call.1} parent=11 // pred_region
        _
      $region20: #{tpu_custom_call.1} parent=11 // pred_fallthru
        _
      // Predicated region
      $region21: #{tpu_custom_call.1} parent=11 // pred_check
        %p226 = pneg %p114
      $region22: #{tpu_custom_call.1} parent=11 // pred_check_branch
        %228 = sbr.rel (%p226) target = $region24
      $region23: #{tpu_custom_call.1} parent=11 // pred_region
        _
      $region24: #{tpu_custom_call.1} parent=11 // pred_fallthru
        _
      // Predicated region
      $region25: #{tpu_custom_call.1} parent=11 // pred_check
        %p229 = pneg %p135
      $region26: #{tpu_custom_call.1} parent=11 // pred_check_branch
        %231 = sbr.rel (%p229) target = $region28
      $region27: #{tpu_custom_call.1} parent=11 // pred_region
        _
      $region28: #{tpu_custom_call.1} parent=11 // pred_fallthru
        _
      // Predicated region
      $region29: #{tpu_custom_call.1} parent=11 // pred_check
        %p232 = pneg %p156
      $region30: #{tpu_custom_call.1} parent=11 // pred_check_branch
        %234 = sbr.rel (%p232) target = $region32
      $region31: #{tpu_custom_call.1} parent=11 // pred_region
        _
      $region32: #{tpu_custom_call.1} parent=11 // pred_fallthru
        _
      // Predicated region
      $region33: #{tpu_custom_call.1} parent=11 // pred_check
        %p235 = pneg %p177
      $region34: #{tpu_custom_call.1} parent=11 // pred_check_branch
        %237 = sbr.rel (%p235) target = $region36
      $region35: #{tpu_custom_call.1} parent=11 // pred_region
        _
      $region36: #{tpu_custom_call.1} parent=11 // pred_fallthru
        _
    $region12: #{tpu_custom_call.1} parent=5 // pred_fallthru
      _
    %p238 = scmp.lt.s32.totalorder %s13, 4
    // Predicated region
    $region37: #{tpu_custom_call.1} parent=5 // pred_check
      %p239 = pneg %p238
    $region38: #{tpu_custom_call.1} parent=5 // pred_check_branch
      %241 = sbr.rel (%p239) target = $region40
    $region39: #{tpu_custom_call.1} parent=5 // pred_region
      // Predicated region
      $region41: #{tpu_custom_call.1} parent=39 // pred_check
        %p242 = pneg %p45
      $region42: #{tpu_custom_call.1} parent=39 // pred_check_branch
        %244 = sbr.rel (%p242) target = $region44
      $region43: #{tpu_custom_call.1} parent=39 // pred_region
        %p245 = scmp.lt.s32.totalorder %s20, 1
        %s246 = scalar_select %p245, %s20, 1
        %s247 = smul.addr %s246, 44
        %s248 = smul.addr %s247, 8
        %s249 = scalar_lea.vmem %s0, %s248
      $region44: #{tpu_custom_call.1} parent=39 // pred_fallthru
        _
    $region40: #{tpu_custom_call.1} parent=5 // pred_fallthru
      _
    %p250 = scmp.le.s32.totalorder 1, %s13
    %p251 = scmp.lt.s32.totalorder %s13, 5
    %p252 = pnand %p250, %p251
    %p253 = pneg %p252
    // Predicated region
    $region45: #{tpu_custom_call.1} parent=5 // pred_check
      _
    $region46: #{tpu_custom_call.1} parent=5 // pred_check_branch
      %255 = sbr.rel (%p252) target = $region48
    $region47: #{tpu_custom_call.1} parent=5 // pred_region
      %s256 = ssub.s32 %s13, 1
      %p257 = scmp.lt.s32.totalorder %s22, 1
      %s258 = scalar_select %p257, %s22, 1
      %s259 = smul.addr %s258, 44
      %s260 = smul.addr %s259, 8
      %s261 = scalar_lea.vmem %s0, %s260
      %p262 = pneg %p51
      %p263 = pneg %p48
      %p264 = pneg %p72
      %p265 = pneg %p69
      %p266 = pneg %p93
      %p267 = pneg %p90
      %p268 = pneg %p114
      %p269 = pneg %p111
      %p270 = pneg %p135
      %p271 = pneg %p132
      %p272 = pneg %p156
      %p273 = pneg %p153
      %p274 = pneg %p177
      %p275 = pneg %p174
      %p276 = pneg %p205
      %p277 = pneg %p202
      %s278 = smul.u32 16, %s23
      %p279 = scmp.lt.s32.totalorder %s22, 1
      %s280 = scalar_select %p279, %s22, 1
      %p281 = scmp.lt.s32.totalorder %s278, 31
      %s282 = scalar_select %p281, %s278, 31
      %s283 = smul.addr %s280, 32
      %s284 = sadd.s32 %s282, %s283
      %s285 = smul.addr %s284, 8
      %s286 = scalar_lea.vmem %s7, %s285
      %p287 = scmp.lt.s32.totalorder %s22, 1
      %s288 = scalar_select %p287, %s22, 1
      %s289 = smul.addr %s288, 44
      %s290 = smul.addr %s289, 8
      %s291 = scalar_lea.vmem %s0, %s290
      %s292 = smul.u32 16, %s23
      %p293 = scmp.lt.s32.totalorder %s22, 1
      %s294 = scalar_select %p293, %s22, 1
      %p295 = scmp.lt.s32.totalorder %s292, 31
      %s296 = scalar_select %p295, %s292, 31
      %s297 = smul.addr %s294, 32
      %s298 = sadd.s32 %s296, %s297
      %s299 = smul.addr %s298, 8
      %s300 = scalar_lea.vmem %s7, %s299
      %s301 = smul.u32 16, %s23
      %s303 = smul.u32 %s23, 8
      %s304 = smul.u32 %s23, 128
      %s305 = scalar_lea.vmem %s291, %s304
      %v306 = vld [vmem:[%s305] sm:$0xff]
      %v307 = vld [vmem:[%s305 + $0x8] sm:$0xff]
      %v308 = vld [vmem:[%s305 + $0x10] sm:$0xff]
      %v309 = vld [vmem:[%s305 + $0x18] sm:$0xff]
      %v310 = vld [vmem:[%s305 + $0x20] sm:$0xff]
      %v311 = vld [vmem:[%s305 + $0x28] sm:$0xff]
      %v312 = vld [vmem:[%s305 + $0x30] sm:$0xff]
      %v313 = vld [vmem:[%s305 + $0x38] sm:$0xff]
      %v314 = vld [vmem:[%s305 + $0x40] sm:$0xff]
      %v315 = vld [vmem:[%s305 + $0x48] sm:$0xff]
      %v316 = vld [vmem:[%s305 + $0x50] sm:$0xff]
      %v317 = vld [vmem:[%s305 + $0x58] sm:$0xff]
      %v318 = vld [vmem:[%s305 + $0x60] sm:$0xff]
      %v319 = vld [vmem:[%s305 + $0x68] sm:$0xff]
      %v320 = vld [vmem:[%s305 + $0x70] sm:$0xff]
      %v321 = vld [vmem:[%s305 + $0x78] sm:$0xff]
      %v322 = vld [vmem:[%s305 + $0x80] sm:$0xff]
      %v323 = vld [vmem:[%s305 + $0x88] sm:$0xff]
      %v324 = vld [vmem:[%s305 + $0x90] sm:$0xff]
      %v325 = vld [vmem:[%s305 + $0x98] sm:$0xff]
      %v326 = vld [vmem:[%s305 + $0xa0] sm:$0xff]
      %v327 = vld [vmem:[%s305 + $0xa8] sm:$0xff]
      %v328 = vld [vmem:[%s305 + $0xb0] sm:$0xff]
      %v329 = vld [vmem:[%s305 + $0xb8] sm:$0xff]
      %v330 = vld [vmem:[%s305 + $0xc0] sm:$0xff]
      %v331 = vld [vmem:[%s305 + $0xc8] sm:$0xff]
      %v332 = vld [vmem:[%s305 + $0xd0] sm:$0xff]
      %v333 = vld [vmem:[%s305 + $0xd8] sm:$0xff]
      %v334 = vpack.c.bf16 %v307, %v306
      %v335 = vpack.c.bf16 %v309, %v308
      %v336 = vpack.c.bf16 %v311, %v310
      %v337 = vpack.c.bf16 %v313, %v312
      %v338 = vpack.c.bf16 %v315, %v314
      %v339 = vpack.c.bf16 %v317, %v316
      %v340 = vpack.c.bf16 %v319, %v318
      %v341 = vpack.c.bf16 %v321, %v320
      %v342 = vpack.c.bf16 %v323, %v322
      %v343 = vpack.c.bf16 %v325, %v324
      %v344 = vpack.c.bf16 %v327, %v326
      %v345 = vpack.c.bf16 %v329, %v328
      %v346 = vpack.c.bf16 %v331, %v330
      %v347 = vpack.c.bf16 %v333, %v332
      %v348 = vld [vmem:[%s1] sm:$0x3]
      %v349 = vld [vmem:[%s2] sm:$0x1]
      %v351 = vperm.slane %v349, 0
      %vm353 = vcmask 31744
      %v355 = vsel %vm353, %v334, 0
      %v358 = vsel %vm353, %v335, 0
      %v361 = vsel %vm353, %v336, 0
      %v364 = vsel %vm353, %v337, 0
      %v367 = vsel %vm353, %v338, 0
      %v370 = vsel %vm353, %v339, 0
      %v373 = vsel %vm353, %v340, 0
      %v376 = vsel %vm353, %v341, 0
      %v379 = vsel %vm353, %v342, 0
      %v382 = vsel %vm353, %v343, 0
      %v385 = vsel %vm353, %v344, 0
      %v388 = vsel %vm353, %v345, 0
      %v391 = vsel %vm353, %v346, 0
      %v394 = vsel %vm353, %v347, 0
      %vm396 = vcmask 1041408
      %v398 = vsel %vm396, %v348, 0
      %400 = vmatpush.bf16.msra.mxu0 0
      %401 = vmatpush.bf16.msra.mxu0 0
      %402 = vmatpush.bf16.msra.mxu0 0
      %403 = vmatpush.bf16.msra.mxu0 0
      %404 = vmatpush.bf16.msra.mxu0 0
      %405 = vmatpush.bf16.msra.mxu0 0
      %406 = vmatpush.bf16.msra.mxu0 0
      %407 = vmatpush.bf16.msra.mxu0 %v398
      %408 = vmatmul.bf16.gmra.mxu0 %v355
      %v409 = vpop.f32.mrf.mxu0
      %v410 = vadd.f32 %v351, %v409
      %v411 = vpop.f32.mrf.mxu0
      %v412 = vadd.f32 %v351, %v411
      %413 = vmatmul.bf16.gmra.mxu0 %v358
      %v414 = vpop.f32.mrf.mxu0
      %v415 = vadd.f32 %v351, %v414
      %v416 = vpop.f32.mrf.mxu0
      %v417 = vadd.f32 %v351, %v416
      %418 = vmatmul.bf16.gmra.mxu0 %v361
      %v419 = vpop.f32.mrf.mxu0
      %v420 = vadd.f32 %v351, %v419
      %v421 = vpop.f32.mrf.mxu0
      %v422 = vadd.f32 %v351, %v421
      %423 = vmatmul.bf16.gmra.mxu0 %v364
      %v424 = vpop.f32.mrf.mxu0
      %v425 = vadd.f32 %v351, %v424
      %v426 = vpop.f32.mrf.mxu0
      %v427 = vadd.f32 %v351, %v426
      %428 = vmatmul.bf16.gmra.mxu0 %v367
      %v429 = vpop.f32.mrf.mxu0
      %v430 = vadd.f32 %v351, %v429
      %v431 = vpop.f32.mrf.mxu0
      %v432 = vadd.f32 %v351, %v431
      %433 = vmatmul.bf16.gmra.mxu0 %v370
      %v434 = vpop.f32.mrf.mxu0
      %v435 = vadd.f32 %v351, %v434
      %v436 = vpop.f32.mrf.mxu0
      %v437 = vadd.f32 %v351, %v436
      %438 = vmatmul.bf16.gmra.mxu0 %v373
      %v439 = vpop.f32.mrf.mxu0
      %v440 = vadd.f32 %v351, %v439
      %v441 = vpop.f32.mrf.mxu0
      %v442 = vadd.f32 %v351, %v441
      %443 = vmatmul.bf16.gmra.mxu0 %v376
      %v444 = vpop.f32.mrf.mxu0
      %v445 = vadd.f32 %v351, %v444
      %v446 = vpop.f32.mrf.mxu0
      %v447 = vadd.f32 %v351, %v446
      %448 = vmatmul.bf16.gmra.mxu0 %v379
      %v449 = vpop.f32.mrf.mxu0
      %v450 = vadd.f32 %v351, %v449
      %v451 = vpop.f32.mrf.mxu0
      %v452 = vadd.f32 %v351, %v451
      %453 = vmatmul.bf16.gmra.mxu0 %v382
      %v454 = vpop.f32.mrf.mxu0
      %v455 = vadd.f32 %v351, %v454
      %v456 = vpop.f32.mrf.mxu0
      %v457 = vadd.f32 %v351, %v456
      %458 = vmatmul.bf16.gmra.mxu0 %v385
      %v459 = vpop.f32.mrf.mxu0
      %v460 = vadd.f32 %v351, %v459
      %v461 = vpop.f32.mrf.mxu0
      %v462 = vadd.f32 %v351, %v461
      %463 = vmatmul.bf16.gmra.mxu0 %v388
      %v464 = vpop.f32.mrf.mxu0
      %v465 = vadd.f32 %v351, %v464
      %v466 = vpop.f32.mrf.mxu0
      %v467 = vadd.f32 %v351, %v466
      %468 = vmatmul.bf16.gmra.mxu0 %v391
      %v469 = vpop.f32.mrf.mxu0
      %v470 = vadd.f32 %v351, %v469
      %v471 = vpop.f32.mrf.mxu0
      %v472 = vadd.f32 %v351, %v471
      %473 = vmatmul.bf16.gmra.mxu0 %v394
      %v474 = vpop.f32.mrf.mxu0
      %v475 = vadd.f32 %v351, %v474
      %v476 = vpop.f32.mrf.mxu0
      %v477 = vadd.f32 %v351, %v476
      %478 = vdwg.mxu0
      %v479 = vmax.f32 %v410, 0.0
      %v480 = vmax.f32 %v412, 0.0
      %v481 = vmax.f32 %v415, 0.0
      %v482 = vmax.f32 %v417, 0.0
      %v483 = vmax.f32 %v420, 0.0
      %v484 = vmax.f32 %v422, 0.0
      %v485 = vmax.f32 %v425, 0.0
      %v486 = vmax.f32 %v427, 0.0
      %v487 = vmax.f32 %v430, 0.0
      %v488 = vmax.f32 %v432, 0.0
      %v489 = vmax.f32 %v435, 0.0
      %v490 = vmax.f32 %v437, 0.0
      %v491 = vmax.f32 %v440, 0.0
      %v492 = vmax.f32 %v442, 0.0
      %v493 = vmax.f32 %v445, 0.0
      %v494 = vmax.f32 %v447, 0.0
      %v495 = vmax.f32 %v450, 0.0
      %v496 = vmax.f32 %v452, 0.0
      %v497 = vmax.f32 %v455, 0.0
      %v498 = vmax.f32 %v457, 0.0
      %v499 = vmax.f32 %v460, 0.0
      %v500 = vmax.f32 %v462, 0.0
      %v501 = vmax.f32 %v465, 0.0
      %v502 = vmax.f32 %v467, 0.0
      %v503 = vmax.f32 %v470, 0.0
      %v504 = vmax.f32 %v472, 0.0
      %v505 = vmax.f32 %v475, 0.0
      %v506 = vmax.f32 %v477, 0.0
      %v507 = vstv %s303
      %v508 = vadd.s32 %v507, 1
      %v509 = vadd.s32 %v507, 2
      %v510 = vadd.s32 %v507, 4
      %v511 = vadd.s32 %v507, 5
      %v512 = vadd.s32 %v507, 6
      %v513 = vadd.s32 %v507, 7
      %v514 = vadd.s32 %v507, 8
      %v515 = vadd.s32 %v507, 9
      %v516 = vadd.s32 %v507, 10
      %v517 = vadd.s32 %v507, 11
      %v518 = vadd.s32 %v507, 12
      %v519 = vadd.s32 %v507, 13
      %v520 = vsub.s32 %v507, 3
      %v521 = vsub.s32 %v508, 3
      %v522 = vsub.s32 %v509, 3
      %v523 = vsub.s32 %v510, 3
      %v524 = vsub.s32 %v511, 3
      %v525 = vsub.s32 %v512, 3
      %v526 = vsub.s32 %v513, 3
      %v527 = vsub.s32 %v514, 3
      %v528 = vsub.s32 %v515, 3
      %v529 = vsub.s32 %v516, 3
      %v530 = vsub.s32 %v517, 3
      %v531 = vsub.s32 %v518, 3
      %v532 = vsub.s32 %v519, 3
      %vm533 = vcmp.ge.s32.totalorder %v520, 0
      %vm534 = vcmp.ge.s32.totalorder %v521, 0
      %vm535 = vcmp.ge.s32.totalorder %v522, 0
      %vm536 = vcmp.ge.s32.totalorder %v507, 0
      %vm537 = vcmp.ge.s32.totalorder %v523, 0
      %vm538 = vcmp.ge.s32.totalorder %v524, 0
      %vm539 = vcmp.ge.s32.totalorder %v525, 0
      %vm540 = vcmp.ge.s32.totalorder %v526, 0
      %vm541 = vcmp.ge.s32.totalorder %v527, 0
      %vm542 = vcmp.ge.s32.totalorder %v528, 0
      %vm543 = vcmp.ge.s32.totalorder %v529, 0
      %vm544 = vcmp.ge.s32.totalorder %v530, 0
      %vm545 = vcmp.ge.s32.totalorder %v531, 0
      %vm546 = vcmp.ge.s32.totalorder %v532, 0
      %vm547 = vcmp.lt.s32.totalorder %v520, 16
      %vm548 = vcmp.lt.s32.totalorder %v521, 16
      %vm549 = vcmp.lt.s32.totalorder %v522, 16
      %vm550 = vcmp.lt.s32.totalorder %v507, 16
      %vm551 = vcmp.lt.s32.totalorder %v523, 16
      %vm552 = vcmp.lt.s32.totalorder %v524, 16
      %vm553 = vcmp.lt.s32.totalorder %v525, 16
      %vm554 = vcmp.lt.s32.totalorder %v526, 16
      %vm555 = vcmp.lt.s32.totalorder %v527, 16
      %vm556 = vcmp.lt.s32.totalorder %v528, 16
      %vm557 = vcmp.lt.s32.totalorder %v529, 16
      %vm558 = vcmp.lt.s32.totalorder %v530, 16
      %vm559 = vcmp.lt.s32.totalorder %v531, 16
      %vm560 = vcmp.lt.s32.totalorder %v532, 16
      %vm561 = vmand %vm533, %vm547
      %vm562 = vmand %vm534, %vm548
      %vm563 = vmand %vm535, %vm549
      %vm564 = vmand %vm536, %vm550
      %vm565 = vmand %vm537, %vm551
      %vm566 = vmand %vm538, %vm552
      %vm567 = vmand %vm539, %vm553
      %vm568 = vmand %vm540, %vm554
      %vm569 = vmand %vm541, %vm555
      %vm570 = vmand %vm542, %vm556
      %vm571 = vmand %vm543, %vm557
      %vm572 = vmand %vm544, %vm558
      %vm573 = vmand %vm545, %vm559
      %vm574 = vmand %vm546, %vm560
      %v575 = vsel %vm561, 1, 0
      %v576 = vsel %vm562, 1, 0
      %v577 = vsel %vm563, 1, 0
      %v578 = vsel %vm564, 1, 0
      %v579 = vsel %vm565, 1, 0
      %v580 = vsel %vm566, 1, 0
      %v581 = vsel %vm567, 1, 0
      %v582 = vsel %vm568, 1, 0
      %v583 = vsel %vm569, 1, 0
      %v584 = vsel %vm570, 1, 0
      %v585 = vsel %vm571, 1, 0
      %v586 = vsel %vm572, 1, 0
      %v587 = vsel %vm573, 1, 0
      %v588 = vsel %vm574, 1, 0
      %vm589 = vcmp.eq.s32.totalorder %v575, 1
      %vm590 = vcmp.eq.s32.totalorder %v576, 1
      %vm591 = vcmp.eq.s32.totalorder %v577, 1
      %vm592 = vcmp.eq.s32.totalorder %v578, 1
      %vm593 = vcmp.eq.s32.totalorder %v579, 1
      %vm594 = vcmp.eq.s32.totalorder %v580, 1
      %vm595 = vcmp.eq.s32.totalorder %v581, 1
      %vm596 = vcmp.eq.s32.totalorder %v582, 1
      %vm597 = vcmp.eq.s32.totalorder %v583, 1
      %vm598 = vcmp.eq.s32.totalorder %v584, 1
      %vm599 = vcmp.eq.s32.totalorder %v585, 1
      %vm600 = vcmp.eq.s32.totalorder %v586, 1
      %vm601 = vcmp.eq.s32.totalorder %v587, 1
      %vm602 = vcmp.eq.s32.totalorder %v588, 1
      %v603 = vsel %vm589, %v479, 0.0
      %v604 = vsel %vm589, %v480, 0.0
      %v605 = vsel %vm590, %v481, 0.0
      %v606 = vsel %vm590, %v482, 0.0
      %v607 = vsel %vm591, %v483, 0.0
      %v608 = vsel %vm591, %v484, 0.0
      %v609 = vsel %vm592, %v485, 0.0
      %v610 = vsel %vm592, %v486, 0.0
      %v611 = vsel %vm593, %v487, 0.0
      %v612 = vsel %vm593, %v488, 0.0
      %v613 = vsel %vm594, %v489, 0.0
      %v614 = vsel %vm594, %v490, 0.0
      %v615 = vsel %vm595, %v491, 0.0
      %v616 = vsel %vm595, %v492, 0.0
      %v617 = vsel %vm596, %v493, 0.0
      %v618 = vsel %vm596, %v494, 0.0
      %v619 = vsel %vm597, %v495, 0.0
      %v620 = vsel %vm597, %v496, 0.0
      %v621 = vsel %vm598, %v497, 0.0
      %v622 = vsel %vm598, %v498, 0.0
      %v623 = vsel %vm599, %v499, 0.0
      %v624 = vsel %vm599, %v500, 0.0
      %v625 = vsel %vm600, %v501, 0.0
      %v626 = vsel %vm600, %v502, 0.0
      %v627 = vsel %vm601, %v503, 0.0
      %v628 = vsel %vm601, %v504, 0.0
      %v629 = vsel %vm602, %v505, 0.0
      %v630 = vsel %vm602, %v506, 0.0
      %vm631 = vcmask 57344
      %632 = vst.msk [vmem:[#allocation2] sm:$0x1] %vm631, 0.0
      %633 = vst.msk [vmem:[#allocation2 + $0x18] sm:$0x1] %vm631, 0.0
      %634 = vst.msk [vmem:[#allocation2 + $0x30] sm:$0x1] %vm631, 0.0
      %635 = vst.msk [vmem:[#allocation2 + $0x48] sm:$0x1] %vm631, 0.0
      %636 = vst.msk [vmem:[#allocation2 + $0x60] sm:$0x1] %vm631, 0.0
      %637 = vst.msk [vmem:[#allocation2 + $0x78] sm:$0x1] %vm631, 0.0
      %638 = vst.msk [vmem:[#allocation2 + $0x90] sm:$0x1] %vm631, 0.0
      %639 = vst.msk [vmem:[#allocation2 + $0xa8] sm:$0x1] %vm631, 0.0
      %640 = vst.msk [vmem:[#allocation2 + $0xc0] sm:$0x1] %vm631, 0.0
      %641 = vst.msk [vmem:[#allocation2 + $0xd8] sm:$0x1] %vm631, 0.0
      %642 = vst.msk [vmem:[#allocation2 + $0xf0] sm:$0x1] %vm631, 0.0
      %643 = vst.msk [vmem:[#allocation2 + $0x108] sm:$0x1] %vm631, 0.0
      %644 = vst.msk [vmem:[#allocation2 + $0x120] sm:$0x1] %vm631, 0.0
      %645 = vst.msk [vmem:[#allocation2 + $0x138] sm:$0x1] %vm631, 0.0
      %646 = vst.msk [vmem:[#allocation2 + $0x11] sm:$0x1] %vm631, 0.0
      %647 = vst.msk [vmem:[#allocation2 + $0x29] sm:$0x1] %vm631, 0.0
      %648 = vst.msk [vmem:[#allocation2 + $0x41] sm:$0x1] %vm631, 0.0
      %649 = vst.msk [vmem:[#allocation2 + $0x59] sm:$0x1] %vm631, 0.0
      %650 = vst.msk [vmem:[#allocation2 + $0x71] sm:$0x1] %vm631, 0.0
      %651 = vst.msk [vmem:[#allocation2 + $0x89] sm:$0x1] %vm631, 0.0
      %652 = vst.msk [vmem:[#allocation2 + $0xa1] sm:$0x1] %vm631, 0.0
      %653 = vst.msk [vmem:[#allocation2 + $0xb9] sm:$0x1] %vm631, 0.0
      %654 = vst.msk [vmem:[#allocation2 + $0xd1] sm:$0x1] %vm631, 0.0
      %655 = vst.msk [vmem:[#allocation2 + $0xe9] sm:$0x1] %vm631, 0.0
      %656 = vst.msk [vmem:[#allocation2 + $0x101] sm:$0x1] %vm631, 0.0
      %657 = vst.msk [vmem:[#allocation2 + $0x119] sm:$0x1] %vm631, 0.0
      %658 = vst.msk [vmem:[#allocation2 + $0x131] sm:$0x1] %vm631, 0.0
      %659 = vst.msk [vmem:[#allocation2 + $0x149] sm:$0x1] %vm631, 0.0
      %vm660 = vcmask 64512
      %661 = vst.msk [vmem:[#allocation2 + $0x1] sm:$0xff] %vm660, %v603
      %662 = vst.msk [vmem:[#allocation2 + $0x9] sm:$0xff] %vm660, %v604
      %663 = vst.msk [vmem:[#allocation2 + $0x19] sm:$0xff] %vm660, %v605
      %664 = vst.msk [vmem:[#allocation2 + $0x21] sm:$0xff] %vm660, %v606
      %665 = vst.msk [vmem:[#allocation2 + $0x31] sm:$0xff] %vm660, %v607
      %666 = vst.msk [vmem:[#allocation2 + $0x39] sm:$0xff] %vm660, %v608
      %667 = vst.msk [vmem:[#allocation2 + $0x49] sm:$0xff] %vm660, %v609
      %668 = vst.msk [vmem:[#allocation2 + $0x51] sm:$0xff] %vm660, %v610
      %669 = vst.msk [vmem:[#allocation2 + $0x61] sm:$0xff] %vm660, %v611
      %670 = vst.msk [vmem:[#allocation2 + $0x69] sm:$0xff] %vm660, %v612
      %671 = vst.msk [vmem:[#allocation2 + $0x79] sm:$0xff] %vm660, %v613
      %672 = vst.msk [vmem:[#allocation2 + $0x81] sm:$0xff] %vm660, %v614
      %673 = vst.msk [vmem:[#allocation2 + $0x91] sm:$0xff] %vm660, %v615
      %674 = vst.msk [vmem:[#allocation2 + $0x99] sm:$0xff] %vm660, %v616
      %675 = vst.msk [vmem:[#allocation2 + $0xa9] sm:$0xff] %vm660, %v617
      %676 = vst.msk [vmem:[#allocation2 + $0xb1] sm:$0xff] %vm660, %v618
      %677 = vst.msk [vmem:[#allocation2 + $0xc1] sm:$0xff] %vm660, %v619
      %678 = vst.msk [vmem:[#allocation2 + $0xc9] sm:$0xff] %vm660, %v620
      %679 = vst.msk [vmem:[#allocation2 + $0xd9] sm:$0xff] %vm660, %v621
      %680 = vst.msk [vmem:[#allocation2 + $0xe1] sm:$0xff] %vm660, %v622
      %681 = vst.msk [vmem:[#allocation2 + $0xf1] sm:$0xff] %vm660, %v623
      %682 = vst.msk [vmem:[#allocation2 + $0xf9] sm:$0xff] %vm660, %v624
      %683 = vst.msk [vmem:[#allocation2 + $0x109] sm:$0xff] %vm660, %v625
      %684 = vst.msk [vmem:[#allocation2 + $0x111] sm:$0xff] %vm660, %v626
      %685 = vst.msk [vmem:[#allocation2 + $0x121] sm:$0xff] %vm660, %v627
      %686 = vst.msk [vmem:[#allocation2 + $0x129] sm:$0xff] %vm660, %v628
      %687 = vst.msk [vmem:[#allocation2 + $0x139] sm:$0xff] %vm660, %v629
      %688 = vst.msk [vmem:[#allocation2 + $0x141] sm:$0xff] %vm660, %v630
      %v689 = vld [vmem:[#allocation2] sm:$0xff]
      %v690 = vld [vmem:[#allocation2 + $0x8] sm:$0xff]
      %v691 = vld [vmem:[#allocation2 + $0x18] sm:$0xff]
      %v692 = vld [vmem:[#allocation2 + $0x20] sm:$0xff]
      %v693 = vld [vmem:[#allocation2 + $0x30] sm:$0xff]
      %v694 = vld [vmem:[#allocation2 + $0x38] sm:$0xff]
      %v695 = vld [vmem:[#allocation2 + $0x48] sm:$0xff]
      %v696 = vld [vmem:[#allocation2 + $0x50] sm:$0xff]
      %v697 = vld [vmem:[#allocation2 + $0x60] sm:$0xff]
      %v698 = vld [vmem:[#allocation2 + $0x68] sm:$0xff]
      %v699 = vld [vmem:[#allocation2 + $0x78] sm:$0xff]
      %v700 = vld [vmem:[#allocation2 + $0x80] sm:$0xff]
      %v701 = vld [vmem:[#allocation2 + $0x90] sm:$0xff]
      %v702 = vld [vmem:[#allocation2 + $0x98] sm:$0xff]
      %v703 = vld [vmem:[#allocation2 + $0xa8] sm:$0xff]
      %v704 = vld [vmem:[#allocation2 + $0xb0] sm:$0xff]
      %v705 = vld [vmem:[#allocation2 + $0xc0] sm:$0xff]
      %v706 = vld [vmem:[#allocation2 + $0xc8] sm:$0xff]
      %v707 = vld [vmem:[#allocation2 + $0xd8] sm:$0xff]
      %v708 = vld [vmem:[#allocation2 + $0xe0] sm:$0xff]
      %v709 = vld [vmem:[#allocation2 + $0xf0] sm:$0xff]
      %v710 = vld [vmem:[#allocation2 + $0xf8] sm:$0xff]
      %v711 = vld [vmem:[#allocation2 + $0x108] sm:$0xff]
      %v712 = vld [vmem:[#allocation2 + $0x110] sm:$0xff]
      %v713 = vpack.c.bf16 %v689, %v689
      %v714 = vpack.c.bf16 %v690, %v690
      %v715 = vpack.c.bf16 %v691, %v691
      %v716 = vpack.c.bf16 %v692, %v692
      %v717 = vpack.c.bf16 %v693, %v693
      %v718 = vpack.c.bf16 %v694, %v694
      %v719 = vpack.c.bf16 %v695, %v695
      %v720 = vpack.c.bf16 %v696, %v696
      %v721 = vpack.c.bf16 %v697, %v697
      %v722 = vpack.c.bf16 %v698, %v698
      %v723 = vpack.c.bf16 %v699, %v699
      %v724 = vpack.c.bf16 %v700, %v700
      %v725 = vpack.c.bf16 %v701, %v701
      %v726 = vpack.c.bf16 %v702, %v702
      %v727 = vpack.c.bf16 %v703, %v703
      %v728 = vpack.c.bf16 %v704, %v704
      %v729 = vpack.c.bf16 %v705, %v705
      %v730 = vpack.c.bf16 %v706, %v706
      %v731 = vpack.c.bf16 %v707, %v707
      %v732 = vpack.c.bf16 %v708, %v708
      %v733 = vpack.c.bf16 %v709, %v709
      %v734 = vpack.c.bf16 %v710, %v710
      %v735 = vpack.c.bf16 %v711, %v711
      %v736 = vpack.c.bf16 %v712, %v712
      %vm737 = vcmask 60416
      %738 = vst.msk [vmem:[#allocation4] sm:$0xf] %vm737, %v713
      %739 = vst.msk [vmem:[#allocation4 + $0x4] sm:$0xf] %vm737, %v714
      %740 = vst.msk [vmem:[#allocation4 + $0x8] sm:$0xf] %vm737, %v715
      %741 = vst.msk [vmem:[#allocation4 + $0xc] sm:$0xf] %vm737, %v716
      %742 = vst.msk [vmem:[#allocation4 + $0x10] sm:$0xf] %vm737, %v717
      %743 = vst.msk [vmem:[#allocation4 + $0x14] sm:$0xf] %vm737, %v718
      %744 = vst.msk [vmem:[#allocation4 + $0x18] sm:$0xf] %vm737, %v719
      %745 = vst.msk [vmem:[#allocation4 + $0x1c] sm:$0xf] %vm737, %v720
      %746 = vst.msk [vmem:[#allocation4 + $0x20] sm:$0xf] %vm737, %v721
      %747 = vst.msk [vmem:[#allocation4 + $0x24] sm:$0xf] %vm737, %v722
      %748 = vst.msk [vmem:[#allocation4 + $0x28] sm:$0xf] %vm737, %v723
      %749 = vst.msk [vmem:[#allocation4 + $0x2c] sm:$0xf] %vm737, %v724
      %750 = vst.msk [vmem:[#allocation4 + $0x30] sm:$0xf] %vm737, %v725
      %751 = vst.msk [vmem:[#allocation4 + $0x34] sm:$0xf] %vm737, %v726
      %752 = vst.msk [vmem:[#allocation4 + $0x38] sm:$0xf] %vm737, %v727
      %753 = vst.msk [vmem:[#allocation4 + $0x3c] sm:$0xf] %vm737, %v728
      %754 = vst.msk [vmem:[#allocation4 + $0x40] sm:$0xf] %vm737, %v729
      %755 = vst.msk [vmem:[#allocation4 + $0x44] sm:$0xf] %vm737, %v730
      %756 = vst.msk [vmem:[#allocation4 + $0x48] sm:$0xf] %vm737, %v731
      %757 = vst.msk [vmem:[#allocation4 + $0x4c] sm:$0xf] %vm737, %v732
      %758 = vst.msk [vmem:[#allocation4 + $0x50] sm:$0xf] %vm737, %v733
      %759 = vst.msk [vmem:[#allocation4 + $0x54] sm:$0xf] %vm737, %v734
      %760 = vst.msk [vmem:[#allocation4 + $0x58] sm:$0xf] %vm737, %v735
      %761 = vst.msk [vmem:[#allocation4 + $0x5c] sm:$0xf] %vm737, %v736
      %v762 = vld [vmem:[#allocation2 + $0x1] sm:$0xff]
      %v763 = vld [vmem:[#allocation2 + $0x9] sm:$0xff]
      %v764 = vld [vmem:[#allocation2 + $0x19] sm:$0xff]
      %v765 = vld [vmem:[#allocation2 + $0x21] sm:$0xff]
      %v766 = vld [vmem:[#allocation2 + $0x31] sm:$0xff]
      %v767 = vld [vmem:[#allocation2 + $0x39] sm:$0xff]
      %v768 = vld [vmem:[#allocation2 + $0x49] sm:$0xff]
      %v769 = vld [vmem:[#allocation2 + $0x51] sm:$0xff]
      %v770 = vld [vmem:[#allocation2 + $0x61] sm:$0xff]
      %v771 = vld [vmem:[#allocation2 + $0x69] sm:$0xff]
      %v772 = vld [vmem:[#allocation2 + $0x79] sm:$0xff]
      %v773 = vld [vmem:[#allocation2 + $0x81] sm:$0xff]
      %v774 = vld [vmem:[#allocation2 + $0x91] sm:$0xff]
      %v775 = vld [vmem:[#allocation2 + $0x99] sm:$0xff]
      %v776 = vld [vmem:[#allocation2 + $0xa9] sm:$0xff]
      %v777 = vld [vmem:[#allocation2 + $0xb1] sm:$0xff]
      %v778 = vld [vmem:[#allocation2 + $0xc1] sm:$0xff]
      %v779 = vld [vmem:[#allocation2 + $0xc9] sm:$0xff]
      %v780 = vld [vmem:[#allocation2 + $0xd9] sm:$0xff]
      %v781 = vld [vmem:[#allocation2 + $0xe1] sm:$0xff]
      %v782 = vld [vmem:[#allocation2 + $0xf1] sm:$0xff]
      %v783 = vld [vmem:[#allocation2 + $0xf9] sm:$0xff]
      %v784 = vld [vmem:[#allocation2 + $0x109] sm:$0xff]
      %v785 = vld [vmem:[#allocation2 + $0x111] sm:$0xff]
      %v786 = vpack.c.bf16 %v762, %v762
      %v787 = vpack.c.bf16 %v763, %v763
      %v788 = vpack.c.bf16 %v764, %v764
      %v789 = vpack.c.bf16 %v765, %v765
      %v790 = vpack.c.bf16 %v766, %v766
      %v791 = vpack.c.bf16 %v767, %v767
      %v792 = vpack.c.bf16 %v768, %v768
      %v793 = vpack.c.bf16 %v769, %v769
      %v794 = vpack.c.bf16 %v770, %v770
      %v795 = vpack.c.bf16 %v771, %v771
      %v796 = vpack.c.bf16 %v772, %v772
      %v797 = vpack.c.bf16 %v773, %v773
      %v798 = vpack.c.bf16 %v774, %v774
      %v799 = vpack.c.bf16 %v775, %v775
      %v800 = vpack.c.bf16 %v776, %v776
      %v801 = vpack.c.bf16 %v777, %v777
      %v802 = vpack.c.bf16 %v778, %v778
      %v803 = vpack.c.bf16 %v779, %v779
      %v804 = vpack.c.bf16 %v780, %v780
      %v805 = vpack.c.bf16 %v781, %v781
      %v806 = vpack.c.bf16 %v782, %v782
      %v807 = vpack.c.bf16 %v783, %v783
      %v808 = vpack.c.bf16 %v784, %v784
      %v809 = vpack.c.bf16 %v785, %v785
      %834 = vrot.lane.b32.xlu0 %v786, 8
      %v835 = vpop.permute.xlu0 %834
      %836 = vrot.lane.b32.xlu0 %v787, 8
      %v837 = vpop.permute.xlu0 %836
      %838 = vrot.lane.b32.xlu0 %v788, 8
      %v839 = vpop.permute.xlu0 %838
      %840 = vrot.lane.b32.xlu0 %v789, 8
      %v841 = vpop.permute.xlu0 %840
      %842 = vrot.lane.b32.xlu0 %v790, 8
      %v843 = vpop.permute.xlu0 %842
      %844 = vrot.lane.b32.xlu0 %v791, 8
      %v845 = vpop.permute.xlu0 %844
      %846 = vrot.lane.b32.xlu0 %v792, 8
      %v847 = vpop.permute.xlu0 %846
      %848 = vrot.lane.b32.xlu0 %v793, 8
      %v849 = vpop.permute.xlu0 %848
      %850 = vrot.lane.b32.xlu0 %v794, 8
      %v851 = vpop.permute.xlu0 %850
      %852 = vrot.lane.b32.xlu0 %v795, 8
      %v853 = vpop.permute.xlu0 %852
      %854 = vrot.lane.b32.xlu0 %v796, 8
      %v855 = vpop.permute.xlu0 %854
      %856 = vrot.lane.b32.xlu0 %v797, 8
      %v857 = vpop.permute.xlu0 %856
      %858 = vrot.lane.b32.xlu0 %v798, 8
      %v859 = vpop.permute.xlu0 %858
      %860 = vrot.lane.b32.xlu0 %v799, 8
      %v861 = vpop.permute.xlu0 %860
      %862 = vrot.lane.b32.xlu0 %v800, 8
      %v863 = vpop.permute.xlu0 %862
      %864 = vrot.lane.b32.xlu0 %v801, 8
      %v865 = vpop.permute.xlu0 %864
      %866 = vrot.lane.b32.xlu0 %v802, 8
      %v867 = vpop.permute.xlu0 %866
      %868 = vrot.lane.b32.xlu0 %v803, 8
      %v869 = vpop.permute.xlu0 %868
      %870 = vrot.lane.b32.xlu0 %v804, 8
      %v871 = vpop.permute.xlu0 %870
      %872 = vrot.lane.b32.xlu0 %v805, 8
      %v873 = vpop.permute.xlu0 %872
      %874 = vrot.lane.b32.xlu0 %v806, 8
      %v875 = vpop.permute.xlu0 %874
      %876 = vrot.lane.b32.xlu0 %v807, 8
      %v877 = vpop.permute.xlu0 %876
      %878 = vrot.lane.b32.xlu0 %v808, 8
      %v879 = vpop.permute.xlu0 %878
      %880 = vrot.lane.b32.xlu0 %v809, 8
      %v881 = vpop.permute.xlu0 %880
      %vm906 = vcmask 126016
      %907 = vst.msk [vmem:[#allocation4] sm:$0xf] %vm906, %v835
      %908 = vst.msk [vmem:[#allocation4 + $0x4] sm:$0xf] %vm906, %v837
      %909 = vst.msk [vmem:[#allocation4 + $0x8] sm:$0xf] %vm906, %v839
      %910 = vst.msk [vmem:[#allocation4 + $0xc] sm:$0xf] %vm906, %v841
      %911 = vst.msk [vmem:[#allocation4 + $0x10] sm:$0xf] %vm906, %v843
      %912 = vst.msk [vmem:[#allocation4 + $0x14] sm:$0xf] %vm906, %v845
      %913 = vst.msk [vmem:[#allocation4 + $0x18] sm:$0xf] %vm906, %v847
      %914 = vst.msk [vmem:[#allocation4 + $0x1c] sm:$0xf] %vm906, %v849
      %915 = vst.msk [vmem:[#allocation4 + $0x20] sm:$0xf] %vm906, %v851
      %916 = vst.msk [vmem:[#allocation4 + $0x24] sm:$0xf] %vm906, %v853
      %917 = vst.msk [vmem:[#allocation4 + $0x28] sm:$0xf] %vm906, %v855
      %918 = vst.msk [vmem:[#allocation4 + $0x2c] sm:$0xf] %vm906, %v857
      %919 = vst.msk [vmem:[#allocation4 + $0x30] sm:$0xf] %vm906, %v859
      %920 = vst.msk [vmem:[#allocation4 + $0x34] sm:$0xf] %vm906, %v861
      %921 = vst.msk [vmem:[#allocation4 + $0x38] sm:$0xf] %vm906, %v863
      %922 = vst.msk [vmem:[#allocation4 + $0x3c] sm:$0xf] %vm906, %v865
      %923 = vst.msk [vmem:[#allocation4 + $0x40] sm:$0xf] %vm906, %v867
      %924 = vst.msk [vmem:[#allocation4 + $0x44] sm:$0xf] %vm906, %v869
      %925 = vst.msk [vmem:[#allocation4 + $0x48] sm:$0xf] %vm906, %v871
      %926 = vst.msk [vmem:[#allocation4 + $0x4c] sm:$0xf] %vm906, %v873
      %927 = vst.msk [vmem:[#allocation4 + $0x50] sm:$0xf] %vm906, %v875
      %928 = vst.msk [vmem:[#allocation4 + $0x54] sm:$0xf] %vm906, %v877
      %929 = vst.msk [vmem:[#allocation4 + $0x58] sm:$0xf] %vm906, %v879
      %930 = vst.msk [vmem:[#allocation4 + $0x5c] sm:$0xf] %vm906, %v881
      %v931 = vld [vmem:[#allocation2 + $0x2] sm:$0xff]
      %v932 = vld [vmem:[#allocation2 + $0xa] sm:$0xff]
      %v933 = vld [vmem:[#allocation2 + $0x1a] sm:$0xff]
      %v934 = vld [vmem:[#allocation2 + $0x22] sm:$0xff]
      %v935 = vld [vmem:[#allocation2 + $0x32] sm:$0xff]
      %v936 = vld [vmem:[#allocation2 + $0x3a] sm:$0xff]
      %v937 = vld [vmem:[#allocation2 + $0x4a] sm:$0xff]
      %v938 = vld [vmem:[#allocation2 + $0x52] sm:$0xff]
      %v939 = vld [vmem:[#allocation2 + $0x62] sm:$0xff]
      %v940 = vld [vmem:[#allocation2 + $0x6a] sm:$0xff]
      %v941 = vld [vmem:[#allocation2 + $0x7a] sm:$0xff]
      %v942 = vld [vmem:[#allocation2 + $0x82] sm:$0xff]
      %v943 = vld [vmem:[#allocation2 + $0x92] sm:$0xff]
      %v944 = vld [vmem:[#allocation2 + $0x9a] sm:$0xff]
      %v945 = vld [vmem:[#allocation2 + $0xaa] sm:$0xff]
      %v946 = vld [vmem:[#allocation2 + $0xb2] sm:$0xff]
      %v947 = vld [vmem:[#allocation2 + $0xc2] sm:$0xff]
      %v948 = vld [vmem:[#allocation2 + $0xca] sm:$0xff]
      %v949 = vld [vmem:[#allocation2 + $0xda] sm:$0xff]
      %v950 = vld [vmem:[#allocation2 + $0xe2] sm:$0xff]
      %v951 = vld [vmem:[#allocation2 + $0xf2] sm:$0xff]
      %v952 = vld [vmem:[#allocation2 + $0xfa] sm:$0xff]
      %v953 = vld [vmem:[#allocation2 + $0x10a] sm:$0xff]
      %v954 = vld [vmem:[#allocation2 + $0x112] sm:$0xff]
      %v955 = vpack.c.bf16 %v931, %v931
      %v956 = vpack.c.bf16 %v932, %v932
      %v957 = vpack.c.bf16 %v933, %v933
      %v958 = vpack.c.bf16 %v934, %v934
      %v959 = vpack.c.bf16 %v935, %v935
      %v960 = vpack.c.bf16 %v936, %v936
      %v961 = vpack.c.bf16 %v937, %v937
      %v962 = vpack.c.bf16 %v938, %v938
      %v963 = vpack.c.bf16 %v939, %v939
      %v964 = vpack.c.bf16 %v940, %v940
      %v965 = vpack.c.bf16 %v941, %v941
      %v966 = vpack.c.bf16 %v942, %v942
      %v967 = vpack.c.bf16 %v943, %v943
      %v968 = vpack.c.bf16 %v944, %v944
      %v969 = vpack.c.bf16 %v945, %v945
      %v970 = vpack.c.bf16 %v946, %v946
      %v971 = vpack.c.bf16 %v947, %v947
      %v972 = vpack.c.bf16 %v948, %v948
      %v973 = vpack.c.bf16 %v949, %v949
      %v974 = vpack.c.bf16 %v950, %v950
      %v975 = vpack.c.bf16 %v951, %v951
      %v976 = vpack.c.bf16 %v952, %v952
      %v977 = vpack.c.bf16 %v953, %v953
      %v978 = vpack.c.bf16 %v954, %v954
      %1003 = vrot.lane.b32.xlu0 %v955, 16
      %v1004 = vpop.permute.xlu0 %1003
      %1005 = vrot.lane.b32.xlu0 %v956, 16
      %v1006 = vpop.permute.xlu0 %1005
      %1007 = vrot.lane.b32.xlu0 %v957, 16
      %v1008 = vpop.permute.xlu0 %1007
      %1009 = vrot.lane.b32.xlu0 %v958, 16
      %v1010 = vpop.permute.xlu0 %1009
      %1011 = vrot.lane.b32.xlu0 %v959, 16
      %v1012 = vpop.permute.xlu0 %1011
      %1013 = vrot.lane.b32.xlu0 %v960, 16
      %v1014 = vpop.permute.xlu0 %1013
      %1015 = vrot.lane.b32.xlu0 %v961, 16
      %v1016 = vpop.permute.xlu0 %1015
      %1017 = vrot.lane.b32.xlu0 %v962, 16
      %v1018 = vpop.permute.xlu0 %1017
      %1019 = vrot.lane.b32.xlu0 %v963, 16
      %v1020 = vpop.permute.xlu0 %1019
      %1021 = vrot.lane.b32.xlu0 %v964, 16
      %v1022 = vpop.permute.xlu0 %1021
      %1023 = vrot.lane.b32.xlu0 %v965, 16
      %v1024 = vpop.permute.xlu0 %1023
      %1025 = vrot.lane.b32.xlu0 %v966, 16
      %v1026 = vpop.permute.xlu0 %1025
      %1027 = vrot.lane.b32.xlu0 %v967, 16
      %v1028 = vpop.permute.xlu0 %1027
      %1029 = vrot.lane.b32.xlu0 %v968, 16
      %v1030 = vpop.permute.xlu0 %1029
      %1031 = vrot.lane.b32.xlu0 %v969, 16
      %v1032 = vpop.permute.xlu0 %1031
      %1033 = vrot.lane.b32.xlu0 %v970, 16
      %v1034 = vpop.permute.xlu0 %1033
      %1035 = vrot.lane.b32.xlu0 %v971, 16
      %v1036 = vpop.permute.xlu0 %1035
      %1037 = vrot.lane.b32.xlu0 %v972, 16
      %v1038 = vpop.permute.xlu0 %1037
      %1039 = vrot.lane.b32.xlu0 %v973, 16
      %v1040 = vpop.permute.xlu0 %1039
      %1041 = vrot.lane.b32.xlu0 %v974, 16
      %v1042 = vpop.permute.xlu0 %1041
      %1043 = vrot.lane.b32.xlu0 %v975, 16
      %v1044 = vpop.permute.xlu0 %1043
      %1045 = vrot.lane.b32.xlu0 %v976, 16
      %v1046 = vpop.permute.xlu0 %1045
      %1047 = vrot.lane.b32.xlu0 %v977, 16
      %v1048 = vpop.permute.xlu0 %1047
      %1049 = vrot.lane.b32.xlu0 %v978, 16
      %v1050 = vpop.permute.xlu0 %1049
      %vm1075 = vcmask 191616
      %1076 = vst.msk [vmem:[#allocation4] sm:$0xf] %vm1075, %v1004
      %1077 = vst.msk [vmem:[#allocation4 + $0x4] sm:$0xf] %vm1075, %v1006
      %1078 = vst.msk [vmem:[#allocation4 + $0x8] sm:$0xf] %vm1075, %v1008
      %1079 = vst.msk [vmem:[#allocation4 + $0xc] sm:$0xf] %vm1075, %v1010
      %1080 = vst.msk [vmem:[#allocation4 + $0x10] sm:$0xf] %vm1075, %v1012
      %1081 = vst.msk [vmem:[#allocation4 + $0x14] sm:$0xf] %vm1075, %v1014
      %1082 = vst.msk [vmem:[#allocation4 + $0x18] sm:$0xf] %vm1075, %v1016
      %1083 = vst.msk [vmem:[#allocation4 + $0x1c] sm:$0xf] %vm1075, %v1018
      %1084 = vst.msk [vmem:[#allocation4 + $0x20] sm:$0xf] %vm1075, %v1020
      %1085 = vst.msk [vmem:[#allocation4 + $0x24] sm:$0xf] %vm1075, %v1022
      %1086 = vst.msk [vmem:[#allocation4 + $0x28] sm:$0xf] %vm1075, %v1024
      %1087 = vst.msk [vmem:[#allocation4 + $0x2c] sm:$0xf] %vm1075, %v1026
      %1088 = vst.msk [vmem:[#allocation4 + $0x30] sm:$0xf] %vm1075, %v1028
      %1089 = vst.msk [vmem:[#allocation4 + $0x34] sm:$0xf] %vm1075, %v1030
      %1090 = vst.msk [vmem:[#allocation4 + $0x38] sm:$0xf] %vm1075, %v1032
      %1091 = vst.msk [vmem:[#allocation4 + $0x3c] sm:$0xf] %vm1075, %v1034
      %1092 = vst.msk [vmem:[#allocation4 + $0x40] sm:$0xf] %vm1075, %v1036
      %1093 = vst.msk [vmem:[#allocation4 + $0x44] sm:$0xf] %vm1075, %v1038
      %1094 = vst.msk [vmem:[#allocation4 + $0x48] sm:$0xf] %vm1075, %v1040
      %1095 = vst.msk [vmem:[#allocation4 + $0x4c] sm:$0xf] %vm1075, %v1042
      %1096 = vst.msk [vmem:[#allocation4 + $0x50] sm:$0xf] %vm1075, %v1044
      %1097 = vst.msk [vmem:[#allocation4 + $0x54] sm:$0xf] %vm1075, %v1046
      %1098 = vst.msk [vmem:[#allocation4 + $0x58] sm:$0xf] %vm1075, %v1048
      %1099 = vst.msk [vmem:[#allocation4 + $0x5c] sm:$0xf] %vm1075, %v1050
      %s1100 = scalar_lea.vmem [#allocation2], 24
      %v1101 = vld [vmem:[%s1100] sm:$0xff]
      %v1102 = vld [vmem:[%s1100 + $0x8] sm:$0xff]
      %v1103 = vld [vmem:[%s1100 + $0x18] sm:$0xff]
      %v1104 = vld [vmem:[%s1100 + $0x20] sm:$0xff]
      %v1105 = vld [vmem:[%s1100 + $0x30] sm:$0xff]
      %v1106 = vld [vmem:[%s1100 + $0x38] sm:$0xff]
      %v1107 = vld [vmem:[%s1100 + $0x48] sm:$0xff]
      %v1108 = vld [vmem:[%s1100 + $0x50] sm:$0xff]
      %v1109 = vld [vmem:[%s1100 + $0x60] sm:$0xff]
      %v1110 = vld [vmem:[%s1100 + $0x68] sm:$0xff]
      %v1111 = vld [vmem:[%s1100 + $0x78] sm:$0xff]
      %v1112 = vld [vmem:[%s1100 + $0x80] sm:$0xff]
      %v1113 = vld [vmem:[%s1100 + $0x90] sm:$0xff]
      %v1114 = vld [vmem:[%s1100 + $0x98] sm:$0xff]
      %v1115 = vld [vmem:[%s1100 + $0xa8] sm:$0xff]
      %v1116 = vld [vmem:[%s1100 + $0xb0] sm:$0xff]
      %v1117 = vld [vmem:[%s1100 + $0xc0] sm:$0xff]
      %v1118 = vld [vmem:[%s1100 + $0xc8] sm:$0xff]
      %v1119 = vld [vmem:[%s1100 + $0xd8] sm:$0xff]
      %v1120 = vld [vmem:[%s1100 + $0xe0] sm:$0xff]
      %v1121 = vld [vmem:[%s1100 + $0xf0] sm:$0xff]
      %v1122 = vld [vmem:[%s1100 + $0xf8] sm:$0xff]
      %v1123 = vld [vmem:[%s1100 + $0x108] sm:$0xff]
      %v1124 = vld [vmem:[%s1100 + $0x110] sm:$0xff]
      %v1125 = vpack.c.bf16 %v1101, %v1101
      %v1126 = vpack.c.bf16 %v1102, %v1102
      %v1127 = vpack.c.bf16 %v1103, %v1103
      %v1128 = vpack.c.bf16 %v1104, %v1104
      %v1129 = vpack.c.bf16 %v1105, %v1105
      %v1130 = vpack.c.bf16 %v1106, %v1106
      %v1131 = vpack.c.bf16 %v1107, %v1107
      %v1132 = vpack.c.bf16 %v1108, %v1108
      %v1133 = vpack.c.bf16 %v1109, %v1109
      %v1134 = vpack.c.bf16 %v1110, %v1110
      %v1135 = vpack.c.bf16 %v1111, %v1111
      %v1136 = vpack.c.bf16 %v1112, %v1112
      %v1137 = vpack.c.bf16 %v1113, %v1113
      %v1138 = vpack.c.bf16 %v1114, %v1114
      %v1139 = vpack.c.bf16 %v1115, %v1115
      %v1140 = vpack.c.bf16 %v1116, %v1116
      %v1141 = vpack.c.bf16 %v1117, %v1117
      %v1142 = vpack.c.bf16 %v1118, %v1118
      %v1143 = vpack.c.bf16 %v1119, %v1119
      %v1144 = vpack.c.bf16 %v1120, %v1120
      %v1145 = vpack.c.bf16 %v1121, %v1121
      %v1146 = vpack.c.bf16 %v1122, %v1122
      %v1147 = vpack.c.bf16 %v1123, %v1123
      %v1148 = vpack.c.bf16 %v1124, %v1124
      %1173 = vrot.lane.b32.xlu0 %v1125, 24
      %v1174 = vpop.permute.xlu0 %1173
      %1175 = vrot.lane.b32.xlu0 %v1126, 24
      %v1176 = vpop.permute.xlu0 %1175
      %1177 = vrot.lane.b32.xlu0 %v1127, 24
      %v1178 = vpop.permute.xlu0 %1177
      %1179 = vrot.lane.b32.xlu0 %v1128, 24
      %v1180 = vpop.permute.xlu0 %1179
      %1181 = vrot.lane.b32.xlu0 %v1129, 24
      %v1182 = vpop.permute.xlu0 %1181
      %1183 = vrot.lane.b32.xlu0 %v1130, 24
      %v1184 = vpop.permute.xlu0 %1183
      %1185 = vrot.lane.b32.xlu0 %v1131, 24
      %v1186 = vpop.permute.xlu0 %1185
      %1187 = vrot.lane.b32.xlu0 %v1132, 24
      %v1188 = vpop.permute.xlu0 %1187
      %1189 = vrot.lane.b32.xlu0 %v1133, 24
      %v1190 = vpop.permute.xlu0 %1189
      %1191 = vrot.lane.b32.xlu0 %v1134, 24
      %v1192 = vpop.permute.xlu0 %1191
      %1193 = vrot.lane.b32.xlu0 %v1135, 24
      %v1194 = vpop.permute.xlu0 %1193
      %1195 = vrot.lane.b32.xlu0 %v1136, 24
      %v1196 = vpop.permute.xlu0 %1195
      %1197 = vrot.lane.b32.xlu0 %v1137, 24
      %v1198 = vpop.permute.xlu0 %1197
      %1199 = vrot.lane.b32.xlu0 %v1138, 24
      %v1200 = vpop.permute.xlu0 %1199
      %1201 = vrot.lane.b32.xlu0 %v1139, 24
      %v1202 = vpop.permute.xlu0 %1201
      %1203 = vrot.lane.b32.xlu0 %v1140, 24
      %v1204 = vpop.permute.xlu0 %1203
      %1205 = vrot.lane.b32.xlu0 %v1141, 24
      %v1206 = vpop.permute.xlu0 %1205
      %1207 = vrot.lane.b32.xlu0 %v1142, 24
      %v1208 = vpop.permute.xlu0 %1207
      %1209 = vrot.lane.b32.xlu0 %v1143, 24
      %v1210 = vpop.permute.xlu0 %1209
      %1211 = vrot.lane.b32.xlu0 %v1144, 24
      %v1212 = vpop.permute.xlu0 %1211
      %1213 = vrot.lane.b32.xlu0 %v1145, 24
      %v1214 = vpop.permute.xlu0 %1213
      %1215 = vrot.lane.b32.xlu0 %v1146, 24
      %v1216 = vpop.permute.xlu0 %1215
      %1217 = vrot.lane.b32.xlu0 %v1147, 24
      %v1218 = vpop.permute.xlu0 %1217
      %1219 = vrot.lane.b32.xlu0 %v1148, 24
      %v1220 = vpop.permute.xlu0 %1219
      %vm1245 = vcmask 257216
      %1246 = vst.msk [vmem:[#allocation4] sm:$0xf] %vm1245, %v1174
      %1247 = vst.msk [vmem:[#allocation4 + $0x4] sm:$0xf] %vm1245, %v1176
      %1248 = vst.msk [vmem:[#allocation4 + $0x8] sm:$0xf] %vm1245, %v1178
      %1249 = vst.msk [vmem:[#allocation4 + $0xc] sm:$0xf] %vm1245, %v1180
      %1250 = vst.msk [vmem:[#allocation4 + $0x10] sm:$0xf] %vm1245, %v1182
      %1251 = vst.msk [vmem:[#allocation4 + $0x14] sm:$0xf] %vm1245, %v1184
      %1252 = vst.msk [vmem:[#allocation4 + $0x18] sm:$0xf] %vm1245, %v1186
      %1253 = vst.msk [vmem:[#allocation4 + $0x1c] sm:$0xf] %vm1245, %v1188
      %1254 = vst.msk [vmem:[#allocation4 + $0x20] sm:$0xf] %vm1245, %v1190
      %1255 = vst.msk [vmem:[#allocation4 + $0x24] sm:$0xf] %vm1245, %v1192
      %1256 = vst.msk [vmem:[#allocation4 + $0x28] sm:$0xf] %vm1245, %v1194
      %1257 = vst.msk [vmem:[#allocation4 + $0x2c] sm:$0xf] %vm1245, %v1196
      %1258 = vst.msk [vmem:[#allocation4 + $0x30] sm:$0xf] %vm1245, %v1198
      %1259 = vst.msk [vmem:[#allocation4 + $0x34] sm:$0xf] %vm1245, %v1200
      %1260 = vst.msk [vmem:[#allocation4 + $0x38] sm:$0xf] %vm1245, %v1202
      %1261 = vst.msk [vmem:[#allocation4 + $0x3c] sm:$0xf] %vm1245, %v1204
      %1262 = vst.msk [vmem:[#allocation4 + $0x40] sm:$0xf] %vm1245, %v1206
      %1263 = vst.msk [vmem:[#allocation4 + $0x44] sm:$0xf] %vm1245, %v1208
      %1264 = vst.msk [vmem:[#allocation4 + $0x48] sm:$0xf] %vm1245, %v1210
      %1265 = vst.msk [vmem:[#allocation4 + $0x4c] sm:$0xf] %vm1245, %v1212
      %1266 = vst.msk [vmem:[#allocation4 + $0x50] sm:$0xf] %vm1245, %v1214
      %1267 = vst.msk [vmem:[#allocation4 + $0x54] sm:$0xf] %vm1245, %v1216
      %1268 = vst.msk [vmem:[#allocation4 + $0x58] sm:$0xf] %vm1245, %v1218
      %1269 = vst.msk [vmem:[#allocation4 + $0x5c] sm:$0xf] %vm1245, %v1220
      %v1270 = vld [vmem:[%s1100 + $0x1] sm:$0xff]
      %v1271 = vld [vmem:[%s1100 + $0x9] sm:$0xff]
      %v1272 = vld [vmem:[%s1100 + $0x19] sm:$0xff]
      %v1273 = vld [vmem:[%s1100 + $0x21] sm:$0xff]
      %v1274 = vld [vmem:[%s1100 + $0x31] sm:$0xff]
      %v1275 = vld [vmem:[%s1100 + $0x39] sm:$0xff]
      %v1276 = vld [vmem:[%s1100 + $0x49] sm:$0xff]
      %v1277 = vld [vmem:[%s1100 + $0x51] sm:$0xff]
      %v1278 = vld [vmem:[%s1100 + $0x61] sm:$0xff]
      %v1279 = vld [vmem:[%s1100 + $0x69] sm:$0xff]
      %v1280 = vld [vmem:[%s1100 + $0x79] sm:$0xff]
      %v1281 = vld [vmem:[%s1100 + $0x81] sm:$0xff]
      %v1282 = vld [vmem:[%s1100 + $0x91] sm:$0xff]
      %v1283 = vld [vmem:[%s1100 + $0x99] sm:$0xff]
      %v1284 = vld [vmem:[%s1100 + $0xa9] sm:$0xff]
      %v1285 = vld [vmem:[%s1100 + $0xb1] sm:$0xff]
      %v1286 = vld [vmem:[%s1100 + $0xc1] sm:$0xff]
      %v1287 = vld [vmem:[%s1100 + $0xc9] sm:$0xff]
      %v1288 = vld [vmem:[%s1100 + $0xd9] sm:$0xff]
      %v1289 = vld [vmem:[%s1100 + $0xe1] sm:$0xff]
      %v1290 = vld [vmem:[%s1100 + $0xf1] sm:$0xff]
      %v1291 = vld [vmem:[%s1100 + $0xf9] sm:$0xff]
      %v1292 = vld [vmem:[%s1100 + $0x109] sm:$0xff]
      %v1293 = vld [vmem:[%s1100 + $0x111] sm:$0xff]
      %v1294 = vpack.c.bf16 %v1270, %v1270
      %v1295 = vpack.c.bf16 %v1271, %v1271
      %v1296 = vpack.c.bf16 %v1272, %v1272
      %v1297 = vpack.c.bf16 %v1273, %v1273
      %v1298 = vpack.c.bf16 %v1274, %v1274
      %v1299 = vpack.c.bf16 %v1275, %v1275
      %v1300 = vpack.c.bf16 %v1276, %v1276
      %v1301 = vpack.c.bf16 %v1277, %v1277
      %v1302 = vpack.c.bf16 %v1278, %v1278
      %v1303 = vpack.c.bf16 %v1279, %v1279
      %v1304 = vpack.c.bf16 %v1280, %v1280
      %v1305 = vpack.c.bf16 %v1281, %v1281
      %v1306 = vpack.c.bf16 %v1282, %v1282
      %v1307 = vpack.c.bf16 %v1283, %v1283
      %v1308 = vpack.c.bf16 %v1284, %v1284
      %v1309 = vpack.c.bf16 %v1285, %v1285
      %v1310 = vpack.c.bf16 %v1286, %v1286
      %v1311 = vpack.c.bf16 %v1287, %v1287
      %v1312 = vpack.c.bf16 %v1288, %v1288
      %v1313 = vpack.c.bf16 %v1289, %v1289
      %v1314 = vpack.c.bf16 %v1290, %v1290
      %v1315 = vpack.c.bf16 %v1291, %v1291
      %v1316 = vpack.c.bf16 %v1292, %v1292
      %v1317 = vpack.c.bf16 %v1293, %v1293
      %1342 = vrot.lane.b32.xlu0 %v1294, 32
      %v1343 = vpop.permute.xlu0 %1342
      %1344 = vrot.lane.b32.xlu0 %v1295, 32
      %v1345 = vpop.permute.xlu0 %1344
      %1346 = vrot.lane.b32.xlu0 %v1296, 32
      %v1347 = vpop.permute.xlu0 %1346
      %1348 = vrot.lane.b32.xlu0 %v1297, 32
      %v1349 = vpop.permute.xlu0 %1348
      %1350 = vrot.lane.b32.xlu0 %v1298, 32
      %v1351 = vpop.permute.xlu0 %1350
      %1352 = vrot.lane.b32.xlu0 %v1299, 32
      %v1353 = vpop.permute.xlu0 %1352
      %1354 = vrot.lane.b32.xlu0 %v1300, 32
      %v1355 = vpop.permute.xlu0 %1354
      %1356 = vrot.lane.b32.xlu0 %v1301, 32
      %v1357 = vpop.permute.xlu0 %1356
      %1358 = vrot.lane.b32.xlu0 %v1302, 32
      %v1359 = vpop.permute.xlu0 %1358
      %1360 = vrot.lane.b32.xlu0 %v1303, 32
      %v1361 = vpop.permute.xlu0 %1360
      %1362 = vrot.lane.b32.xlu0 %v1304, 32
      %v1363 = vpop.permute.xlu0 %1362
      %1364 = vrot.lane.b32.xlu0 %v1305, 32
      %v1365 = vpop.permute.xlu0 %1364
      %1366 = vrot.lane.b32.xlu0 %v1306, 32
      %v1367 = vpop.permute.xlu0 %1366
      %1368 = vrot.lane.b32.xlu0 %v1307, 32
      %v1369 = vpop.permute.xlu0 %1368
      %1370 = vrot.lane.b32.xlu0 %v1308, 32
      %v1371 = vpop.permute.xlu0 %1370
      %1372 = vrot.lane.b32.xlu0 %v1309, 32
      %v1373 = vpop.permute.xlu0 %1372
      %1374 = vrot.lane.b32.xlu0 %v1310, 32
      %v1375 = vpop.permute.xlu0 %1374
      %1376 = vrot.lane.b32.xlu0 %v1311, 32
      %v1377 = vpop.permute.xlu0 %1376
      %1378 = vrot.lane.b32.xlu0 %v1312, 32
      %v1379 = vpop.permute.xlu0 %1378
      %1380 = vrot.lane.b32.xlu0 %v1313, 32
      %v1381 = vpop.permute.xlu0 %1380
      %1382 = vrot.lane.b32.xlu0 %v1314, 32
      %v1383 = vpop.permute.xlu0 %1382
      %1384 = vrot.lane.b32.xlu0 %v1315, 32
      %v1385 = vpop.permute.xlu0 %1384
      %1386 = vrot.lane.b32.xlu0 %v1316, 32
      %v1387 = vpop.permute.xlu0 %1386
      %1388 = vrot.lane.b32.xlu0 %v1317, 32
      %v1389 = vpop.permute.xlu0 %1388
      %vm1414 = vcmask 322816
      %1415 = vst.msk [vmem:[#allocation4] sm:$0xf] %vm1414, %v1343
      %1416 = vst.msk [vmem:[#allocation4 + $0x4] sm:$0xf] %vm1414, %v1345
      %1417 = vst.msk [vmem:[#allocation4 + $0x8] sm:$0xf] %vm1414, %v1347
      %1418 = vst.msk [vmem:[#allocation4 + $0xc] sm:$0xf] %vm1414, %v1349
      %1419 = vst.msk [vmem:[#allocation4 + $0x10] sm:$0xf] %vm1414, %v1351
      %1420 = vst.msk [vmem:[#allocation4 + $0x14] sm:$0xf] %vm1414, %v1353
      %1421 = vst.msk [vmem:[#allocation4 + $0x18] sm:$0xf] %vm1414, %v1355
      %1422 = vst.msk [vmem:[#allocation4 + $0x1c] sm:$0xf] %vm1414, %v1357
      %1423 = vst.msk [vmem:[#allocation4 + $0x20] sm:$0xf] %vm1414, %v1359
      %1424 = vst.msk [vmem:[#allocation4 + $0x24] sm:$0xf] %vm1414, %v1361
      %1425 = vst.msk [vmem:[#allocation4 + $0x28] sm:$0xf] %vm1414, %v1363
      %1426 = vst.msk [vmem:[#allocation4 + $0x2c] sm:$0xf] %vm1414, %v1365
      %1427 = vst.msk [vmem:[#allocation4 + $0x30] sm:$0xf] %vm1414, %v1367
      %1428 = vst.msk [vmem:[#allocation4 + $0x34] sm:$0xf] %vm1414, %v1369
      %1429 = vst.msk [vmem:[#allocation4 + $0x38] sm:$0xf] %vm1414, %v1371
      %1430 = vst.msk [vmem:[#allocation4 + $0x3c] sm:$0xf] %vm1414, %v1373
      %1431 = vst.msk [vmem:[#allocation4 + $0x40] sm:$0xf] %vm1414, %v1375
      %1432 = vst.msk [vmem:[#allocation4 + $0x44] sm:$0xf] %vm1414, %v1377
      %1433 = vst.msk [vmem:[#allocation4 + $0x48] sm:$0xf] %vm1414, %v1379
      %1434 = vst.msk [vmem:[#allocation4 + $0x4c] sm:$0xf] %vm1414, %v1381
      %1435 = vst.msk [vmem:[#allocation4 + $0x50] sm:$0xf] %vm1414, %v1383
      %1436 = vst.msk [vmem:[#allocation4 + $0x54] sm:$0xf] %vm1414, %v1385
      %1437 = vst.msk [vmem:[#allocation4 + $0x58] sm:$0xf] %vm1414, %v1387
      %1438 = vst.msk [vmem:[#allocation4 + $0x5c] sm:$0xf] %vm1414, %v1389
      %v1439 = vld [vmem:[%s1100 + $0x2] sm:$0xff]
      %v1440 = vld [vmem:[%s1100 + $0xa] sm:$0xff]
      %v1441 = vld [vmem:[%s1100 + $0x1a] sm:$0xff]
      %v1442 = vld [vmem:[%s1100 + $0x22] sm:$0xff]
      %v1443 = vld [vmem:[%s1100 + $0x32] sm:$0xff]
      %v1444 = vld [vmem:[%s1100 + $0x3a] sm:$0xff]
      %v1445 = vld [vmem:[%s1100 + $0x4a] sm:$0xff]
      %v1446 = vld [vmem:[%s1100 + $0x52] sm:$0xff]
      %v1447 = vld [vmem:[%s1100 + $0x62] sm:$0xff]
      %v1448 = vld [vmem:[%s1100 + $0x6a] sm:$0xff]
      %v1449 = vld [vmem:[%s1100 + $0x7a] sm:$0xff]
      %v1450 = vld [vmem:[%s1100 + $0x82] sm:$0xff]
      %v1451 = vld [vmem:[%s1100 + $0x92] sm:$0xff]
      %v1452 = vld [vmem:[%s1100 + $0x9a] sm:$0xff]
      %v1453 = vld [vmem:[%s1100 + $0xaa] sm:$0xff]
      %v1454 = vld [vmem:[%s1100 + $0xb2] sm:$0xff]
      %v1455 = vld [vmem:[%s1100 + $0xc2] sm:$0xff]
      %v1456 = vld [vmem:[%s1100 + $0xca] sm:$0xff]
      %v1457 = vld [vmem:[%s1100 + $0xda] sm:$0xff]
      %v1458 = vld [vmem:[%s1100 + $0xe2] sm:$0xff]
      %v1459 = vld [vmem:[%s1100 + $0xf2] sm:$0xff]
      %v1460 = vld [vmem:[%s1100 + $0xfa] sm:$0xff]
      %v1461 = vld [vmem:[%s1100 + $0x10a] sm:$0xff]
      %v1462 = vld [vmem:[%s1100 + $0x112] sm:$0xff]
      %v1463 = vpack.c.bf16 %v1439, %v1439
      %v1464 = vpack.c.bf16 %v1440, %v1440
      %v1465 = vpack.c.bf16 %v1441, %v1441
      %v1466 = vpack.c.bf16 %v1442, %v1442
      %v1467 = vpack.c.bf16 %v1443, %v1443
      %v1468 = vpack.c.bf16 %v1444, %v1444
      %v1469 = vpack.c.bf16 %v1445, %v1445
      %v1470 = vpack.c.bf16 %v1446, %v1446
      %v1471 = vpack.c.bf16 %v1447, %v1447
      %v1472 = vpack.c.bf16 %v1448, %v1448
      %v1473 = vpack.c.bf16 %v1449, %v1449
      %v1474 = vpack.c.bf16 %v1450, %v1450
      %v1475 = vpack.c.bf16 %v1451, %v1451
      %v1476 = vpack.c.bf16 %v1452, %v1452
      %v1477 = vpack.c.bf16 %v1453, %v1453
      %v1478 = vpack.c.bf16 %v1454, %v1454
      %v1479 = vpack.c.bf16 %v1455, %v1455
      %v1480 = vpack.c.bf16 %v1456, %v1456
      %v1481 = vpack.c.bf16 %v1457, %v1457
      %v1482 = vpack.c.bf16 %v1458, %v1458
      %v1483 = vpack.c.bf16 %v1459, %v1459
      %v1484 = vpack.c.bf16 %v1460, %v1460
      %v1485 = vpack.c.bf16 %v1461, %v1461
      %v1486 = vpack.c.bf16 %v1462, %v1462
      %1511 = vrot.lane.b32.xlu0 %v1463, 40
      %v1512 = vpop.permute.xlu0 %1511
      %1513 = vrot.lane.b32.xlu0 %v1464, 40
      %v1514 = vpop.permute.xlu0 %1513
      %1515 = vrot.lane.b32.xlu0 %v1465, 40
      %v1516 = vpop.permute.xlu0 %1515
      %1517 = vrot.lane.b32.xlu0 %v1466, 40
      %v1518 = vpop.permute.xlu0 %1517
      %1519 = vrot.lane.b32.xlu0 %v1467, 40
      %v1520 = vpop.permute.xlu0 %1519
      %1521 = vrot.lane.b32.xlu0 %v1468, 40
      %v1522 = vpop.permute.xlu0 %1521
      %1523 = vrot.lane.b32.xlu0 %v1469, 40
      %v1524 = vpop.permute.xlu0 %1523
      %1525 = vrot.lane.b32.xlu0 %v1470, 40
      %v1526 = vpop.permute.xlu0 %1525
      %1527 = vrot.lane.b32.xlu0 %v1471, 40
      %v1528 = vpop.permute.xlu0 %1527
      %1529 = vrot.lane.b32.xlu0 %v1472, 40
      %v1530 = vpop.permute.xlu0 %1529
      %1531 = vrot.lane.b32.xlu0 %v1473, 40
      %v1532 = vpop.permute.xlu0 %1531
      %1533 = vrot.lane.b32.xlu0 %v1474, 40
      %v1534 = vpop.permute.xlu0 %1533
      %1535 = vrot.lane.b32.xlu0 %v1475, 40
      %v1536 = vpop.permute.xlu0 %1535
      %1537 = vrot.lane.b32.xlu0 %v1476, 40
      %v1538 = vpop.permute.xlu0 %1537
      %1539 = vrot.lane.b32.xlu0 %v1477, 40
      %v1540 = vpop.permute.xlu0 %1539
      %1541 = vrot.lane.b32.xlu0 %v1478, 40
      %v1542 = vpop.permute.xlu0 %1541
      %1543 = vrot.lane.b32.xlu0 %v1479, 40
      %v1544 = vpop.permute.xlu0 %1543
      %1545 = vrot.lane.b32.xlu0 %v1480, 40
      %v1546 = vpop.permute.xlu0 %1545
      %1547 = vrot.lane.b32.xlu0 %v1481, 40
      %v1548 = vpop.permute.xlu0 %1547
      %1549 = vrot.lane.b32.xlu0 %v1482, 40
      %v1550 = vpop.permute.xlu0 %1549
      %1551 = vrot.lane.b32.xlu0 %v1483, 40
      %v1552 = vpop.permute.xlu0 %1551
      %1553 = vrot.lane.b32.xlu0 %v1484, 40
      %v1554 = vpop.permute.xlu0 %1553
      %1555 = vrot.lane.b32.xlu0 %v1485, 40
      %v1556 = vpop.permute.xlu0 %1555
      %1557 = vrot.lane.b32.xlu0 %v1486, 40
      %v1558 = vpop.permute.xlu0 %1557
      %vm1583 = vcmask 388416
      %1584 = vst.msk [vmem:[#allocation4] sm:$0xf] %vm1583, %v1512
      %1585 = vst.msk [vmem:[#allocation4 + $0x4] sm:$0xf] %vm1583, %v1514
      %1586 = vst.msk [vmem:[#allocation4 + $0x8] sm:$0xf] %vm1583, %v1516
      %1587 = vst.msk [vmem:[#allocation4 + $0xc] sm:$0xf] %vm1583, %v1518
      %1588 = vst.msk [vmem:[#allocation4 + $0x10] sm:$0xf] %vm1583, %v1520
      %1589 = vst.msk [vmem:[#allocation4 + $0x14] sm:$0xf] %vm1583, %v1522
      %1590 = vst.msk [vmem:[#allocation4 + $0x18] sm:$0xf] %vm1583, %v1524
      %1591 = vst.msk [vmem:[#allocation4 + $0x1c] sm:$0xf] %vm1583, %v1526
      %1592 = vst.msk [vmem:[#allocation4 + $0x20] sm:$0xf] %vm1583, %v1528
      %1593 = vst.msk [vmem:[#allocation4 + $0x24] sm:$0xf] %vm1583, %v1530
      %1594 = vst.msk [vmem:[#allocation4 + $0x28] sm:$0xf] %vm1583, %v1532
      %1595 = vst.msk [vmem:[#allocation4 + $0x2c] sm:$0xf] %vm1583, %v1534
      %1596 = vst.msk [vmem:[#allocation4 + $0x30] sm:$0xf] %vm1583, %v1536
      %1597 = vst.msk [vmem:[#allocation4 + $0x34] sm:$0xf] %vm1583, %v1538
      %1598 = vst.msk [vmem:[#allocation4 + $0x38] sm:$0xf] %vm1583, %v1540
      %1599 = vst.msk [vmem:[#allocation4 + $0x3c] sm:$0xf] %vm1583, %v1542
      %1600 = vst.msk [vmem:[#allocation4 + $0x40] sm:$0xf] %vm1583, %v1544
      %1601 = vst.msk [vmem:[#allocation4 + $0x44] sm:$0xf] %vm1583, %v1546
      %1602 = vst.msk [vmem:[#allocation4 + $0x48] sm:$0xf] %vm1583, %v1548
      %1603 = vst.msk [vmem:[#allocation4 + $0x4c] sm:$0xf] %vm1583, %v1550
      %1604 = vst.msk [vmem:[#allocation4 + $0x50] sm:$0xf] %vm1583, %v1552
      %1605 = vst.msk [vmem:[#allocation4 + $0x54] sm:$0xf] %vm1583, %v1554
      %1606 = vst.msk [vmem:[#allocation4 + $0x58] sm:$0xf] %vm1583, %v1556
      %1607 = vst.msk [vmem:[#allocation4 + $0x5c] sm:$0xf] %vm1583, %v1558
      %s1608 = scalar_lea.vmem [#allocation2], 48
      %v1609 = vld [vmem:[%s1608] sm:$0xff]
      %v1610 = vld [vmem:[%s1608 + $0x8] sm:$0xff]
      %v1611 = vld [vmem:[%s1608 + $0x18] sm:$0xff]
      %v1612 = vld [vmem:[%s1608 + $0x20] sm:$0xff]
      %v1613 = vld [vmem:[%s1608 + $0x30] sm:$0xff]
      %v1614 = vld [vmem:[%s1608 + $0x38] sm:$0xff]
      %v1615 = vld [vmem:[%s1608 + $0x48] sm:$0xff]
      %v1616 = vld [vmem:[%s1608 + $0x50] sm:$0xff]
      %v1617 = vld [vmem:[%s1608 + $0x60] sm:$0xff]
      %v1618 = vld [vmem:[%s1608 + $0x68] sm:$0xff]
      %v1619 = vld [vmem:[%s1608 + $0x78] sm:$0xff]
      %v1620 = vld [vmem:[%s1608 + $0x80] sm:$0xff]
      %v1621 = vld [vmem:[%s1608 + $0x90] sm:$0xff]
      %v1622 = vld [vmem:[%s1608 + $0x98] sm:$0xff]
      %v1623 = vld [vmem:[%s1608 + $0xa8] sm:$0xff]
      %v1624 = vld [vmem:[%s1608 + $0xb0] sm:$0xff]
      %v1625 = vld [vmem:[%s1608 + $0xc0] sm:$0xff]
      %v1626 = vld [vmem:[%s1608 + $0xc8] sm:$0xff]
      %v1627 = vld [vmem:[%s1608 + $0xd8] sm:$0xff]
      %v1628 = vld [vmem:[%s1608 + $0xe0] sm:$0xff]
      %v1629 = vld [vmem:[%s1608 + $0xf0] sm:$0xff]
      %v1630 = vld [vmem:[%s1608 + $0xf8] sm:$0xff]
      %v1631 = vld [vmem:[%s1608 + $0x108] sm:$0xff]
      %v1632 = vld [vmem:[%s1608 + $0x110] sm:$0xff]
      %v1633 = vpack.c.bf16 %v1609, %v1609
      %v1634 = vpack.c.bf16 %v1610, %v1610
      %v1635 = vpack.c.bf16 %v1611, %v1611
      %v1636 = vpack.c.bf16 %v1612, %v1612
      %v1637 = vpack.c.bf16 %v1613, %v1613
      %v1638 = vpack.c.bf16 %v1614, %v1614
      %v1639 = vpack.c.bf16 %v1615, %v1615
      %v1640 = vpack.c.bf16 %v1616, %v1616
      %v1641 = vpack.c.bf16 %v1617, %v1617
      %v1642 = vpack.c.bf16 %v1618, %v1618
      %v1643 = vpack.c.bf16 %v1619, %v1619
      %v1644 = vpack.c.bf16 %v1620, %v1620
      %v1645 = vpack.c.bf16 %v1621, %v1621
      %v1646 = vpack.c.bf16 %v1622, %v1622
      %v1647 = vpack.c.bf16 %v1623, %v1623
      %v1648 = vpack.c.bf16 %v1624, %v1624
      %v1649 = vpack.c.bf16 %v1625, %v1625
      %v1650 = vpack.c.bf16 %v1626, %v1626
      %v1651 = vpack.c.bf16 %v1627, %v1627
      %v1652 = vpack.c.bf16 %v1628, %v1628
      %v1653 = vpack.c.bf16 %v1629, %v1629
      %v1654 = vpack.c.bf16 %v1630, %v1630
      %v1655 = vpack.c.bf16 %v1631, %v1631
      %v1656 = vpack.c.bf16 %v1632, %v1632
      %1681 = vrot.lane.b32.xlu0 %v1633, 48
      %v1682 = vpop.permute.xlu0 %1681
      %1683 = vrot.lane.b32.xlu0 %v1634, 48
      %v1684 = vpop.permute.xlu0 %1683
      %1685 = vrot.lane.b32.xlu0 %v1635, 48
      %v1686 = vpop.permute.xlu0 %1685
      %1687 = vrot.lane.b32.xlu0 %v1636, 48
      %v1688 = vpop.permute.xlu0 %1687
      %1689 = vrot.lane.b32.xlu0 %v1637, 48
      %v1690 = vpop.permute.xlu0 %1689
      %1691 = vrot.lane.b32.xlu0 %v1638, 48
      %v1692 = vpop.permute.xlu0 %1691
      %1693 = vrot.lane.b32.xlu0 %v1639, 48
      %v1694 = vpop.permute.xlu0 %1693
      %1695 = vrot.lane.b32.xlu0 %v1640, 48
      %v1696 = vpop.permute.xlu0 %1695
      %1697 = vrot.lane.b32.xlu0 %v1641, 48
      %v1698 = vpop.permute.xlu0 %1697
      %1699 = vrot.lane.b32.xlu0 %v1642, 48
      %v1700 = vpop.permute.xlu0 %1699
      %1701 = vrot.lane.b32.xlu0 %v1643, 48
      %v1702 = vpop.permute.xlu0 %1701
      %1703 = vrot.lane.b32.xlu0 %v1644, 48
      %v1704 = vpop.permute.xlu0 %1703
      %1705 = vrot.lane.b32.xlu0 %v1645, 48
      %v1706 = vpop.permute.xlu0 %1705
      %1707 = vrot.lane.b32.xlu0 %v1646, 48
      %v1708 = vpop.permute.xlu0 %1707
      %1709 = vrot.lane.b32.xlu0 %v1647, 48
      %v1710 = vpop.permute.xlu0 %1709
      %1711 = vrot.lane.b32.xlu0 %v1648, 48
      %v1712 = vpop.permute.xlu0 %1711
      %1713 = vrot.lane.b32.xlu0 %v1649, 48
      %v1714 = vpop.permute.xlu0 %1713
      %1715 = vrot.lane.b32.xlu0 %v1650, 48
      %v1716 = vpop.permute.xlu0 %1715
      %1717 = vrot.lane.b32.xlu0 %v1651, 48
      %v1718 = vpop.permute.xlu0 %1717
      %1719 = vrot.lane.b32.xlu0 %v1652, 48
      %v1720 = vpop.permute.xlu0 %1719
      %1721 = vrot.lane.b32.xlu0 %v1653, 48
      %v1722 = vpop.permute.xlu0 %1721
      %1723 = vrot.lane.b32.xlu0 %v1654, 48
      %v1724 = vpop.permute.xlu0 %1723
      %1725 = vrot.lane.b32.xlu0 %v1655, 48
      %v1726 = vpop.permute.xlu0 %1725
      %1727 = vrot.lane.b32.xlu0 %v1656, 48
      %v1728 = vpop.permute.xlu0 %1727
      %vm1753 = vcmask 454016
      %1754 = vst.msk [vmem:[#allocation4] sm:$0xf] %vm1753, %v1682
      %1755 = vst.msk [vmem:[#allocation4 + $0x4] sm:$0xf] %vm1753, %v1684
      %1756 = vst.msk [vmem:[#allocation4 + $0x8] sm:$0xf] %vm1753, %v1686
      %1757 = vst.msk [vmem:[#allocation4 + $0xc] sm:$0xf] %vm1753, %v1688
      %1758 = vst.msk [vmem:[#allocation4 + $0x10] sm:$0xf] %vm1753, %v1690
      %1759 = vst.msk [vmem:[#allocation4 + $0x14] sm:$0xf] %vm1753, %v1692
      %1760 = vst.msk [vmem:[#allocation4 + $0x18] sm:$0xf] %vm1753, %v1694
      %1761 = vst.msk [vmem:[#allocation4 + $0x1c] sm:$0xf] %vm1753, %v1696
      %1762 = vst.msk [vmem:[#allocation4 + $0x20] sm:$0xf] %vm1753, %v1698
      %1763 = vst.msk [vmem:[#allocation4 + $0x24] sm:$0xf] %vm1753, %v1700
      %1764 = vst.msk [vmem:[#allocation4 + $0x28] sm:$0xf] %vm1753, %v1702
      %1765 = vst.msk [vmem:[#allocation4 + $0x2c] sm:$0xf] %vm1753, %v1704
      %1766 = vst.msk [vmem:[#allocation4 + $0x30] sm:$0xf] %vm1753, %v1706
      %1767 = vst.msk [vmem:[#allocation4 + $0x34] sm:$0xf] %vm1753, %v1708
      %1768 = vst.msk [vmem:[#allocation4 + $0x38] sm:$0xf] %vm1753, %v1710
      %1769 = vst.msk [vmem:[#allocation4 + $0x3c] sm:$0xf] %vm1753, %v1712
      %1770 = vst.msk [vmem:[#allocation4 + $0x40] sm:$0xf] %vm1753, %v1714
      %1771 = vst.msk [vmem:[#allocation4 + $0x44] sm:$0xf] %vm1753, %v1716
      %1772 = vst.msk [vmem:[#allocation4 + $0x48] sm:$0xf] %vm1753, %v1718
      %1773 = vst.msk [vmem:[#allocation4 + $0x4c] sm:$0xf] %vm1753, %v1720
      %1774 = vst.msk [vmem:[#allocation4 + $0x50] sm:$0xf] %vm1753, %v1722
      %1775 = vst.msk [vmem:[#allocation4 + $0x54] sm:$0xf] %vm1753, %v1724
      %1776 = vst.msk [vmem:[#allocation4 + $0x58] sm:$0xf] %vm1753, %v1726
      %1777 = vst.msk [vmem:[#allocation4 + $0x5c] sm:$0xf] %vm1753, %v1728
      %v1778 = vld [vmem:[%s1608 + $0x1] sm:$0xff]
      %v1779 = vld [vmem:[%s1608 + $0x9] sm:$0xff]
      %v1780 = vld [vmem:[%s1608 + $0x19] sm:$0xff]
      %v1781 = vld [vmem:[%s1608 + $0x21] sm:$0xff]
      %v1782 = vld [vmem:[%s1608 + $0x31] sm:$0xff]
      %v1783 = vld [vmem:[%s1608 + $0x39] sm:$0xff]
      %v1784 = vld [vmem:[%s1608 + $0x49] sm:$0xff]
      %v1785 = vld [vmem:[%s1608 + $0x51] sm:$0xff]
      %v1786 = vld [vmem:[%s1608 + $0x61] sm:$0xff]
      %v1787 = vld [vmem:[%s1608 + $0x69] sm:$0xff]
      %v1788 = vld [vmem:[%s1608 + $0x79] sm:$0xff]
      %v1789 = vld [vmem:[%s1608 + $0x81] sm:$0xff]
      %v1790 = vld [vmem:[%s1608 + $0x91] sm:$0xff]
      %v1791 = vld [vmem:[%s1608 + $0x99] sm:$0xff]
      %v1792 = vld [vmem:[%s1608 + $0xa9] sm:$0xff]
      %v1793 = vld [vmem:[%s1608 + $0xb1] sm:$0xff]
      %v1794 = vld [vmem:[%s1608 + $0xc1] sm:$0xff]
      %v1795 = vld [vmem:[%s1608 + $0xc9] sm:$0xff]
      %v1796 = vld [vmem:[%s1608 + $0xd9] sm:$0xff]
      %v1797 = vld [vmem:[%s1608 + $0xe1] sm:$0xff]
      %v1798 = vld [vmem:[%s1608 + $0xf1] sm:$0xff]
      %v1799 = vld [vmem:[%s1608 + $0xf9] sm:$0xff]
      %v1800 = vld [vmem:[%s1608 + $0x109] sm:$0xff]
      %v1801 = vld [vmem:[%s1608 + $0x111] sm:$0xff]
      %v1802 = vpack.c.bf16 %v1778, %v1778
      %v1803 = vpack.c.bf16 %v1779, %v1779
      %v1804 = vpack.c.bf16 %v1780, %v1780
      %v1805 = vpack.c.bf16 %v1781, %v1781
      %v1806 = vpack.c.bf16 %v1782, %v1782
      %v1807 = vpack.c.bf16 %v1783, %v1783
      %v1808 = vpack.c.bf16 %v1784, %v1784
      %v1809 = vpack.c.bf16 %v1785, %v1785
      %v1810 = vpack.c.bf16 %v1786, %v1786
      %v1811 = vpack.c.bf16 %v1787, %v1787
      %v1812 = vpack.c.bf16 %v1788, %v1788
      %v1813 = vpack.c.bf16 %v1789, %v1789
      %v1814 = vpack.c.bf16 %v1790, %v1790
      %v1815 = vpack.c.bf16 %v1791, %v1791
      %v1816 = vpack.c.bf16 %v1792, %v1792
      %v1817 = vpack.c.bf16 %v1793, %v1793
      %v1818 = vpack.c.bf16 %v1794, %v1794
      %v1819 = vpack.c.bf16 %v1795, %v1795
      %v1820 = vpack.c.bf16 %v1796, %v1796
      %v1821 = vpack.c.bf16 %v1797, %v1797
      %v1822 = vpack.c.bf16 %v1798, %v1798
      %v1823 = vpack.c.bf16 %v1799, %v1799
      %v1824 = vpack.c.bf16 %v1800, %v1800
      %v1825 = vpack.c.bf16 %v1801, %v1801
      %1850 = vrot.lane.b32.xlu0 %v1802, 56
      %v1851 = vpop.permute.xlu0 %1850
      %1852 = vrot.lane.b32.xlu0 %v1803, 56
      %v1853 = vpop.permute.xlu0 %1852
      %1854 = vrot.lane.b32.xlu0 %v1804, 56
      %v1855 = vpop.permute.xlu0 %1854
      %1856 = vrot.lane.b32.xlu0 %v1805, 56
      %v1857 = vpop.permute.xlu0 %1856
      %1858 = vrot.lane.b32.xlu0 %v1806, 56
      %v1859 = vpop.permute.xlu0 %1858
      %1860 = vrot.lane.b32.xlu0 %v1807, 56
      %v1861 = vpop.permute.xlu0 %1860
      %1862 = vrot.lane.b32.xlu0 %v1808, 56
      %v1863 = vpop.permute.xlu0 %1862
      %1864 = vrot.lane.b32.xlu0 %v1809, 56
      %v1865 = vpop.permute.xlu0 %1864
      %1866 = vrot.lane.b32.xlu0 %v1810, 56
      %v1867 = vpop.permute.xlu0 %1866
      %1868 = vrot.lane.b32.xlu0 %v1811, 56
      %v1869 = vpop.permute.xlu0 %1868
      %1870 = vrot.lane.b32.xlu0 %v1812, 56
      %v1871 = vpop.permute.xlu0 %1870
      %1872 = vrot.lane.b32.xlu0 %v1813, 56
      %v1873 = vpop.permute.xlu0 %1872
      %1874 = vrot.lane.b32.xlu0 %v1814, 56
      %v1875 = vpop.permute.xlu0 %1874
      %1876 = vrot.lane.b32.xlu0 %v1815, 56
      %v1877 = vpop.permute.xlu0 %1876
      %1878 = vrot.lane.b32.xlu0 %v1816, 56
      %v1879 = vpop.permute.xlu0 %1878
      %1880 = vrot.lane.b32.xlu0 %v1817, 56
      %v1881 = vpop.permute.xlu0 %1880
      %1882 = vrot.lane.b32.xlu0 %v1818, 56
      %v1883 = vpop.permute.xlu0 %1882
      %1884 = vrot.lane.b32.xlu0 %v1819, 56
      %v1885 = vpop.permute.xlu0 %1884
      %1886 = vrot.lane.b32.xlu0 %v1820, 56
      %v1887 = vpop.permute.xlu0 %1886
      %1888 = vrot.lane.b32.xlu0 %v1821, 56
      %v1889 = vpop.permute.xlu0 %1888
      %1890 = vrot.lane.b32.xlu0 %v1822, 56
      %v1891 = vpop.permute.xlu0 %1890
      %1892 = vrot.lane.b32.xlu0 %v1823, 56
      %v1893 = vpop.permute.xlu0 %1892
      %1894 = vrot.lane.b32.xlu0 %v1824, 56
      %v1895 = vpop.permute.xlu0 %1894
      %1896 = vrot.lane.b32.xlu0 %v1825, 56
      %v1897 = vpop.permute.xlu0 %1896
      %vm1922 = vcmask 519616
      %1923 = vst.msk [vmem:[#allocation4] sm:$0xf] %vm1922, %v1851
      %1924 = vst.msk [vmem:[#allocation4 + $0x4] sm:$0xf] %vm1922, %v1853
      %1925 = vst.msk [vmem:[#allocation4 + $0x8] sm:$0xf] %vm1922, %v1855
      %1926 = vst.msk [vmem:[#allocation4 + $0xc] sm:$0xf] %vm1922, %v1857
      %1927 = vst.msk [vmem:[#allocation4 + $0x10] sm:$0xf] %vm1922, %v1859
      %1928 = vst.msk [vmem:[#allocation4 + $0x14] sm:$0xf] %vm1922, %v1861
      %1929 = vst.msk [vmem:[#allocation4 + $0x18] sm:$0xf] %vm1922, %v1863
      %1930 = vst.msk [vmem:[#allocation4 + $0x1c] sm:$0xf] %vm1922, %v1865
      %1931 = vst.msk [vmem:[#allocation4 + $0x20] sm:$0xf] %vm1922, %v1867
      %1932 = vst.msk [vmem:[#allocation4 + $0x24] sm:$0xf] %vm1922, %v1869
      %1933 = vst.msk [vmem:[#allocation4 + $0x28] sm:$0xf] %vm1922, %v1871
      %1934 = vst.msk [vmem:[#allocation4 + $0x2c] sm:$0xf] %vm1922, %v1873
      %1935 = vst.msk [vmem:[#allocation4 + $0x30] sm:$0xf] %vm1922, %v1875
      %1936 = vst.msk [vmem:[#allocation4 + $0x34] sm:$0xf] %vm1922, %v1877
      %1937 = vst.msk [vmem:[#allocation4 + $0x38] sm:$0xf] %vm1922, %v1879
      %1938 = vst.msk [vmem:[#allocation4 + $0x3c] sm:$0xf] %vm1922, %v1881
      %1939 = vst.msk [vmem:[#allocation4 + $0x40] sm:$0xf] %vm1922, %v1883
      %1940 = vst.msk [vmem:[#allocation4 + $0x44] sm:$0xf] %vm1922, %v1885
      %1941 = vst.msk [vmem:[#allocation4 + $0x48] sm:$0xf] %vm1922, %v1887
      %1942 = vst.msk [vmem:[#allocation4 + $0x4c] sm:$0xf] %vm1922, %v1889
      %1943 = vst.msk [vmem:[#allocation4 + $0x50] sm:$0xf] %vm1922, %v1891
      %1944 = vst.msk [vmem:[#allocation4 + $0x54] sm:$0xf] %vm1922, %v1893
      %1945 = vst.msk [vmem:[#allocation4 + $0x58] sm:$0xf] %vm1922, %v1895
      %1946 = vst.msk [vmem:[#allocation4 + $0x5c] sm:$0xf] %vm1922, %v1897
      %v1947 = vld [vmem:[%s1608 + $0x2] sm:$0xff]
      %v1948 = vld [vmem:[%s1608 + $0xa] sm:$0xff]
      %v1949 = vld [vmem:[%s1608 + $0x1a] sm:$0xff]
      %v1950 = vld [vmem:[%s1608 + $0x22] sm:$0xff]
      %v1951 = vld [vmem:[%s1608 + $0x32] sm:$0xff]
      %v1952 = vld [vmem:[%s1608 + $0x3a] sm:$0xff]
      %v1953 = vld [vmem:[%s1608 + $0x4a] sm:$0xff]
      %v1954 = vld [vmem:[%s1608 + $0x52] sm:$0xff]
      %v1955 = vld [vmem:[%s1608 + $0x62] sm:$0xff]
      %v1956 = vld [vmem:[%s1608 + $0x6a] sm:$0xff]
      %v1957 = vld [vmem:[%s1608 + $0x7a] sm:$0xff]
      %v1958 = vld [vmem:[%s1608 + $0x82] sm:$0xff]
      %v1959 = vld [vmem:[%s1608 + $0x92] sm:$0xff]
      %v1960 = vld [vmem:[%s1608 + $0x9a] sm:$0xff]
      %v1961 = vld [vmem:[%s1608 + $0xaa] sm:$0xff]
      %v1962 = vld [vmem:[%s1608 + $0xb2] sm:$0xff]
      %v1963 = vld [vmem:[%s1608 + $0xc2] sm:$0xff]
      %v1964 = vld [vmem:[%s1608 + $0xca] sm:$0xff]
      %v1965 = vld [vmem:[%s1608 + $0xda] sm:$0xff]
      %v1966 = vld [vmem:[%s1608 + $0xe2] sm:$0xff]
      %v1967 = vld [vmem:[%s1608 + $0xf2] sm:$0xff]
      %v1968 = vld [vmem:[%s1608 + $0xfa] sm:$0xff]
      %v1969 = vld [vmem:[%s1608 + $0x10a] sm:$0xff]
      %v1970 = vld [vmem:[%s1608 + $0x112] sm:$0xff]
      %v1971 = vpack.c.bf16 %v1947, %v1947
      %v1972 = vpack.c.bf16 %v1948, %v1948
      %v1973 = vpack.c.bf16 %v1949, %v1949
      %v1974 = vpack.c.bf16 %v1950, %v1950
      %v1975 = vpack.c.bf16 %v1951, %v1951
      %v1976 = vpack.c.bf16 %v1952, %v1952
      %v1977 = vpack.c.bf16 %v1953, %v1953
      %v1978 = vpack.c.bf16 %v1954, %v1954
      %v1979 = vpack.c.bf16 %v1955, %v1955
      %v1980 = vpack.c.bf16 %v1956, %v1956
      %v1981 = vpack.c.bf16 %v1957, %v1957
      %v1982 = vpack.c.bf16 %v1958, %v1958
      %v1983 = vpack.c.bf16 %v1959, %v1959
      %v1984 = vpack.c.bf16 %v1960, %v1960
      %v1985 = vpack.c.bf16 %v1961, %v1961
      %v1986 = vpack.c.bf16 %v1962, %v1962
      %v1987 = vpack.c.bf16 %v1963, %v1963
      %v1988 = vpack.c.bf16 %v1964, %v1964
      %v1989 = vpack.c.bf16 %v1965, %v1965
      %v1990 = vpack.c.bf16 %v1966, %v1966
      %v1991 = vpack.c.bf16 %v1967, %v1967
      %v1992 = vpack.c.bf16 %v1968, %v1968
      %v1993 = vpack.c.bf16 %v1969, %v1969
      %v1994 = vpack.c.bf16 %v1970, %v1970
      %2019 = vrot.lane.b32.xlu0 %v1971, 64
      %v2020 = vpop.permute.xlu0 %2019
      %2021 = vrot.lane.b32.xlu0 %v1972, 64
      %v2022 = vpop.permute.xlu0 %2021
      %2023 = vrot.lane.b32.xlu0 %v1973, 64
      %v2024 = vpop.permute.xlu0 %2023
      %2025 = vrot.lane.b32.xlu0 %v1974, 64
      %v2026 = vpop.permute.xlu0 %2025
      %2027 = vrot.lane.b32.xlu0 %v1975, 64
      %v2028 = vpop.permute.xlu0 %2027
      %2029 = vrot.lane.b32.xlu0 %v1976, 64
      %v2030 = vpop.permute.xlu0 %2029
      %2031 = vrot.lane.b32.xlu0 %v1977, 64
      %v2032 = vpop.permute.xlu0 %2031
      %2033 = vrot.lane.b32.xlu0 %v1978, 64
      %v2034 = vpop.permute.xlu0 %2033
      %2035 = vrot.lane.b32.xlu0 %v1979, 64
      %v2036 = vpop.permute.xlu0 %2035
      %2037 = vrot.lane.b32.xlu0 %v1980, 64
      %v2038 = vpop.permute.xlu0 %2037
      %2039 = vrot.lane.b32.xlu0 %v1981, 64
      %v2040 = vpop.permute.xlu0 %2039
      %2041 = vrot.lane.b32.xlu0 %v1982, 64
      %v2042 = vpop.permute.xlu0 %2041
      %2043 = vrot.lane.b32.xlu0 %v1983, 64
      %v2044 = vpop.permute.xlu0 %2043
      %2045 = vrot.lane.b32.xlu0 %v1984, 64
      %v2046 = vpop.permute.xlu0 %2045
      %2047 = vrot.lane.b32.xlu0 %v1985, 64
      %v2048 = vpop.permute.xlu0 %2047
      %2049 = vrot.lane.b32.xlu0 %v1986, 64
      %v2050 = vpop.permute.xlu0 %2049
      %2051 = vrot.lane.b32.xlu0 %v1987, 64
      %v2052 = vpop.permute.xlu0 %2051
      %2053 = vrot.lane.b32.xlu0 %v1988, 64
      %v2054 = vpop.permute.xlu0 %2053
      %2055 = vrot.lane.b32.xlu0 %v1989, 64
      %v2056 = vpop.permute.xlu0 %2055
      %2057 = vrot.lane.b32.xlu0 %v1990, 64
      %v2058 = vpop.permute.xlu0 %2057
      %2059 = vrot.lane.b32.xlu0 %v1991, 64
      %v2060 = vpop.permute.xlu0 %2059
      %2061 = vrot.lane.b32.xlu0 %v1992, 64
      %v2062 = vpop.permute.xlu0 %2061
      %2063 = vrot.lane.b32.xlu0 %v1993, 64
      %v2064 = vpop.permute.xlu0 %2063
      %2065 = vrot.lane.b32.xlu0 %v1994, 64
      %v2066 = vpop.permute.xlu0 %2065
      %vm2091 = vcmask 585216
      %2092 = vst.msk [vmem:[#allocation4] sm:$0xf] %vm2091, %v2020
      %2093 = vst.msk [vmem:[#allocation4 + $0x4] sm:$0xf] %vm2091, %v2022
      %2094 = vst.msk [vmem:[#allocation4 + $0x8] sm:$0xf] %vm2091, %v2024
      %2095 = vst.msk [vmem:[#allocation4 + $0xc] sm:$0xf] %vm2091, %v2026
      %2096 = vst.msk [vmem:[#allocation4 + $0x10] sm:$0xf] %vm2091, %v2028
      %2097 = vst.msk [vmem:[#allocation4 + $0x14] sm:$0xf] %vm2091, %v2030
      %2098 = vst.msk [vmem:[#allocation4 + $0x18] sm:$0xf] %vm2091, %v2032
      %2099 = vst.msk [vmem:[#allocation4 + $0x1c] sm:$0xf] %vm2091, %v2034
      %2100 = vst.msk [vmem:[#allocation4 + $0x20] sm:$0xf] %vm2091, %v2036
      %2101 = vst.msk [vmem:[#allocation4 + $0x24] sm:$0xf] %vm2091, %v2038
      %2102 = vst.msk [vmem:[#allocation4 + $0x28] sm:$0xf] %vm2091, %v2040
      %2103 = vst.msk [vmem:[#allocation4 + $0x2c] sm:$0xf] %vm2091, %v2042
      %2104 = vst.msk [vmem:[#allocation4 + $0x30] sm:$0xf] %vm2091, %v2044
      %2105 = vst.msk [vmem:[#allocation4 + $0x34] sm:$0xf] %vm2091, %v2046
      %2106 = vst.msk [vmem:[#allocation4 + $0x38] sm:$0xf] %vm2091, %v2048
      %2107 = vst.msk [vmem:[#allocation4 + $0x3c] sm:$0xf] %vm2091, %v2050
      %2108 = vst.msk [vmem:[#allocation4 + $0x40] sm:$0xf] %vm2091, %v2052
      %2109 = vst.msk [vmem:[#allocation4 + $0x44] sm:$0xf] %vm2091, %v2054
      %2110 = vst.msk [vmem:[#allocation4 + $0x48] sm:$0xf] %vm2091, %v2056
      %2111 = vst.msk [vmem:[#allocation4 + $0x4c] sm:$0xf] %vm2091, %v2058
      %2112 = vst.msk [vmem:[#allocation4 + $0x50] sm:$0xf] %vm2091, %v2060
      %2113 = vst.msk [vmem:[#allocation4 + $0x54] sm:$0xf] %vm2091, %v2062
      %2114 = vst.msk [vmem:[#allocation4 + $0x58] sm:$0xf] %vm2091, %v2064
      %2115 = vst.msk [vmem:[#allocation4 + $0x5c] sm:$0xf] %vm2091, %v2066
      %v2116 = vld [vmem:[#allocation4] sm:$0xf]
      %v2117 = vld [vmem:[#allocation4 + $0x4] sm:$0xf]
      %v2118 = vld [vmem:[#allocation4 + $0x8] sm:$0xf]
      %v2119 = vld [vmem:[#allocation4 + $0xc] sm:$0xf]
      %v2120 = vld [vmem:[#allocation4 + $0x10] sm:$0xf]
      %v2121 = vld [vmem:[#allocation4 + $0x14] sm:$0xf]
      %v2122 = vld [vmem:[#allocation4 + $0x18] sm:$0xf]
      %v2123 = vld [vmem:[#allocation4 + $0x1c] sm:$0xf]
      %v2124 = vld [vmem:[#allocation4 + $0x20] sm:$0xf]
      %v2125 = vld [vmem:[#allocation4 + $0x24] sm:$0xf]
      %v2126 = vld [vmem:[#allocation4 + $0x28] sm:$0xf]
      %v2127 = vld [vmem:[#allocation4 + $0x2c] sm:$0xf]
      %v2128 = vld [vmem:[#allocation4 + $0x30] sm:$0xf]
      %v2129 = vld [vmem:[#allocation4 + $0x34] sm:$0xf]
      %v2130 = vld [vmem:[#allocation4 + $0x38] sm:$0xf]
      %v2131 = vld [vmem:[#allocation4 + $0x3c] sm:$0xf]
      %v2132 = vld [vmem:[#allocation4 + $0x40] sm:$0xf]
      %v2133 = vld [vmem:[#allocation4 + $0x44] sm:$0xf]
      %v2134 = vld [vmem:[#allocation4 + $0x48] sm:$0xf]
      %v2135 = vld [vmem:[#allocation4 + $0x4c] sm:$0xf]
      %v2136 = vld [vmem:[#allocation4 + $0x50] sm:$0xf]
      %v2137 = vld [vmem:[#allocation4 + $0x54] sm:$0xf]
      %v2138 = vld [vmem:[#allocation4 + $0x58] sm:$0xf]
      %v2139 = vld [vmem:[#allocation4 + $0x5c] sm:$0xf]
      %v2140 = vld [vmem:[%s3] sm:$0xf]
      %v2141 = vld [vmem:[%s3 + $0x4] sm:$0xf]
      %v2142 = vld [vmem:[%s3 + $0x8] sm:$0xf]
      %v2143 = vld [vmem:[%s3 + $0xc] sm:$0xf]
      %v2144 = vld [vmem:[%s3 + $0x10] sm:$0xf]
      %v2145 = vld [vmem:[%s3 + $0x14] sm:$0xf]
      %v2146 = vld [vmem:[%s3 + $0x18] sm:$0xf]
      %v2147 = vld [vmem:[%s3 + $0x1c] sm:$0xf]
      %v2148 = vld [vmem:[%s3 + $0x20] sm:$0xf]
      %v2149 = vld [vmem:[%s4] sm:$0x1]
      %v2151 = vperm.slane %v2149, 0
      %v2177 = vunpack.c.l.b16 %v2116
      %v2178 = vunpack.c.l.b16 %v2117
      %v2179 = vunpack.c.l.b16 %v2118
      %v2180 = vunpack.c.l.b16 %v2119
      %v2181 = vunpack.c.l.b16 %v2120
      %v2182 = vunpack.c.l.b16 %v2121
      %v2183 = vunpack.c.l.b16 %v2122
      %v2184 = vunpack.c.l.b16 %v2123
      %v2185 = vunpack.c.l.b16 %v2124
      %v2186 = vunpack.c.l.b16 %v2125
      %v2187 = vunpack.c.l.b16 %v2126
      %v2188 = vunpack.c.l.b16 %v2127
      %v2189 = vunpack.c.l.b16 %v2128
      %v2190 = vunpack.c.l.b16 %v2129
      %v2191 = vunpack.c.l.b16 %v2130
      %v2192 = vunpack.c.l.b16 %v2131
      %v2193 = vunpack.c.l.b16 %v2132
      %v2194 = vunpack.c.l.b16 %v2133
      %v2195 = vunpack.c.l.b16 %v2134
      %v2196 = vunpack.c.l.b16 %v2135
      %v2197 = vunpack.c.l.b16 %v2136
      %v2198 = vunpack.c.l.b16 %v2137
      %v2199 = vunpack.c.l.b16 %v2138
      %v2200 = vunpack.c.l.b16 %v2139
      %v2201 = vpack.c.b16 %v2178, %v2177
      %v2202 = vpack.c.b16 %v2180, %v2179
      %v2203 = vpack.c.b16 %v2182, %v2181
      %v2204 = vpack.c.b16 %v2184, %v2183
      %v2205 = vpack.c.b16 %v2186, %v2185
      %v2206 = vpack.c.b16 %v2188, %v2187
      %v2207 = vpack.c.b16 %v2190, %v2189
      %v2208 = vpack.c.b16 %v2192, %v2191
      %v2209 = vpack.c.b16 %v2194, %v2193
      %v2210 = vpack.c.b16 %v2196, %v2195
      %v2211 = vpack.c.b16 %v2198, %v2197
      %v2212 = vpack.c.b16 %v2200, %v2199
      %v2222 = vunpack.c.l.b16 %v2140
      %v2223 = vunpack.c.l.b16 %v2141
      %v2224 = vunpack.c.l.b16 %v2142
      %v2225 = vunpack.c.l.b16 %v2143
      %v2226 = vunpack.c.l.b16 %v2144
      %v2227 = vunpack.c.l.b16 %v2145
      %v2228 = vunpack.c.l.b16 %v2146
      %v2229 = vunpack.c.l.b16 %v2147
      %v2230 = vunpack.c.l.b16 %v2148
      %v2231 = vpack.c.b16 %v2223, %v2222
      %v2232 = vpack.c.b16 %v2225, %v2224
      %v2233 = vpack.c.b16 %v2227, %v2226
      %v2234 = vpack.c.b16 %v2229, %v2228
      %v2235 = vpack.c.b16 %v2230, %v2230
      %vm2240 = vcmask 588800
      %v2242 = vsel %vm2240, %v2201, 0
      %v2245 = vsel %vm2240, %v2202, 0
      %v2248 = vsel %vm2240, %v2203, 0
      %v2251 = vsel %vm2240, %v2204, 0
      %v2254 = vsel %vm2240, %v2205, 0
      %v2257 = vsel %vm2240, %v2206, 0
      %v2260 = vsel %vm2240, %v2207, 0
      %v2263 = vsel %vm2240, %v2208, 0
      %v2266 = vsel %vm2240, %v2209, 0
      %v2269 = vsel %vm2240, %v2210, 0
      %v2272 = vsel %vm2240, %v2211, 0
      %v2275 = vsel %vm2240, %v2212, 0
      %vm2277 = vcmask 1043456
      %v2279 = vsel %vm2277, %v2235, 0
      %2281 = vmatpush.bf16.msra.mxu0 0
      %2282 = vmatpush.bf16.msra.mxu0 0
      %2283 = vmatpush.bf16.msra.mxu0 0
      %2284 = vmatpush.bf16.msra.mxu0 %v2279
      %2285 = vmatpush.bf16.msra.mxu0 %v2234
      %2286 = vmatpush.bf16.msra.mxu0 %v2233
      %2287 = vmatpush.bf16.msra.mxu0 %v2232
      %2288 = vmatpush.bf16.msra.mxu0 %v2231
      %2289 = vmatmul.bf16.gmra.mxu0 %v2242
      %v2290 = vpop.f32.mrf.mxu0
      %v2291 = vadd.f32 %v2151, %v2290
      %v2292 = vpop.f32.mrf.mxu0
      %v2293 = vadd.f32 %v2151, %v2292
      %2294 = vmatmul.bf16.gmra.mxu0 %v2245
      %v2295 = vpop.f32.mrf.mxu0
      %v2296 = vadd.f32 %v2151, %v2295
      %v2297 = vpop.f32.mrf.mxu0
      %v2298 = vadd.f32 %v2151, %v2297
      %2299 = vmatmul.bf16.gmra.mxu0 %v2248
      %v2300 = vpop.f32.mrf.mxu0
      %v2301 = vadd.f32 %v2151, %v2300
      %v2302 = vpop.f32.mrf.mxu0
      %v2303 = vadd.f32 %v2151, %v2302
      %2304 = vmatmul.bf16.gmra.mxu0 %v2251
      %v2305 = vpop.f32.mrf.mxu0
      %v2306 = vadd.f32 %v2151, %v2305
      %v2307 = vpop.f32.mrf.mxu0
      %v2308 = vadd.f32 %v2151, %v2307
      %2309 = vmatmul.bf16.gmra.mxu0 %v2254
      %v2310 = vpop.f32.mrf.mxu0
      %v2311 = vadd.f32 %v2151, %v2310
      %v2312 = vpop.f32.mrf.mxu0
      %v2313 = vadd.f32 %v2151, %v2312
      %2314 = vmatmul.bf16.gmra.mxu0 %v2257
      %v2315 = vpop.f32.mrf.mxu0
      %v2316 = vadd.f32 %v2151, %v2315
      %v2317 = vpop.f32.mrf.mxu0
      %v2318 = vadd.f32 %v2151, %v2317
      %2319 = vmatmul.bf16.gmra.mxu0 %v2260
      %v2320 = vpop.f32.mrf.mxu0
      %v2321 = vadd.f32 %v2151, %v2320
      %v2322 = vpop.f32.mrf.mxu0
      %v2323 = vadd.f32 %v2151, %v2322
      %2324 = vmatmul.bf16.gmra.mxu0 %v2263
      %v2325 = vpop.f32.mrf.mxu0
      %v2326 = vadd.f32 %v2151, %v2325
      %v2327 = vpop.f32.mrf.mxu0
      %v2328 = vadd.f32 %v2151, %v2327
      %2329 = vmatmul.bf16.gmra.mxu0 %v2266
      %v2330 = vpop.f32.mrf.mxu0
      %v2331 = vadd.f32 %v2151, %v2330
      %v2332 = vpop.f32.mrf.mxu0
      %v2333 = vadd.f32 %v2151, %v2332
      %2334 = vmatmul.bf16.gmra.mxu0 %v2269
      %v2335 = vpop.f32.mrf.mxu0
      %v2336 = vadd.f32 %v2151, %v2335
      %v2337 = vpop.f32.mrf.mxu0
      %v2338 = vadd.f32 %v2151, %v2337
      %2339 = vmatmul.bf16.gmra.mxu0 %v2272
      %v2340 = vpop.f32.mrf.mxu0
      %v2341 = vadd.f32 %v2151, %v2340
      %v2342 = vpop.f32.mrf.mxu0
      %v2343 = vadd.f32 %v2151, %v2342
      %2344 = vmatmul.bf16.gmra.mxu0 %v2275
      %v2345 = vpop.f32.mrf.mxu0
      %v2346 = vadd.f32 %v2151, %v2345
      %v2347 = vpop.f32.mrf.mxu0
      %v2348 = vadd.f32 %v2151, %v2347
      %2349 = vdwg.mxu0
      %v2350 = vmax.f32 %v2291, 0.0
      %v2351 = vmax.f32 %v2293, 0.0
      %v2352 = vmax.f32 %v2296, 0.0
      %v2353 = vmax.f32 %v2298, 0.0
      %v2354 = vmax.f32 %v2301, 0.0
      %v2355 = vmax.f32 %v2303, 0.0
      %v2356 = vmax.f32 %v2306, 0.0
      %v2357 = vmax.f32 %v2308, 0.0
      %v2358 = vmax.f32 %v2311, 0.0
      %v2359 = vmax.f32 %v2313, 0.0
      %v2360 = vmax.f32 %v2316, 0.0
      %v2361 = vmax.f32 %v2318, 0.0
      %v2362 = vmax.f32 %v2321, 0.0
      %v2363 = vmax.f32 %v2323, 0.0
      %v2364 = vmax.f32 %v2326, 0.0
      %v2365 = vmax.f32 %v2328, 0.0
      %v2366 = vmax.f32 %v2331, 0.0
      %v2367 = vmax.f32 %v2333, 0.0
      %v2368 = vmax.f32 %v2336, 0.0
      %v2369 = vmax.f32 %v2338, 0.0
      %v2370 = vmax.f32 %v2341, 0.0
      %v2371 = vmax.f32 %v2343, 0.0
      %v2372 = vmax.f32 %v2346, 0.0
      %v2373 = vmax.f32 %v2348, 0.0
      %v2374 = vadd.s32 %v507, 3
      %v2375 = vsub.s32 %v507, 2
      %v2376 = vsub.s32 %v508, 2
      %v2377 = vsub.s32 %v2374, 2
      %v2378 = vsub.s32 %v510, 2
      %v2379 = vsub.s32 %v511, 2
      %v2380 = vsub.s32 %v512, 2
      %v2381 = vsub.s32 %v513, 2
      %v2382 = vsub.s32 %v514, 2
      %v2383 = vsub.s32 %v515, 2
      %v2384 = vsub.s32 %v516, 2
      %v2385 = vsub.s32 %v517, 2
      %vm2386 = vcmp.ge.s32.totalorder %v2375, 0
      %vm2387 = vcmp.ge.s32.totalorder %v2376, 0
      %vm2388 = vcmp.ge.s32.totalorder %v2377, 0
      %vm2389 = vcmp.ge.s32.totalorder %v2378, 0
      %vm2390 = vcmp.ge.s32.totalorder %v2379, 0
      %vm2391 = vcmp.ge.s32.totalorder %v2380, 0
      %vm2392 = vcmp.ge.s32.totalorder %v2381, 0
      %vm2393 = vcmp.ge.s32.totalorder %v2382, 0
      %vm2394 = vcmp.ge.s32.totalorder %v2383, 0
      %vm2395 = vcmp.ge.s32.totalorder %v2384, 0
      %vm2396 = vcmp.ge.s32.totalorder %v2385, 0
      %vm2397 = vcmp.lt.s32.totalorder %v2375, 16
      %vm2398 = vcmp.lt.s32.totalorder %v2376, 16
      %vm2399 = vcmp.lt.s32.totalorder %v2377, 16
      %vm2400 = vcmp.lt.s32.totalorder %v2378, 16
      %vm2401 = vcmp.lt.s32.totalorder %v2379, 16
      %vm2402 = vcmp.lt.s32.totalorder %v2380, 16
      %vm2403 = vcmp.lt.s32.totalorder %v2381, 16
      %vm2404 = vcmp.lt.s32.totalorder %v2382, 16
      %vm2405 = vcmp.lt.s32.totalorder %v2383, 16
      %vm2406 = vcmp.lt.s32.totalorder %v2384, 16
      %vm2407 = vcmp.lt.s32.totalorder %v2385, 16
      %vm2408 = vmand %vm2386, %vm2397
      %vm2409 = vmand %vm2387, %vm2398
      %vm2410 = vmand %vm2388, %vm2399
      %vm2411 = vmand %vm2389, %vm2400
      %vm2412 = vmand %vm2390, %vm2401
      %vm2413 = vmand %vm2391, %vm2402
      %vm2414 = vmand %vm2392, %vm2403
      %vm2415 = vmand %vm2393, %vm2404
      %vm2416 = vmand %vm2394, %vm2405
      %vm2417 = vmand %vm2395, %vm2406
      %vm2418 = vmand %vm2396, %vm2407
      %v2419 = vsel %vm2408, 1, 0
      %v2420 = vsel %vm2409, 1, 0
      %v2421 = vsel %vm2410, 1, 0
      %v2422 = vsel %vm2411, 1, 0
      %v2423 = vsel %vm2412, 1, 0
      %v2424 = vsel %vm2413, 1, 0
      %v2425 = vsel %vm2414, 1, 0
      %v2426 = vsel %vm2415, 1, 0
      %v2427 = vsel %vm2416, 1, 0
      %v2428 = vsel %vm2417, 1, 0
      %v2429 = vsel %vm2418, 1, 0
      %vm2430 = vcmp.eq.s32.totalorder %v2419, 1
      %vm2431 = vcmp.eq.s32.totalorder %v2420, 1
      %vm2432 = vcmp.eq.s32.totalorder %v2421, 1
      %vm2433 = vcmp.eq.s32.totalorder %v2422, 1
      %vm2434 = vcmp.eq.s32.totalorder %v2423, 1
      %vm2435 = vcmp.eq.s32.totalorder %v2424, 1
      %vm2436 = vcmp.eq.s32.totalorder %v2425, 1
      %vm2437 = vcmp.eq.s32.totalorder %v2426, 1
      %vm2438 = vcmp.eq.s32.totalorder %v2427, 1
      %vm2439 = vcmp.eq.s32.totalorder %v2428, 1
      %vm2440 = vcmp.eq.s32.totalorder %v2429, 1
      %v2441 = vsel %vm2430, %v2350, 0.0
      %v2442 = vsel %vm2430, %v2351, 0.0
      %v2443 = vsel %vm2431, %v2352, 0.0
      %v2444 = vsel %vm2431, %v2353, 0.0
      %v2445 = vsel %vm592, %v2354, 0.0
      %v2446 = vsel %vm592, %v2355, 0.0
      %v2447 = vsel %vm2432, %v2356, 0.0
      %v2448 = vsel %vm2432, %v2357, 0.0
      %v2449 = vsel %vm2433, %v2358, 0.0
      %v2450 = vsel %vm2433, %v2359, 0.0
      %v2451 = vsel %vm2434, %v2360, 0.0
      %v2452 = vsel %vm2434, %v2361, 0.0
      %v2453 = vsel %vm2435, %v2362, 0.0
      %v2454 = vsel %vm2435, %v2363, 0.0
      %v2455 = vsel %vm2436, %v2364, 0.0
      %v2456 = vsel %vm2436, %v2365, 0.0
      %v2457 = vsel %vm2437, %v2366, 0.0
      %v2458 = vsel %vm2437, %v2367, 0.0
      %v2459 = vsel %vm2438, %v2368, 0.0
      %v2460 = vsel %vm2438, %v2369, 0.0
      %v2461 = vsel %vm2439, %v2370, 0.0
      %v2462 = vsel %vm2439, %v2371, 0.0
      %v2463 = vsel %vm2440, %v2372, 0.0
      %v2464 = vsel %vm2440, %v2373, 0.0
      %vm2465 = vcmask 58368
      %2466 = vst.msk [vmem:[#allocation3] sm:$0x3] %vm2465, 0.0
      %2467 = vst.msk [vmem:[#allocation3 + $0x18] sm:$0x3] %vm2465, 0.0
      %2468 = vst.msk [vmem:[#allocation3 + $0x30] sm:$0x3] %vm2465, 0.0
      %2469 = vst.msk [vmem:[#allocation3 + $0x48] sm:$0x3] %vm2465, 0.0
      %2470 = vst.msk [vmem:[#allocation3 + $0x60] sm:$0x3] %vm2465, 0.0
      %2471 = vst.msk [vmem:[#allocation3 + $0x78] sm:$0x3] %vm2465, 0.0
      %2472 = vst.msk [vmem:[#allocation3 + $0x90] sm:$0x3] %vm2465, 0.0
      %2473 = vst.msk [vmem:[#allocation3 + $0xa8] sm:$0x3] %vm2465, 0.0
      %2474 = vst.msk [vmem:[#allocation3 + $0xc0] sm:$0x3] %vm2465, 0.0
      %2475 = vst.msk [vmem:[#allocation3 + $0xd8] sm:$0x3] %vm2465, 0.0
      %2476 = vst.msk [vmem:[#allocation3 + $0xf0] sm:$0x3] %vm2465, 0.0
      %2477 = vst.msk [vmem:[#allocation3 + $0x108] sm:$0x3] %vm2465, 0.0
      %2478 = vst.msk [vmem:[#allocation3 + $0x12] sm:$0x3] %vm2465, 0.0
      %2479 = vst.msk [vmem:[#allocation3 + $0x2a] sm:$0x3] %vm2465, 0.0
      %2480 = vst.msk [vmem:[#allocation3 + $0x42] sm:$0x3] %vm2465, 0.0
      %2481 = vst.msk [vmem:[#allocation3 + $0x5a] sm:$0x3] %vm2465, 0.0
      %2482 = vst.msk [vmem:[#allocation3 + $0x72] sm:$0x3] %vm2465, 0.0
      %2483 = vst.msk [vmem:[#allocation3 + $0x8a] sm:$0x3] %vm2465, 0.0
      %2484 = vst.msk [vmem:[#allocation3 + $0xa2] sm:$0x3] %vm2465, 0.0
      %2485 = vst.msk [vmem:[#allocation3 + $0xba] sm:$0x3] %vm2465, 0.0
      %2486 = vst.msk [vmem:[#allocation3 + $0xd2] sm:$0x3] %vm2465, 0.0
      %2487 = vst.msk [vmem:[#allocation3 + $0xea] sm:$0x3] %vm2465, 0.0
      %2488 = vst.msk [vmem:[#allocation3 + $0x102] sm:$0x3] %vm2465, 0.0
      %2489 = vst.msk [vmem:[#allocation3 + $0x11a] sm:$0x3] %vm2465, 0.0
      %2490 = vst.msk [vmem:[#allocation3 + $0x2] sm:$0xff] %vm660, %v2441
      %2491 = vst.msk [vmem:[#allocation3 + $0xa] sm:$0xff] %vm660, %v2442
      %2492 = vst.msk [vmem:[#allocation3 + $0x1a] sm:$0xff] %vm660, %v2443
      %2493 = vst.msk [vmem:[#allocation3 + $0x22] sm:$0xff] %vm660, %v2444
      %2494 = vst.msk [vmem:[#allocation3 + $0x32] sm:$0xff] %vm660, %v2445
      %2495 = vst.msk [vmem:[#allocation3 + $0x3a] sm:$0xff] %vm660, %v2446
      %2496 = vst.msk [vmem:[#allocation3 + $0x4a] sm:$0xff] %vm660, %v2447
      %2497 = vst.msk [vmem:[#allocation3 + $0x52] sm:$0xff] %vm660, %v2448
      %2498 = vst.msk [vmem:[#allocation3 + $0x62] sm:$0xff] %vm660, %v2449
      %2499 = vst.msk [vmem:[#allocation3 + $0x6a] sm:$0xff] %vm660, %v2450
      %2500 = vst.msk [vmem:[#allocation3 + $0x7a] sm:$0xff] %vm660, %v2451
      %2501 = vst.msk [vmem:[#allocation3 + $0x82] sm:$0xff] %vm660, %v2452
      %2502 = vst.msk [vmem:[#allocation3 + $0x92] sm:$0xff] %vm660, %v2453
      %2503 = vst.msk [vmem:[#allocation3 + $0x9a] sm:$0xff] %vm660, %v2454
      %2504 = vst.msk [vmem:[#allocation3 + $0xaa] sm:$0xff] %vm660, %v2455
      %2505 = vst.msk [vmem:[#allocation3 + $0xb2] sm:$0xff] %vm660, %v2456
      %2506 = vst.msk [vmem:[#allocation3 + $0xc2] sm:$0xff] %vm660, %v2457
      %2507 = vst.msk [vmem:[#allocation3 + $0xca] sm:$0xff] %vm660, %v2458
      %2508 = vst.msk [vmem:[#allocation3 + $0xda] sm:$0xff] %vm660, %v2459
      %2509 = vst.msk [vmem:[#allocation3 + $0xe2] sm:$0xff] %vm660, %v2460
      %2510 = vst.msk [vmem:[#allocation3 + $0xf2] sm:$0xff] %vm660, %v2461
      %2511 = vst.msk [vmem:[#allocation3 + $0xfa] sm:$0xff] %vm660, %v2462
      %2512 = vst.msk [vmem:[#allocation3 + $0x10a] sm:$0xff] %vm660, %v2463
      %2513 = vst.msk [vmem:[#allocation3 + $0x112] sm:$0xff] %vm660, %v2464
      %v2514 = vld [vmem:[#allocation3] sm:$0xff]
      %v2515 = vld [vmem:[#allocation3 + $0x8] sm:$0xff]
      %v2516 = vld [vmem:[#allocation3 + $0x18] sm:$0xff]
      %v2517 = vld [vmem:[#allocation3 + $0x20] sm:$0xff]
      %v2518 = vld [vmem:[#allocation3 + $0x30] sm:$0xff]
      %v2519 = vld [vmem:[#allocation3 + $0x38] sm:$0xff]
      %v2520 = vld [vmem:[#allocation3 + $0x48] sm:$0xff]
      %v2521 = vld [vmem:[#allocation3 + $0x50] sm:$0xff]
      %v2522 = vld [vmem:[#allocation3 + $0x60] sm:$0xff]
      %v2523 = vld [vmem:[#allocation3 + $0x68] sm:$0xff]
      %v2524 = vld [vmem:[#allocation3 + $0x78] sm:$0xff]
      %v2525 = vld [vmem:[#allocation3 + $0x80] sm:$0xff]
      %v2526 = vld [vmem:[#allocation3 + $0x90] sm:$0xff]
      %v2527 = vld [vmem:[#allocation3 + $0x98] sm:$0xff]
      %v2528 = vld [vmem:[#allocation3 + $0xa8] sm:$0xff]
      %v2529 = vld [vmem:[#allocation3 + $0xb0] sm:$0xff]
      %v2530 = vpack.c.bf16 %v2514, %v2514
      %v2531 = vpack.c.bf16 %v2515, %v2515
      %v2532 = vpack.c.bf16 %v2516, %v2516
      %v2533 = vpack.c.bf16 %v2517, %v2517
      %v2534 = vpack.c.bf16 %v2518, %v2518
      %v2535 = vpack.c.bf16 %v2519, %v2519
      %v2536 = vpack.c.bf16 %v2520, %v2520
      %v2537 = vpack.c.bf16 %v2521, %v2521
      %v2538 = vpack.c.bf16 %v2522, %v2522
      %v2539 = vpack.c.bf16 %v2523, %v2523
      %v2540 = vpack.c.bf16 %v2524, %v2524
      %v2541 = vpack.c.bf16 %v2525, %v2525
      %v2542 = vpack.c.bf16 %v2526, %v2526
      %v2543 = vpack.c.bf16 %v2527, %v2527
      %v2544 = vpack.c.bf16 %v2528, %v2528
      %v2545 = vpack.c.bf16 %v2529, %v2529
      %2546 = vst.msk [vmem:[#allocation5] sm:$0xf] %vm737, %v2530
      %2547 = vst.msk [vmem:[#allocation5 + $0x4] sm:$0xf] %vm737, %v2531
      %2548 = vst.msk [vmem:[#allocation5 + $0x8] sm:$0xf] %vm737, %v2532
      %2549 = vst.msk [vmem:[#allocation5 + $0xc] sm:$0xf] %vm737, %v2533
      %2550 = vst.msk [vmem:[#allocation5 + $0x10] sm:$0xf] %vm737, %v2534
      %2551 = vst.msk [vmem:[#allocation5 + $0x14] sm:$0xf] %vm737, %v2535
      %2552 = vst.msk [vmem:[#allocation5 + $0x18] sm:$0xf] %vm737, %v2536
      %2553 = vst.msk [vmem:[#allocation5 + $0x1c] sm:$0xf] %vm737, %v2537
      %2554 = vst.msk [vmem:[#allocation5 + $0x20] sm:$0xf] %vm737, %v2538
      %2555 = vst.msk [vmem:[#allocation5 + $0x24] sm:$0xf] %vm737, %v2539
      %2556 = vst.msk [vmem:[#allocation5 + $0x28] sm:$0xf] %vm737, %v2540
      %2557 = vst.msk [vmem:[#allocation5 + $0x2c] sm:$0xf] %vm737, %v2541
      %2558 = vst.msk [vmem:[#allocation5 + $0x30] sm:$0xf] %vm737, %v2542
      %2559 = vst.msk [vmem:[#allocation5 + $0x34] sm:$0xf] %vm737, %v2543
      %2560 = vst.msk [vmem:[#allocation5 + $0x38] sm:$0xf] %vm737, %v2544
      %2561 = vst.msk [vmem:[#allocation5 + $0x3c] sm:$0xf] %vm737, %v2545
      %v2562 = vld [vmem:[#allocation3 + $0x2] sm:$0xff]
      %v2563 = vld [vmem:[#allocation3 + $0xa] sm:$0xff]
      %v2564 = vld [vmem:[#allocation3 + $0x1a] sm:$0xff]
      %v2565 = vld [vmem:[#allocation3 + $0x22] sm:$0xff]
      %v2566 = vld [vmem:[#allocation3 + $0x32] sm:$0xff]
      %v2567 = vld [vmem:[#allocation3 + $0x3a] sm:$0xff]
      %v2568 = vld [vmem:[#allocation3 + $0x4a] sm:$0xff]
      %v2569 = vld [vmem:[#allocation3 + $0x52] sm:$0xff]
      %v2570 = vld [vmem:[#allocation3 + $0x62] sm:$0xff]
      %v2571 = vld [vmem:[#allocation3 + $0x6a] sm:$0xff]
      %v2572 = vld [vmem:[#allocation3 + $0x7a] sm:$0xff]
      %v2573 = vld [vmem:[#allocation3 + $0x82] sm:$0xff]
      %v2574 = vld [vmem:[#allocation3 + $0x92] sm:$0xff]
      %v2575 = vld [vmem:[#allocation3 + $0x9a] sm:$0xff]
      %v2576 = vld [vmem:[#allocation3 + $0xaa] sm:$0xff]
      %v2577 = vld [vmem:[#allocation3 + $0xb2] sm:$0xff]
      %v2578 = vpack.c.bf16 %v2562, %v2562
      %v2579 = vpack.c.bf16 %v2563, %v2563
      %v2580 = vpack.c.bf16 %v2564, %v2564
      %v2581 = vpack.c.bf16 %v2565, %v2565
      %v2582 = vpack.c.bf16 %v2566, %v2566
      %v2583 = vpack.c.bf16 %v2567, %v2567
      %v2584 = vpack.c.bf16 %v2568, %v2568
      %v2585 = vpack.c.bf16 %v2569, %v2569
      %v2586 = vpack.c.bf16 %v2570, %v2570
      %v2587 = vpack.c.bf16 %v2571, %v2571
      %v2588 = vpack.c.bf16 %v2572, %v2572
      %v2589 = vpack.c.bf16 %v2573, %v2573
      %v2590 = vpack.c.bf16 %v2574, %v2574
      %v2591 = vpack.c.bf16 %v2575, %v2575
      %v2592 = vpack.c.bf16 %v2576, %v2576
      %v2593 = vpack.c.bf16 %v2577, %v2577
      %2610 = vrot.lane.b32.xlu0 %v2578, 8
      %v2611 = vpop.permute.xlu0 %2610
      %2612 = vrot.lane.b32.xlu0 %v2579, 8
      %v2613 = vpop.permute.xlu0 %2612
      %2614 = vrot.lane.b32.xlu0 %v2580, 8
      %v2615 = vpop.permute.xlu0 %2614
      %2616 = vrot.lane.b32.xlu0 %v2581, 8
      %v2617 = vpop.permute.xlu0 %2616
      %2618 = vrot.lane.b32.xlu0 %v2582, 8
      %v2619 = vpop.permute.xlu0 %2618
      %2620 = vrot.lane.b32.xlu0 %v2583, 8
      %v2621 = vpop.permute.xlu0 %2620
      %2622 = vrot.lane.b32.xlu0 %v2584, 8
      %v2623 = vpop.permute.xlu0 %2622
      %2624 = vrot.lane.b32.xlu0 %v2585, 8
      %v2625 = vpop.permute.xlu0 %2624
      %2626 = vrot.lane.b32.xlu0 %v2586, 8
      %v2627 = vpop.permute.xlu0 %2626
      %2628 = vrot.lane.b32.xlu0 %v2587, 8
      %v2629 = vpop.permute.xlu0 %2628
      %2630 = vrot.lane.b32.xlu0 %v2588, 8
      %v2631 = vpop.permute.xlu0 %2630
      %2632 = vrot.lane.b32.xlu0 %v2589, 8
      %v2633 = vpop.permute.xlu0 %2632
      %2634 = vrot.lane.b32.xlu0 %v2590, 8
      %v2635 = vpop.permute.xlu0 %2634
      %2636 = vrot.lane.b32.xlu0 %v2591, 8
      %v2637 = vpop.permute.xlu0 %2636
      %2638 = vrot.lane.b32.xlu0 %v2592, 8
      %v2639 = vpop.permute.xlu0 %2638
      %2640 = vrot.lane.b32.xlu0 %v2593, 8
      %v2641 = vpop.permute.xlu0 %2640
      %2658 = vst.msk [vmem:[#allocation5] sm:$0xf] %vm906, %v2611
      %2659 = vst.msk [vmem:[#allocation5 + $0x4] sm:$0xf] %vm906, %v2613
      %2660 = vst.msk [vmem:[#allocation5 + $0x8] sm:$0xf] %vm906, %v2615
      %2661 = vst.msk [vmem:[#allocation5 + $0xc] sm:$0xf] %vm906, %v2617
      %2662 = vst.msk [vmem:[#allocation5 + $0x10] sm:$0xf] %vm906, %v2619
      %2663 = vst.msk [vmem:[#allocation5 + $0x14] sm:$0xf] %vm906, %v2621
      %2664 = vst.msk [vmem:[#allocation5 + $0x18] sm:$0xf] %vm906, %v2623
      %2665 = vst.msk [vmem:[#allocation5 + $0x1c] sm:$0xf] %vm906, %v2625
      %2666 = vst.msk [vmem:[#allocation5 + $0x20] sm:$0xf] %vm906, %v2627
      %2667 = vst.msk [vmem:[#allocation5 + $0x24] sm:$0xf] %vm906, %v2629
      %2668 = vst.msk [vmem:[#allocation5 + $0x28] sm:$0xf] %vm906, %v2631
      %2669 = vst.msk [vmem:[#allocation5 + $0x2c] sm:$0xf] %vm906, %v2633
      %2670 = vst.msk [vmem:[#allocation5 + $0x30] sm:$0xf] %vm906, %v2635
      %2671 = vst.msk [vmem:[#allocation5 + $0x34] sm:$0xf] %vm906, %v2637
      %2672 = vst.msk [vmem:[#allocation5 + $0x38] sm:$0xf] %vm906, %v2639
      %2673 = vst.msk [vmem:[#allocation5 + $0x3c] sm:$0xf] %vm906, %v2641
      %v2674 = vld [vmem:[#allocation3 + $0x4] sm:$0xff]
      %v2675 = vld [vmem:[#allocation3 + $0xc] sm:$0xff]
      %v2676 = vld [vmem:[#allocation3 + $0x1c] sm:$0xff]
      %v2677 = vld [vmem:[#allocation3 + $0x24] sm:$0xff]
      %v2678 = vld [vmem:[#allocation3 + $0x34] sm:$0xff]
      %v2679 = vld [vmem:[#allocation3 + $0x3c] sm:$0xff]
      %v2680 = vld [vmem:[#allocation3 + $0x4c] sm:$0xff]
      %v2681 = vld [vmem:[#allocation3 + $0x54] sm:$0xff]
      %v2682 = vld [vmem:[#allocation3 + $0x64] sm:$0xff]
      %v2683 = vld [vmem:[#allocation3 + $0x6c] sm:$0xff]
      %v2684 = vld [vmem:[#allocation3 + $0x7c] sm:$0xff]
      %v2685 = vld [vmem:[#allocation3 + $0x84] sm:$0xff]
      %v2686 = vld [vmem:[#allocation3 + $0x94] sm:$0xff]
      %v2687 = vld [vmem:[#allocation3 + $0x9c] sm:$0xff]
      %v2688 = vld [vmem:[#allocation3 + $0xac] sm:$0xff]
      %v2689 = vld [vmem:[#allocation3 + $0xb4] sm:$0xff]
      %v2690 = vpack.c.bf16 %v2674, %v2674
      %v2691 = vpack.c.bf16 %v2675, %v2675
      %v2692 = vpack.c.bf16 %v2676, %v2676
      %v2693 = vpack.c.bf16 %v2677, %v2677
      %v2694 = vpack.c.bf16 %v2678, %v2678
      %v2695 = vpack.c.bf16 %v2679, %v2679
      %v2696 = vpack.c.bf16 %v2680, %v2680
      %v2697 = vpack.c.bf16 %v2681, %v2681
      %v2698 = vpack.c.bf16 %v2682, %v2682
      %v2699 = vpack.c.bf16 %v2683, %v2683
      %v2700 = vpack.c.bf16 %v2684, %v2684
      %v2701 = vpack.c.bf16 %v2685, %v2685
      %v2702 = vpack.c.bf16 %v2686, %v2686
      %v2703 = vpack.c.bf16 %v2687, %v2687
      %v2704 = vpack.c.bf16 %v2688, %v2688
      %v2705 = vpack.c.bf16 %v2689, %v2689
      %2722 = vrot.lane.b32.xlu0 %v2690, 16
      %v2723 = vpop.permute.xlu0 %2722
      %2724 = vrot.lane.b32.xlu0 %v2691, 16
      %v2725 = vpop.permute.xlu0 %2724
      %2726 = vrot.lane.b32.xlu0 %v2692, 16
      %v2727 = vpop.permute.xlu0 %2726
      %2728 = vrot.lane.b32.xlu0 %v2693, 16
      %v2729 = vpop.permute.xlu0 %2728
      %2730 = vrot.lane.b32.xlu0 %v2694, 16
      %v2731 = vpop.permute.xlu0 %2730
      %2732 = vrot.lane.b32.xlu0 %v2695, 16
      %v2733 = vpop.permute.xlu0 %2732
      %2734 = vrot.lane.b32.xlu0 %v2696, 16
      %v2735 = vpop.permute.xlu0 %2734
      %2736 = vrot.lane.b32.xlu0 %v2697, 16
      %v2737 = vpop.permute.xlu0 %2736
      %2738 = vrot.lane.b32.xlu0 %v2698, 16
      %v2739 = vpop.permute.xlu0 %2738
      %2740 = vrot.lane.b32.xlu0 %v2699, 16
      %v2741 = vpop.permute.xlu0 %2740
      %2742 = vrot.lane.b32.xlu0 %v2700, 16
      %v2743 = vpop.permute.xlu0 %2742
      %2744 = vrot.lane.b32.xlu0 %v2701, 16
      %v2745 = vpop.permute.xlu0 %2744
      %2746 = vrot.lane.b32.xlu0 %v2702, 16
      %v2747 = vpop.permute.xlu0 %2746
      %2748 = vrot.lane.b32.xlu0 %v2703, 16
      %v2749 = vpop.permute.xlu0 %2748
      %2750 = vrot.lane.b32.xlu0 %v2704, 16
      %v2751 = vpop.permute.xlu0 %2750
      %2752 = vrot.lane.b32.xlu0 %v2705, 16
      %v2753 = vpop.permute.xlu0 %2752
      %2770 = vst.msk [vmem:[#allocation5] sm:$0xf] %vm1075, %v2723
      %2771 = vst.msk [vmem:[#allocation5 + $0x4] sm:$0xf] %vm1075, %v2725
      %2772 = vst.msk [vmem:[#allocation5 + $0x8] sm:$0xf] %vm1075, %v2727
      %2773 = vst.msk [vmem:[#allocation5 + $0xc] sm:$0xf] %vm1075, %v2729
      %2774 = vst.msk [vmem:[#allocation5 + $0x10] sm:$0xf] %vm1075, %v2731
      %2775 = vst.msk [vmem:[#allocation5 + $0x14] sm:$0xf] %vm1075, %v2733
      %2776 = vst.msk [vmem:[#allocation5 + $0x18] sm:$0xf] %vm1075, %v2735
      %2777 = vst.msk [vmem:[#allocation5 + $0x1c] sm:$0xf] %vm1075, %v2737
      %2778 = vst.msk [vmem:[#allocation5 + $0x20] sm:$0xf] %vm1075, %v2739
      %2779 = vst.msk [vmem:[#allocation5 + $0x24] sm:$0xf] %vm1075, %v2741
      %2780 = vst.msk [vmem:[#allocation5 + $0x28] sm:$0xf] %vm1075, %v2743
      %2781 = vst.msk [vmem:[#allocation5 + $0x2c] sm:$0xf] %vm1075, %v2745
      %2782 = vst.msk [vmem:[#allocation5 + $0x30] sm:$0xf] %vm1075, %v2747
      %2783 = vst.msk [vmem:[#allocation5 + $0x34] sm:$0xf] %vm1075, %v2749
      %2784 = vst.msk [vmem:[#allocation5 + $0x38] sm:$0xf] %vm1075, %v2751
      %2785 = vst.msk [vmem:[#allocation5 + $0x3c] sm:$0xf] %vm1075, %v2753
      %s2786 = scalar_lea.vmem [#allocation3], 48
      %v2787 = vld [vmem:[%s2786] sm:$0xff]
      %v2788 = vld [vmem:[%s2786 + $0x8] sm:$0xff]
      %v2789 = vld [vmem:[%s2786 + $0x18] sm:$0xff]
      %v2790 = vld [vmem:[%s2786 + $0x20] sm:$0xff]
      %v2791 = vld [vmem:[%s2786 + $0x30] sm:$0xff]
      %v2792 = vld [vmem:[%s2786 + $0x38] sm:$0xff]
      %v2793 = vld [vmem:[%s2786 + $0x48] sm:$0xff]
      %v2794 = vld [vmem:[%s2786 + $0x50] sm:$0xff]
      %v2795 = vld [vmem:[%s2786 + $0x60] sm:$0xff]
      %v2796 = vld [vmem:[%s2786 + $0x68] sm:$0xff]
      %v2797 = vld [vmem:[%s2786 + $0x78] sm:$0xff]
      %v2798 = vld [vmem:[%s2786 + $0x80] sm:$0xff]
      %v2799 = vld [vmem:[%s2786 + $0x90] sm:$0xff]
      %v2800 = vld [vmem:[%s2786 + $0x98] sm:$0xff]
      %v2801 = vld [vmem:[%s2786 + $0xa8] sm:$0xff]
      %v2802 = vld [vmem:[%s2786 + $0xb0] sm:$0xff]
      %v2803 = vpack.c.bf16 %v2787, %v2787
      %v2804 = vpack.c.bf16 %v2788, %v2788
      %v2805 = vpack.c.bf16 %v2789, %v2789
      %v2806 = vpack.c.bf16 %v2790, %v2790
      %v2807 = vpack.c.bf16 %v2791, %v2791
      %v2808 = vpack.c.bf16 %v2792, %v2792
      %v2809 = vpack.c.bf16 %v2793, %v2793
      %v2810 = vpack.c.bf16 %v2794, %v2794
      %v2811 = vpack.c.bf16 %v2795, %v2795
      %v2812 = vpack.c.bf16 %v2796, %v2796
      %v2813 = vpack.c.bf16 %v2797, %v2797
      %v2814 = vpack.c.bf16 %v2798, %v2798
      %v2815 = vpack.c.bf16 %v2799, %v2799
      %v2816 = vpack.c.bf16 %v2800, %v2800
      %v2817 = vpack.c.bf16 %v2801, %v2801
      %v2818 = vpack.c.bf16 %v2802, %v2802
      %2835 = vrot.lane.b32.xlu0 %v2803, 24
      %v2836 = vpop.permute.xlu0 %2835
      %2837 = vrot.lane.b32.xlu0 %v2804, 24
      %v2838 = vpop.permute.xlu0 %2837
      %2839 = vrot.lane.b32.xlu0 %v2805, 24
      %v2840 = vpop.permute.xlu0 %2839
      %2841 = vrot.lane.b32.xlu0 %v2806, 24
      %v2842 = vpop.permute.xlu0 %2841
      %2843 = vrot.lane.b32.xlu0 %v2807, 24
      %v2844 = vpop.permute.xlu0 %2843
      %2845 = vrot.lane.b32.xlu0 %v2808, 24
      %v2846 = vpop.permute.xlu0 %2845
      %2847 = vrot.lane.b32.xlu0 %v2809, 24
      %v2848 = vpop.permute.xlu0 %2847
      %2849 = vrot.lane.b32.xlu0 %v2810, 24
      %v2850 = vpop.permute.xlu0 %2849
      %2851 = vrot.lane.b32.xlu0 %v2811, 24
      %v2852 = vpop.permute.xlu0 %2851
      %2853 = vrot.lane.b32.xlu0 %v2812, 24
      %v2854 = vpop.permute.xlu0 %2853
      %2855 = vrot.lane.b32.xlu0 %v2813, 24
      %v2856 = vpop.permute.xlu0 %2855
      %2857 = vrot.lane.b32.xlu0 %v2814, 24
      %v2858 = vpop.permute.xlu0 %2857
      %2859 = vrot.lane.b32.xlu0 %v2815, 24
      %v2860 = vpop.permute.xlu0 %2859
      %2861 = vrot.lane.b32.xlu0 %v2816, 24
      %v2862 = vpop.permute.xlu0 %2861
      %2863 = vrot.lane.b32.xlu0 %v2817, 24
      %v2864 = vpop.permute.xlu0 %2863
      %2865 = vrot.lane.b32.xlu0 %v2818, 24
      %v2866 = vpop.permute.xlu0 %2865
      %2883 = vst.msk [vmem:[#allocation5] sm:$0xf] %vm1245, %v2836
      %2884 = vst.msk [vmem:[#allocation5 + $0x4] sm:$0xf] %vm1245, %v2838
      %2885 = vst.msk [vmem:[#allocation5 + $0x8] sm:$0xf] %vm1245, %v2840
      %2886 = vst.msk [vmem:[#allocation5 + $0xc] sm:$0xf] %vm1245, %v2842
      %2887 = vst.msk [vmem:[#allocation5 + $0x10] sm:$0xf] %vm1245, %v2844
      %2888 = vst.msk [vmem:[#allocation5 + $0x14] sm:$0xf] %vm1245, %v2846
      %2889 = vst.msk [vmem:[#allocation5 + $0x18] sm:$0xf] %vm1245, %v2848
      %2890 = vst.msk [vmem:[#allocation5 + $0x1c] sm:$0xf] %vm1245, %v2850
      %2891 = vst.msk [vmem:[#allocation5 + $0x20] sm:$0xf] %vm1245, %v2852
      %2892 = vst.msk [vmem:[#allocation5 + $0x24] sm:$0xf] %vm1245, %v2854
      %2893 = vst.msk [vmem:[#allocation5 + $0x28] sm:$0xf] %vm1245, %v2856
      %2894 = vst.msk [vmem:[#allocation5 + $0x2c] sm:$0xf] %vm1245, %v2858
      %2895 = vst.msk [vmem:[#allocation5 + $0x30] sm:$0xf] %vm1245, %v2860
      %2896 = vst.msk [vmem:[#allocation5 + $0x34] sm:$0xf] %vm1245, %v2862
      %2897 = vst.msk [vmem:[#allocation5 + $0x38] sm:$0xf] %vm1245, %v2864
      %2898 = vst.msk [vmem:[#allocation5 + $0x3c] sm:$0xf] %vm1245, %v2866
      %v2899 = vld [vmem:[%s2786 + $0x2] sm:$0xff]
      %v2900 = vld [vmem:[%s2786 + $0xa] sm:$0xff]
      %v2901 = vld [vmem:[%s2786 + $0x1a] sm:$0xff]
      %v2902 = vld [vmem:[%s2786 + $0x22] sm:$0xff]
      %v2903 = vld [vmem:[%s2786 + $0x32] sm:$0xff]
      %v2904 = vld [vmem:[%s2786 + $0x3a] sm:$0xff]
      %v2905 = vld [vmem:[%s2786 + $0x4a] sm:$0xff]
      %v2906 = vld [vmem:[%s2786 + $0x52] sm:$0xff]
      %v2907 = vld [vmem:[%s2786 + $0x62] sm:$0xff]
      %v2908 = vld [vmem:[%s2786 + $0x6a] sm:$0xff]
      %v2909 = vld [vmem:[%s2786 + $0x7a] sm:$0xff]
      %v2910 = vld [vmem:[%s2786 + $0x82] sm:$0xff]
      %v2911 = vld [vmem:[%s2786 + $0x92] sm:$0xff]
      %v2912 = vld [vmem:[%s2786 + $0x9a] sm:$0xff]
      %v2913 = vld [vmem:[%s2786 + $0xaa] sm:$0xff]
      %v2914 = vld [vmem:[%s2786 + $0xb2] sm:$0xff]
      %v2915 = vpack.c.bf16 %v2899, %v2899
      %v2916 = vpack.c.bf16 %v2900, %v2900
      %v2917 = vpack.c.bf16 %v2901, %v2901
      %v2918 = vpack.c.bf16 %v2902, %v2902
      %v2919 = vpack.c.bf16 %v2903, %v2903
      %v2920 = vpack.c.bf16 %v2904, %v2904
      %v2921 = vpack.c.bf16 %v2905, %v2905
      %v2922 = vpack.c.bf16 %v2906, %v2906
      %v2923 = vpack.c.bf16 %v2907, %v2907
      %v2924 = vpack.c.bf16 %v2908, %v2908
      %v2925 = vpack.c.bf16 %v2909, %v2909
      %v2926 = vpack.c.bf16 %v2910, %v2910
      %v2927 = vpack.c.bf16 %v2911, %v2911
      %v2928 = vpack.c.bf16 %v2912, %v2912
      %v2929 = vpack.c.bf16 %v2913, %v2913
      %v2930 = vpack.c.bf16 %v2914, %v2914
      %2947 = vrot.lane.b32.xlu0 %v2915, 32
      %v2948 = vpop.permute.xlu0 %2947
      %2949 = vrot.lane.b32.xlu0 %v2916, 32
      %v2950 = vpop.permute.xlu0 %2949
      %2951 = vrot.lane.b32.xlu0 %v2917, 32
      %v2952 = vpop.permute.xlu0 %2951
      %2953 = vrot.lane.b32.xlu0 %v2918, 32
      %v2954 = vpop.permute.xlu0 %2953
      %2955 = vrot.lane.b32.xlu0 %v2919, 32
      %v2956 = vpop.permute.xlu0 %2955
      %2957 = vrot.lane.b32.xlu0 %v2920, 32
      %v2958 = vpop.permute.xlu0 %2957
      %2959 = vrot.lane.b32.xlu0 %v2921, 32
      %v2960 = vpop.permute.xlu0 %2959
      %2961 = vrot.lane.b32.xlu0 %v2922, 32
      %v2962 = vpop.permute.xlu0 %2961
      %2963 = vrot.lane.b32.xlu0 %v2923, 32
      %v2964 = vpop.permute.xlu0 %2963
      %2965 = vrot.lane.b32.xlu0 %v2924, 32
      %v2966 = vpop.permute.xlu0 %2965
      %2967 = vrot.lane.b32.xlu0 %v2925, 32
      %v2968 = vpop.permute.xlu0 %2967
      %2969 = vrot.lane.b32.xlu0 %v2926, 32
      %v2970 = vpop.permute.xlu0 %2969
      %2971 = vrot.lane.b32.xlu0 %v2927, 32
      %v2972 = vpop.permute.xlu0 %2971
      %2973 = vrot.lane.b32.xlu0 %v2928, 32
      %v2974 = vpop.permute.xlu0 %2973
      %2975 = vrot.lane.b32.xlu0 %v2929, 32
      %v2976 = vpop.permute.xlu0 %2975
      %2977 = vrot.lane.b32.xlu0 %v2930, 32
      %v2978 = vpop.permute.xlu0 %2977
      %2995 = vst.msk [vmem:[#allocation5] sm:$0xf] %vm1414, %v2948
      %2996 = vst.msk [vmem:[#allocation5 + $0x4] sm:$0xf] %vm1414, %v2950
      %2997 = vst.msk [vmem:[#allocation5 + $0x8] sm:$0xf] %vm1414, %v2952
      %2998 = vst.msk [vmem:[#allocation5 + $0xc] sm:$0xf] %vm1414, %v2954
      %2999 = vst.msk [vmem:[#allocation5 + $0x10] sm:$0xf] %vm1414, %v2956
      %3000 = vst.msk [vmem:[#allocation5 + $0x14] sm:$0xf] %vm1414, %v2958
      %3001 = vst.msk [vmem:[#allocation5 + $0x18] sm:$0xf] %vm1414, %v2960
      %3002 = vst.msk [vmem:[#allocation5 + $0x1c] sm:$0xf] %vm1414, %v2962
      %3003 = vst.msk [vmem:[#allocation5 + $0x20] sm:$0xf] %vm1414, %v2964
      %3004 = vst.msk [vmem:[#allocation5 + $0x24] sm:$0xf] %vm1414, %v2966
      %3005 = vst.msk [vmem:[#allocation5 + $0x28] sm:$0xf] %vm1414, %v2968
      %3006 = vst.msk [vmem:[#allocation5 + $0x2c] sm:$0xf] %vm1414, %v2970
      %3007 = vst.msk [vmem:[#allocation5 + $0x30] sm:$0xf] %vm1414, %v2972
      %3008 = vst.msk [vmem:[#allocation5 + $0x34] sm:$0xf] %vm1414, %v2974
      %3009 = vst.msk [vmem:[#allocation5 + $0x38] sm:$0xf] %vm1414, %v2976
      %3010 = vst.msk [vmem:[#allocation5 + $0x3c] sm:$0xf] %vm1414, %v2978
      %v3011 = vld [vmem:[%s2786 + $0x4] sm:$0xff]
      %v3012 = vld [vmem:[%s2786 + $0xc] sm:$0xff]
      %v3013 = vld [vmem:[%s2786 + $0x1c] sm:$0xff]
      %v3014 = vld [vmem:[%s2786 + $0x24] sm:$0xff]
      %v3015 = vld [vmem:[%s2786 + $0x34] sm:$0xff]
      %v3016 = vld [vmem:[%s2786 + $0x3c] sm:$0xff]
      %v3017 = vld [vmem:[%s2786 + $0x4c] sm:$0xff]
      %v3018 = vld [vmem:[%s2786 + $0x54] sm:$0xff]
      %v3019 = vld [vmem:[%s2786 + $0x64] sm:$0xff]
      %v3020 = vld [vmem:[%s2786 + $0x6c] sm:$0xff]
      %v3021 = vld [vmem:[%s2786 + $0x7c] sm:$0xff]
      %v3022 = vld [vmem:[%s2786 + $0x84] sm:$0xff]
      %v3023 = vld [vmem:[%s2786 + $0x94] sm:$0xff]
      %v3024 = vld [vmem:[%s2786 + $0x9c] sm:$0xff]
      %v3025 = vld [vmem:[%s2786 + $0xac] sm:$0xff]
      %v3026 = vld [vmem:[%s2786 + $0xb4] sm:$0xff]
      %v3027 = vpack.c.bf16 %v3011, %v3011
      %v3028 = vpack.c.bf16 %v3012, %v3012
      %v3029 = vpack.c.bf16 %v3013, %v3013
      %v3030 = vpack.c.bf16 %v3014, %v3014
      %v3031 = vpack.c.bf16 %v3015, %v3015
      %v3032 = vpack.c.bf16 %v3016, %v3016
      %v3033 = vpack.c.bf16 %v3017, %v3017
      %v3034 = vpack.c.bf16 %v3018, %v3018
      %v3035 = vpack.c.bf16 %v3019, %v3019
      %v3036 = vpack.c.bf16 %v3020, %v3020
      %v3037 = vpack.c.bf16 %v3021, %v3021
      %v3038 = vpack.c.bf16 %v3022, %v3022
      %v3039 = vpack.c.bf16 %v3023, %v3023
      %v3040 = vpack.c.bf16 %v3024, %v3024
      %v3041 = vpack.c.bf16 %v3025, %v3025
      %v3042 = vpack.c.bf16 %v3026, %v3026
      %3059 = vrot.lane.b32.xlu0 %v3027, 40
      %v3060 = vpop.permute.xlu0 %3059
      %3061 = vrot.lane.b32.xlu0 %v3028, 40
      %v3062 = vpop.permute.xlu0 %3061
      %3063 = vrot.lane.b32.xlu0 %v3029, 40
      %v3064 = vpop.permute.xlu0 %3063
      %3065 = vrot.lane.b32.xlu0 %v3030, 40
      %v3066 = vpop.permute.xlu0 %3065
      %3067 = vrot.lane.b32.xlu0 %v3031, 40
      %v3068 = vpop.permute.xlu0 %3067
      %3069 = vrot.lane.b32.xlu0 %v3032, 40
      %v3070 = vpop.permute.xlu0 %3069
      %3071 = vrot.lane.b32.xlu0 %v3033, 40
      %v3072 = vpop.permute.xlu0 %3071
      %3073 = vrot.lane.b32.xlu0 %v3034, 40
      %v3074 = vpop.permute.xlu0 %3073
      %3075 = vrot.lane.b32.xlu0 %v3035, 40
      %v3076 = vpop.permute.xlu0 %3075
      %3077 = vrot.lane.b32.xlu0 %v3036, 40
      %v3078 = vpop.permute.xlu0 %3077
      %3079 = vrot.lane.b32.xlu0 %v3037, 40
      %v3080 = vpop.permute.xlu0 %3079
      %3081 = vrot.lane.b32.xlu0 %v3038, 40
      %v3082 = vpop.permute.xlu0 %3081
      %3083 = vrot.lane.b32.xlu0 %v3039, 40
      %v3084 = vpop.permute.xlu0 %3083
      %3085 = vrot.lane.b32.xlu0 %v3040, 40
      %v3086 = vpop.permute.xlu0 %3085
      %3087 = vrot.lane.b32.xlu0 %v3041, 40
      %v3088 = vpop.permute.xlu0 %3087
      %3089 = vrot.lane.b32.xlu0 %v3042, 40
      %v3090 = vpop.permute.xlu0 %3089
      %3107 = vst.msk [vmem:[#allocation5] sm:$0xf] %vm1583, %v3060
      %3108 = vst.msk [vmem:[#allocation5 + $0x4] sm:$0xf] %vm1583, %v3062
      %3109 = vst.msk [vmem:[#allocation5 + $0x8] sm:$0xf] %vm1583, %v3064
      %3110 = vst.msk [vmem:[#allocation5 + $0xc] sm:$0xf] %vm1583, %v3066
      %3111 = vst.msk [vmem:[#allocation5 + $0x10] sm:$0xf] %vm1583, %v3068
      %3112 = vst.msk [vmem:[#allocation5 + $0x14] sm:$0xf] %vm1583, %v3070
      %3113 = vst.msk [vmem:[#allocation5 + $0x18] sm:$0xf] %vm1583, %v3072
      %3114 = vst.msk [vmem:[#allocation5 + $0x1c] sm:$0xf] %vm1583, %v3074
      %3115 = vst.msk [vmem:[#allocation5 + $0x20] sm:$0xf] %vm1583, %v3076
      %3116 = vst.msk [vmem:[#allocation5 + $0x24] sm:$0xf] %vm1583, %v3078
      %3117 = vst.msk [vmem:[#allocation5 + $0x28] sm:$0xf] %vm1583, %v3080
      %3118 = vst.msk [vmem:[#allocation5 + $0x2c] sm:$0xf] %vm1583, %v3082
      %3119 = vst.msk [vmem:[#allocation5 + $0x30] sm:$0xf] %vm1583, %v3084
      %3120 = vst.msk [vmem:[#allocation5 + $0x34] sm:$0xf] %vm1583, %v3086
      %3121 = vst.msk [vmem:[#allocation5 + $0x38] sm:$0xf] %vm1583, %v3088
      %3122 = vst.msk [vmem:[#allocation5 + $0x3c] sm:$0xf] %vm1583, %v3090
      %s3123 = scalar_lea.vmem [#allocation3], 96
      %v3124 = vld [vmem:[%s3123] sm:$0xff]
      %v3125 = vld [vmem:[%s3123 + $0x8] sm:$0xff]
      %v3126 = vld [vmem:[%s3123 + $0x18] sm:$0xff]
      %v3127 = vld [vmem:[%s3123 + $0x20] sm:$0xff]
      %v3128 = vld [vmem:[%s3123 + $0x30] sm:$0xff]
      %v3129 = vld [vmem:[%s3123 + $0x38] sm:$0xff]
      %v3130 = vld [vmem:[%s3123 + $0x48] sm:$0xff]
      %v3131 = vld [vmem:[%s3123 + $0x50] sm:$0xff]
      %v3132 = vld [vmem:[%s3123 + $0x60] sm:$0xff]
      %v3133 = vld [vmem:[%s3123 + $0x68] sm:$0xff]
      %v3134 = vld [vmem:[%s3123 + $0x78] sm:$0xff]
      %v3135 = vld [vmem:[%s3123 + $0x80] sm:$0xff]
      %v3136 = vld [vmem:[%s3123 + $0x90] sm:$0xff]
      %v3137 = vld [vmem:[%s3123 + $0x98] sm:$0xff]
      %v3138 = vld [vmem:[%s3123 + $0xa8] sm:$0xff]
      %v3139 = vld [vmem:[%s3123 + $0xb0] sm:$0xff]
      %v3140 = vpack.c.bf16 %v3124, %v3124
      %v3141 = vpack.c.bf16 %v3125, %v3125
      %v3142 = vpack.c.bf16 %v3126, %v3126
      %v3143 = vpack.c.bf16 %v3127, %v3127
      %v3144 = vpack.c.bf16 %v3128, %v3128
      %v3145 = vpack.c.bf16 %v3129, %v3129
      %v3146 = vpack.c.bf16 %v3130, %v3130
      %v3147 = vpack.c.bf16 %v3131, %v3131
      %v3148 = vpack.c.bf16 %v3132, %v3132
      %v3149 = vpack.c.bf16 %v3133, %v3133
      %v3150 = vpack.c.bf16 %v3134, %v3134
      %v3151 = vpack.c.bf16 %v3135, %v3135
      %v3152 = vpack.c.bf16 %v3136, %v3136
      %v3153 = vpack.c.bf16 %v3137, %v3137
      %v3154 = vpack.c.bf16 %v3138, %v3138
      %v3155 = vpack.c.bf16 %v3139, %v3139
      %3172 = vrot.lane.b32.xlu0 %v3140, 48
      %v3173 = vpop.permute.xlu0 %3172
      %3174 = vrot.lane.b32.xlu0 %v3141, 48
      %v3175 = vpop.permute.xlu0 %3174
      %3176 = vrot.lane.b32.xlu0 %v3142, 48
      %v3177 = vpop.permute.xlu0 %3176
      %3178 = vrot.lane.b32.xlu0 %v3143, 48
      %v3179 = vpop.permute.xlu0 %3178
      %3180 = vrot.lane.b32.xlu0 %v3144, 48
      %v3181 = vpop.permute.xlu0 %3180
      %3182 = vrot.lane.b32.xlu0 %v3145, 48
      %v3183 = vpop.permute.xlu0 %3182
      %3184 = vrot.lane.b32.xlu0 %v3146, 48
      %v3185 = vpop.permute.xlu0 %3184
      %3186 = vrot.lane.b32.xlu0 %v3147, 48
      %v3187 = vpop.permute.xlu0 %3186
      %3188 = vrot.lane.b32.xlu0 %v3148, 48
      %v3189 = vpop.permute.xlu0 %3188
      %3190 = vrot.lane.b32.xlu0 %v3149, 48
      %v3191 = vpop.permute.xlu0 %3190
      %3192 = vrot.lane.b32.xlu0 %v3150, 48
      %v3193 = vpop.permute.xlu0 %3192
      %3194 = vrot.lane.b32.xlu0 %v3151, 48
      %v3195 = vpop.permute.xlu0 %3194
      %3196 = vrot.lane.b32.xlu0 %v3152, 48
      %v3197 = vpop.permute.xlu0 %3196
      %3198 = vrot.lane.b32.xlu0 %v3153, 48
      %v3199 = vpop.permute.xlu0 %3198
      %3200 = vrot.lane.b32.xlu0 %v3154, 48
      %v3201 = vpop.permute.xlu0 %3200
      %3202 = vrot.lane.b32.xlu0 %v3155, 48
      %v3203 = vpop.permute.xlu0 %3202
      %3220 = vst.msk [vmem:[#allocation5] sm:$0xf] %vm1753, %v3173
      %3221 = vst.msk [vmem:[#allocation5 + $0x4] sm:$0xf] %vm1753, %v3175
      %3222 = vst.msk [vmem:[#allocation5 + $0x8] sm:$0xf] %vm1753, %v3177
      %3223 = vst.msk [vmem:[#allocation5 + $0xc] sm:$0xf] %vm1753, %v3179
      %3224 = vst.msk [vmem:[#allocation5 + $0x10] sm:$0xf] %vm1753, %v3181
      %3225 = vst.msk [vmem:[#allocation5 + $0x14] sm:$0xf] %vm1753, %v3183
      %3226 = vst.msk [vmem:[#allocation5 + $0x18] sm:$0xf] %vm1753, %v3185
      %3227 = vst.msk [vmem:[#allocation5 + $0x1c] sm:$0xf] %vm1753, %v3187
      %3228 = vst.msk [vmem:[#allocation5 + $0x20] sm:$0xf] %vm1753, %v3189
      %3229 = vst.msk [vmem:[#allocation5 + $0x24] sm:$0xf] %vm1753, %v3191
      %3230 = vst.msk [vmem:[#allocation5 + $0x28] sm:$0xf] %vm1753, %v3193
      %3231 = vst.msk [vmem:[#allocation5 + $0x2c] sm:$0xf] %vm1753, %v3195
      %3232 = vst.msk [vmem:[#allocation5 + $0x30] sm:$0xf] %vm1753, %v3197
      %3233 = vst.msk [vmem:[#allocation5 + $0x34] sm:$0xf] %vm1753, %v3199
      %3234 = vst.msk [vmem:[#allocation5 + $0x38] sm:$0xf] %vm1753, %v3201
      %3235 = vst.msk [vmem:[#allocation5 + $0x3c] sm:$0xf] %vm1753, %v3203
      %v3236 = vld [vmem:[%s3123 + $0x2] sm:$0xff]
      %v3237 = vld [vmem:[%s3123 + $0xa] sm:$0xff]
      %v3238 = vld [vmem:[%s3123 + $0x1a] sm:$0xff]
      %v3239 = vld [vmem:[%s3123 + $0x22] sm:$0xff]
      %v3240 = vld [vmem:[%s3123 + $0x32] sm:$0xff]
      %v3241 = vld [vmem:[%s3123 + $0x3a] sm:$0xff]
      %v3242 = vld [vmem:[%s3123 + $0x4a] sm:$0xff]
      %v3243 = vld [vmem:[%s3123 + $0x52] sm:$0xff]
      %v3244 = vld [vmem:[%s3123 + $0x62] sm:$0xff]
      %v3245 = vld [vmem:[%s3123 + $0x6a] sm:$0xff]
      %v3246 = vld [vmem:[%s3123 + $0x7a] sm:$0xff]
      %v3247 = vld [vmem:[%s3123 + $0x82] sm:$0xff]
      %v3248 = vld [vmem:[%s3123 + $0x92] sm:$0xff]
      %v3249 = vld [vmem:[%s3123 + $0x9a] sm:$0xff]
      %v3250 = vld [vmem:[%s3123 + $0xaa] sm:$0xff]
      %v3251 = vld [vmem:[%s3123 + $0xb2] sm:$0xff]
      %v3252 = vpack.c.bf16 %v3236, %v3236
      %v3253 = vpack.c.bf16 %v3237, %v3237
      %v3254 = vpack.c.bf16 %v3238, %v3238
      %v3255 = vpack.c.bf16 %v3239, %v3239
      %v3256 = vpack.c.bf16 %v3240, %v3240
      %v3257 = vpack.c.bf16 %v3241, %v3241
      %v3258 = vpack.c.bf16 %v3242, %v3242
      %v3259 = vpack.c.bf16 %v3243, %v3243
      %v3260 = vpack.c.bf16 %v3244, %v3244
      %v3261 = vpack.c.bf16 %v3245, %v3245
      %v3262 = vpack.c.bf16 %v3246, %v3246
      %v3263 = vpack.c.bf16 %v3247, %v3247
      %v3264 = vpack.c.bf16 %v3248, %v3248
      %v3265 = vpack.c.bf16 %v3249, %v3249
      %v3266 = vpack.c.bf16 %v3250, %v3250
      %v3267 = vpack.c.bf16 %v3251, %v3251
      %3284 = vrot.lane.b32.xlu0 %v3252, 56
      %v3285 = vpop.permute.xlu0 %3284
      %3286 = vrot.lane.b32.xlu0 %v3253, 56
      %v3287 = vpop.permute.xlu0 %3286
      %3288 = vrot.lane.b32.xlu0 %v3254, 56
      %v3289 = vpop.permute.xlu0 %3288
      %3290 = vrot.lane.b32.xlu0 %v3255, 56
      %v3291 = vpop.permute.xlu0 %3290
      %3292 = vrot.lane.b32.xlu0 %v3256, 56
      %v3293 = vpop.permute.xlu0 %3292
      %3294 = vrot.lane.b32.xlu0 %v3257, 56
      %v3295 = vpop.permute.xlu0 %3294
      %3296 = vrot.lane.b32.xlu0 %v3258, 56
      %v3297 = vpop.permute.xlu0 %3296
      %3298 = vrot.lane.b32.xlu0 %v3259, 56
      %v3299 = vpop.permute.xlu0 %3298
      %3300 = vrot.lane.b32.xlu0 %v3260, 56
      %v3301 = vpop.permute.xlu0 %3300
      %3302 = vrot.lane.b32.xlu0 %v3261, 56
      %v3303 = vpop.permute.xlu0 %3302
      %3304 = vrot.lane.b32.xlu0 %v3262, 56
      %v3305 = vpop.permute.xlu0 %3304
      %3306 = vrot.lane.b32.xlu0 %v3263, 56
      %v3307 = vpop.permute.xlu0 %3306
      %3308 = vrot.lane.b32.xlu0 %v3264, 56
      %v3309 = vpop.permute.xlu0 %3308
      %3310 = vrot.lane.b32.xlu0 %v3265, 56
      %v3311 = vpop.permute.xlu0 %3310
      %3312 = vrot.lane.b32.xlu0 %v3266, 56
      %v3313 = vpop.permute.xlu0 %3312
      %3314 = vrot.lane.b32.xlu0 %v3267, 56
      %v3315 = vpop.permute.xlu0 %3314
      %3332 = vst.msk [vmem:[#allocation5] sm:$0xf] %vm1922, %v3285
      %3333 = vst.msk [vmem:[#allocation5 + $0x4] sm:$0xf] %vm1922, %v3287
      %3334 = vst.msk [vmem:[#allocation5 + $0x8] sm:$0xf] %vm1922, %v3289
      %3335 = vst.msk [vmem:[#allocation5 + $0xc] sm:$0xf] %vm1922, %v3291
      %3336 = vst.msk [vmem:[#allocation5 + $0x10] sm:$0xf] %vm1922, %v3293
      %3337 = vst.msk [vmem:[#allocation5 + $0x14] sm:$0xf] %vm1922, %v3295
      %3338 = vst.msk [vmem:[#allocation5 + $0x18] sm:$0xf] %vm1922, %v3297
      %3339 = vst.msk [vmem:[#allocation5 + $0x1c] sm:$0xf] %vm1922, %v3299
      %3340 = vst.msk [vmem:[#allocation5 + $0x20] sm:$0xf] %vm1922, %v3301
      %3341 = vst.msk [vmem:[#allocation5 + $0x24] sm:$0xf] %vm1922, %v3303
      %3342 = vst.msk [vmem:[#allocation5 + $0x28] sm:$0xf] %vm1922, %v3305
      %3343 = vst.msk [vmem:[#allocation5 + $0x2c] sm:$0xf] %vm1922, %v3307
      %3344 = vst.msk [vmem:[#allocation5 + $0x30] sm:$0xf] %vm1922, %v3309
      %3345 = vst.msk [vmem:[#allocation5 + $0x34] sm:$0xf] %vm1922, %v3311
      %3346 = vst.msk [vmem:[#allocation5 + $0x38] sm:$0xf] %vm1922, %v3313
      %3347 = vst.msk [vmem:[#allocation5 + $0x3c] sm:$0xf] %vm1922, %v3315
      %v3348 = vld [vmem:[%s3123 + $0x4] sm:$0xff]
      %v3349 = vld [vmem:[%s3123 + $0xc] sm:$0xff]
      %v3350 = vld [vmem:[%s3123 + $0x1c] sm:$0xff]
      %v3351 = vld [vmem:[%s3123 + $0x24] sm:$0xff]
      %v3352 = vld [vmem:[%s3123 + $0x34] sm:$0xff]
      %v3353 = vld [vmem:[%s3123 + $0x3c] sm:$0xff]
      %v3354 = vld [vmem:[%s3123 + $0x4c] sm:$0xff]
      %v3355 = vld [vmem:[%s3123 + $0x54] sm:$0xff]
      %v3356 = vld [vmem:[%s3123 + $0x64] sm:$0xff]
      %v3357 = vld [vmem:[%s3123 + $0x6c] sm:$0xff]
      %v3358 = vld [vmem:[%s3123 + $0x7c] sm:$0xff]
      %v3359 = vld [vmem:[%s3123 + $0x84] sm:$0xff]
      %v3360 = vld [vmem:[%s3123 + $0x94] sm:$0xff]
      %v3361 = vld [vmem:[%s3123 + $0x9c] sm:$0xff]
      %v3362 = vld [vmem:[%s3123 + $0xac] sm:$0xff]
      %v3363 = vld [vmem:[%s3123 + $0xb4] sm:$0xff]
      %v3364 = vpack.c.bf16 %v3348, %v3348
      %v3365 = vpack.c.bf16 %v3349, %v3349
      %v3366 = vpack.c.bf16 %v3350, %v3350
      %v3367 = vpack.c.bf16 %v3351, %v3351
      %v3368 = vpack.c.bf16 %v3352, %v3352
      %v3369 = vpack.c.bf16 %v3353, %v3353
      %v3370 = vpack.c.bf16 %v3354, %v3354
      %v3371 = vpack.c.bf16 %v3355, %v3355
      %v3372 = vpack.c.bf16 %v3356, %v3356
      %v3373 = vpack.c.bf16 %v3357, %v3357
      %v3374 = vpack.c.bf16 %v3358, %v3358
      %v3375 = vpack.c.bf16 %v3359, %v3359
      %v3376 = vpack.c.bf16 %v3360, %v3360
      %v3377 = vpack.c.bf16 %v3361, %v3361
      %v3378 = vpack.c.bf16 %v3362, %v3362
      %v3379 = vpack.c.bf16 %v3363, %v3363
      %3396 = vrot.lane.b32.xlu0 %v3364, 64
      %v3397 = vpop.permute.xlu0 %3396
      %3398 = vrot.lane.b32.xlu0 %v3365, 64
      %v3399 = vpop.permute.xlu0 %3398
      %3400 = vrot.lane.b32.xlu0 %v3366, 64
      %v3401 = vpop.permute.xlu0 %3400
      %3402 = vrot.lane.b32.xlu0 %v3367, 64
      %v3403 = vpop.permute.xlu0 %3402
      %3404 = vrot.lane.b32.xlu0 %v3368, 64
      %v3405 = vpop.permute.xlu0 %3404
      %3406 = vrot.lane.b32.xlu0 %v3369, 64
      %v3407 = vpop.permute.xlu0 %3406
      %3408 = vrot.lane.b32.xlu0 %v3370, 64
      %v3409 = vpop.permute.xlu0 %3408
      %3410 = vrot.lane.b32.xlu0 %v3371, 64
      %v3411 = vpop.permute.xlu0 %3410
      %3412 = vrot.lane.b32.xlu0 %v3372, 64
      %v3413 = vpop.permute.xlu0 %3412
      %3414 = vrot.lane.b32.xlu0 %v3373, 64
      %v3415 = vpop.permute.xlu0 %3414
      %3416 = vrot.lane.b32.xlu0 %v3374, 64
      %v3417 = vpop.permute.xlu0 %3416
      %3418 = vrot.lane.b32.xlu0 %v3375, 64
      %v3419 = vpop.permute.xlu0 %3418
      %3420 = vrot.lane.b32.xlu0 %v3376, 64
      %v3421 = vpop.permute.xlu0 %3420
      %3422 = vrot.lane.b32.xlu0 %v3377, 64
      %v3423 = vpop.permute.xlu0 %3422
      %3424 = vrot.lane.b32.xlu0 %v3378, 64
      %v3425 = vpop.permute.xlu0 %3424
      %3426 = vrot.lane.b32.xlu0 %v3379, 64
      %v3427 = vpop.permute.xlu0 %3426
      %3444 = vst.msk [vmem:[#allocation5] sm:$0xf] %vm2091, %v3397
      %3445 = vst.msk [vmem:[#allocation5 + $0x4] sm:$0xf] %vm2091, %v3399
      %3446 = vst.msk [vmem:[#allocation5 + $0x8] sm:$0xf] %vm2091, %v3401
      %3447 = vst.msk [vmem:[#allocation5 + $0xc] sm:$0xf] %vm2091, %v3403
      %3448 = vst.msk [vmem:[#allocation5 + $0x10] sm:$0xf] %vm2091, %v3405
      %3449 = vst.msk [vmem:[#allocation5 + $0x14] sm:$0xf] %vm2091, %v3407
      %3450 = vst.msk [vmem:[#allocation5 + $0x18] sm:$0xf] %vm2091, %v3409
      %3451 = vst.msk [vmem:[#allocation5 + $0x1c] sm:$0xf] %vm2091, %v3411
      %3452 = vst.msk [vmem:[#allocation5 + $0x20] sm:$0xf] %vm2091, %v3413
      %3453 = vst.msk [vmem:[#allocation5 + $0x24] sm:$0xf] %vm2091, %v3415
      %3454 = vst.msk [vmem:[#allocation5 + $0x28] sm:$0xf] %vm2091, %v3417
      %3455 = vst.msk [vmem:[#allocation5 + $0x2c] sm:$0xf] %vm2091, %v3419
      %3456 = vst.msk [vmem:[#allocation5 + $0x30] sm:$0xf] %vm2091, %v3421
      %3457 = vst.msk [vmem:[#allocation5 + $0x34] sm:$0xf] %vm2091, %v3423
      %3458 = vst.msk [vmem:[#allocation5 + $0x38] sm:$0xf] %vm2091, %v3425
      %3459 = vst.msk [vmem:[#allocation5 + $0x3c] sm:$0xf] %vm2091, %v3427
      %v3460 = vld [vmem:[#allocation5] sm:$0xf]
      %v3461 = vld [vmem:[#allocation5 + $0x4] sm:$0xf]
      %v3462 = vld [vmem:[#allocation5 + $0x8] sm:$0xf]
      %v3463 = vld [vmem:[#allocation5 + $0xc] sm:$0xf]
      %v3464 = vld [vmem:[#allocation5 + $0x10] sm:$0xf]
      %v3465 = vld [vmem:[#allocation5 + $0x14] sm:$0xf]
      %v3466 = vld [vmem:[#allocation5 + $0x18] sm:$0xf]
      %v3467 = vld [vmem:[#allocation5 + $0x1c] sm:$0xf]
      %v3468 = vld [vmem:[#allocation5 + $0x20] sm:$0xf]
      %v3469 = vld [vmem:[#allocation5 + $0x24] sm:$0xf]
      %v3470 = vld [vmem:[#allocation5 + $0x28] sm:$0xf]
      %v3471 = vld [vmem:[#allocation5 + $0x2c] sm:$0xf]
      %v3472 = vld [vmem:[#allocation5 + $0x30] sm:$0xf]
      %v3473 = vld [vmem:[#allocation5 + $0x34] sm:$0xf]
      %v3474 = vld [vmem:[#allocation5 + $0x38] sm:$0xf]
      %v3475 = vld [vmem:[#allocation5 + $0x3c] sm:$0xf]
      %v3476 = vld [vmem:[%s5] sm:$0xf]
      %v3477 = vld [vmem:[%s5 + $0x4] sm:$0xf]
      %v3478 = vld [vmem:[%s5 + $0x8] sm:$0xf]
      %v3479 = vld [vmem:[%s5 + $0xc] sm:$0xf]
      %v3480 = vld [vmem:[%s5 + $0x10] sm:$0xf]
      %v3481 = vld [vmem:[%s5 + $0x14] sm:$0xf]
      %v3482 = vld [vmem:[%s5 + $0x18] sm:$0xf]
      %v3483 = vld [vmem:[%s5 + $0x1c] sm:$0xf]
      %v3484 = vld [vmem:[%s5 + $0x20] sm:$0xf]
      %v3485 = vld [vmem:[%s6] sm:$0x1]
      %v3487 = vperm.slane %v3485, 0
      %v3505 = vunpack.c.l.b16 %v3460
      %v3506 = vunpack.c.l.b16 %v3461
      %v3507 = vunpack.c.l.b16 %v3462
      %v3508 = vunpack.c.l.b16 %v3463
      %v3509 = vunpack.c.l.b16 %v3464
      %v3510 = vunpack.c.l.b16 %v3465
      %v3511 = vunpack.c.l.b16 %v3466
      %v3512 = vunpack.c.l.b16 %v3467
      %v3513 = vunpack.c.l.b16 %v3468
      %v3514 = vunpack.c.l.b16 %v3469
      %v3515 = vunpack.c.l.b16 %v3470
      %v3516 = vunpack.c.l.b16 %v3471
      %v3517 = vunpack.c.l.b16 %v3472
      %v3518 = vunpack.c.l.b16 %v3473
      %v3519 = vunpack.c.l.b16 %v3474
      %v3520 = vunpack.c.l.b16 %v3475
      %v3521 = vpack.c.b16 %v3506, %v3505
      %v3522 = vpack.c.b16 %v3508, %v3507
      %v3523 = vpack.c.b16 %v3510, %v3509
      %v3524 = vpack.c.b16 %v3512, %v3511
      %v3525 = vpack.c.b16 %v3514, %v3513
      %v3526 = vpack.c.b16 %v3516, %v3515
      %v3527 = vpack.c.b16 %v3518, %v3517
      %v3528 = vpack.c.b16 %v3520, %v3519
      %v3538 = vunpack.c.l.b16 %v3476
      %v3539 = vunpack.c.l.b16 %v3477
      %v3540 = vunpack.c.l.b16 %v3478
      %v3541 = vunpack.c.l.b16 %v3479
      %v3542 = vunpack.c.l.b16 %v3480
      %v3543 = vunpack.c.l.b16 %v3481
      %v3544 = vunpack.c.l.b16 %v3482
      %v3545 = vunpack.c.l.b16 %v3483
      %v3546 = vunpack.c.l.b16 %v3484
      %v3547 = vpack.c.b16 %v3539, %v3538
      %v3548 = vpack.c.b16 %v3541, %v3540
      %v3549 = vpack.c.b16 %v3543, %v3542
      %v3550 = vpack.c.b16 %v3545, %v3544
      %v3551 = vpack.c.b16 %v3546, %v3546
      %v3557 = vsel %vm2240, %v3521, 0
      %v3560 = vsel %vm2240, %v3522, 0
      %v3563 = vsel %vm2240, %v3523, 0
      %v3566 = vsel %vm2240, %v3524, 0
      %v3569 = vsel %vm2240, %v3525, 0
      %v3572 = vsel %vm2240, %v3526, 0
      %v3575 = vsel %vm2240, %v3527, 0
      %v3578 = vsel %vm2240, %v3528, 0
      %v3581 = vsel %vm2277, %v3551, 0
      %3583 = vmatpush.bf16.msra.mxu0 0
      %3584 = vmatpush.bf16.msra.mxu0 0
      %3585 = vmatpush.bf16.msra.mxu0 0
      %3586 = vmatpush.bf16.msra.mxu0 %v3581
      %3587 = vmatpush.bf16.msra.mxu0 %v3550
      %3588 = vmatpush.bf16.msra.mxu0 %v3549
      %3589 = vmatpush.bf16.msra.mxu0 %v3548
      %3590 = vmatpush.bf16.msra.mxu0 %v3547
      %3591 = vmatmul.bf16.gmra.mxu0 %v3557
      %v3592 = vpop.f32.mrf.mxu0
      %v3593 = vadd.f32 %v3487, %v3592
      %v3594 = vpop.f32.mrf.mxu0
      %v3595 = vadd.f32 %v3487, %v3594
      %3596 = vmatmul.bf16.gmra.mxu0 %v3560
      %v3597 = vpop.f32.mrf.mxu0
      %v3598 = vadd.f32 %v3487, %v3597
      %v3599 = vpop.f32.mrf.mxu0
      %v3600 = vadd.f32 %v3487, %v3599
      %3601 = vmatmul.bf16.gmra.mxu0 %v3563
      %v3602 = vpop.f32.mrf.mxu0
      %v3603 = vadd.f32 %v3487, %v3602
      %v3604 = vpop.f32.mrf.mxu0
      %v3605 = vadd.f32 %v3487, %v3604
      %3606 = vmatmul.bf16.gmra.mxu0 %v3566
      %v3607 = vpop.f32.mrf.mxu0
      %v3608 = vadd.f32 %v3487, %v3607
      %v3609 = vpop.f32.mrf.mxu0
      %v3610 = vadd.f32 %v3487, %v3609
      %3611 = vmatmul.bf16.gmra.mxu0 %v3569
      %v3612 = vpop.f32.mrf.mxu0
      %v3613 = vadd.f32 %v3487, %v3612
      %v3614 = vpop.f32.mrf.mxu0
      %v3615 = vadd.f32 %v3487, %v3614
      %3616 = vmatmul.bf16.gmra.mxu0 %v3572
      %v3617 = vpop.f32.mrf.mxu0
      %v3618 = vadd.f32 %v3487, %v3617
      %v3619 = vpop.f32.mrf.mxu0
      %v3620 = vadd.f32 %v3487, %v3619
      %3621 = vmatmul.bf16.gmra.mxu0 %v3575
      %v3622 = vpop.f32.mrf.mxu0
      %v3623 = vadd.f32 %v3487, %v3622
      %v3624 = vpop.f32.mrf.mxu0
      %v3625 = vadd.f32 %v3487, %v3624
      %3626 = vmatmul.bf16.gmra.mxu0 %v3578
      %v3627 = vpop.f32.mrf.mxu0
      %v3628 = vadd.f32 %v3487, %v3627
      %v3629 = vpop.f32.mrf.mxu0
      %v3630 = vadd.f32 %v3487, %v3629
      %3631 = vdwg.mxu0
      %v3632 = vmax.f32 %v3593, 0.0
      %v3633 = vmax.f32 %v3595, 0.0
      %v3634 = vmax.f32 %v3598, 0.0
      %v3635 = vmax.f32 %v3600, 0.0
      %v3636 = vmax.f32 %v3603, 0.0
      %v3637 = vmax.f32 %v3605, 0.0
      %v3638 = vmax.f32 %v3608, 0.0
      %v3639 = vmax.f32 %v3610, 0.0
      %v3640 = vmax.f32 %v3613, 0.0
      %v3641 = vmax.f32 %v3615, 0.0
      %v3642 = vmax.f32 %v3618, 0.0
      %v3643 = vmax.f32 %v3620, 0.0
      %v3644 = vmax.f32 %v3623, 0.0
      %v3645 = vmax.f32 %v3625, 0.0
      %v3646 = vmax.f32 %v3628, 0.0
      %v3647 = vmax.f32 %v3630, 0.0
      %v3648 = vadd.f32 %v609, %v3632
      %v3649 = vadd.f32 %v610, %v3633
      %v3650 = vadd.f32 %v611, %v3634
      %v3651 = vadd.f32 %v612, %v3635
      %v3652 = vadd.f32 %v613, %v3636
      %v3653 = vadd.f32 %v614, %v3637
      %v3654 = vadd.f32 %v615, %v3638
      %v3655 = vadd.f32 %v616, %v3639
      %v3656 = vadd.f32 %v617, %v3640
      %v3657 = vadd.f32 %v618, %v3641
      %v3658 = vadd.f32 %v619, %v3642
      %v3659 = vadd.f32 %v620, %v3643
      %v3660 = vadd.f32 %v621, %v3644
      %v3661 = vadd.f32 %v622, %v3645
      %v3662 = vadd.f32 %v623, %v3646
      %v3663 = vadd.f32 %v624, %v3647
      %3664 = vst.msk [vmem:[%s300] sm:$0xff] %vm660, %v3648
      %3665 = vst.msk [vmem:[%s300 + $0x8] sm:$0xff] %vm660, %v3649
      %3666 = vst.msk [vmem:[%s300 + $0x10] sm:$0xff] %vm660, %v3650
      %3667 = vst.msk [vmem:[%s300 + $0x18] sm:$0xff] %vm660, %v3651
      %3668 = vst.msk [vmem:[%s300 + $0x20] sm:$0xff] %vm660, %v3652
      %3669 = vst.msk [vmem:[%s300 + $0x28] sm:$0xff] %vm660, %v3653
      %3670 = vst.msk [vmem:[%s300 + $0x30] sm:$0xff] %vm660, %v3654
      %3671 = vst.msk [vmem:[%s300 + $0x38] sm:$0xff] %vm660, %v3655
      %3672 = vst.msk [vmem:[%s300 + $0x40] sm:$0xff] %vm660, %v3656
      %3673 = vst.msk [vmem:[%s300 + $0x48] sm:$0xff] %vm660, %v3657
      %3674 = vst.msk [vmem:[%s300 + $0x50] sm:$0xff] %vm660, %v3658
      %3675 = vst.msk [vmem:[%s300 + $0x58] sm:$0xff] %vm660, %v3659
      %3676 = vst.msk [vmem:[%s300 + $0x60] sm:$0xff] %vm660, %v3660
      %3677 = vst.msk [vmem:[%s300 + $0x68] sm:$0xff] %vm660, %v3661
      %3678 = vst.msk [vmem:[%s300 + $0x70] sm:$0xff] %vm660, %v3662
      %3679 = vst.msk [vmem:[%s300 + $0x78] sm:$0xff] %vm660, %v3663
      %s3680 = smul.u32 16, %s23
      %p3681 = scmp.lt.s32.totalorder %s22, 1
      %s3682 = scalar_select %p3681, %s22, 1
      %p3683 = scmp.lt.s32.totalorder %s3680, 31
      %s3684 = scalar_select %p3683, %s3680, 31
      %s3685 = smul.addr %s3682, 32
      %s3686 = sadd.s32 %s3684, %s3685
      %s3687 = smul.addr %s3686, 8
      %s3688 = scalar_lea.vmem %s7, %s3687
      // Predicated region
      $region49: #{tpu_custom_call.1} parent=47 // pred_check
        %p3689 = pneg %p202
      $region50: #{tpu_custom_call.1} parent=47 // pred_check_branch
        %3691 = sbr.rel (%p3689) target = $region52
      $region51: #{tpu_custom_call.1} parent=47 // pred_region
        %s3692 = smul.u32 16, %s23
      $region52: #{tpu_custom_call.1} parent=47 // pred_fallthru
        _
    $region48: #{tpu_custom_call.1} parent=5 // pred_fallthru
      _
    %p3693 = scmp.le.s32.totalorder 2, %s13
    // Predicated region
    $region53: #{tpu_custom_call.1} parent=5 // pred_check
      %p3694 = pneg %p3693
    $region54: #{tpu_custom_call.1} parent=5 // pred_check_branch
      %3696 = sbr.rel (%p3694) target = $region56
    $region55: #{tpu_custom_call.1} parent=5 // pred_region
      %s3697 = ssub.s32 %s13, 2
      // Predicated region
      $region57: #{tpu_custom_call.1} parent=55 // pred_check
        %p3698 = pneg %p208
      $region58: #{tpu_custom_call.1} parent=55 // pred_check_branch
        %3700 = sbr.rel (%p3698) target = $region60
      $region59: #{tpu_custom_call.1} parent=55 // pred_region
        %s3701 = smul.u32 16, %s25
        %p3702 = scmp.lt.s32.totalorder %s24, 1
        %s3703 = scalar_select %p3702, %s24, 1
        %p3704 = scmp.lt.s32.totalorder %s3701, 31
        %s3705 = scalar_select %p3704, %s3701, 31
        %s3706 = smul.addr %s3703, 32
        %s3707 = sadd.s32 %s3705, %s3706
        %s3708 = smul.addr %s3707, 8
        %s3709 = scalar_lea.vmem %s7, %s3708
      $region60: #{tpu_custom_call.1} parent=55 // pred_fallthru
        _
    $region56: #{tpu_custom_call.1} parent=5 // pred_fallthru
      _
  $region6: #{tpu_custom_call.1} parent=0 // loop_footer
    %s17 = sadd.s32 1, %s13
  $region7: #{tpu_custom_call.1} parent=0 // loop_footer_branch
    %12 = sbr.rel target = $region3
  $region8: #{tpu_custom_call.1} parent=0 // loop_exit
    _

</llo_original>
